<compile_context>
chip_gen: v5e
topology: v5e:2x2
jax: 0.10.0
libtpu: 0.0.40
codegen_flags: <defaults>
</compile_context>

<pallas_src>
import functools

import jax
import jax.numpy as jnp
from jax import lax
from jax.experimental import pallas as pl
from jax.experimental.pallas import tpu as pltpu


# ----------------------------- helpers ---------------------------------------

def _round_up(v, m):
    return (v + m - 1) // m * m


def _apply_act(y, act):
    if act == 'relu':
        return jnp.maximum(y, 0.0)
    if act == 'sigmoid':
        return 1.0 / (1.0 + jnp.exp(-y))        # exp lowers to EUP (free slot)
    if act == 'elu':
        return jnp.where(y > 0, y, jnp.exp(jnp.minimum(y, 0.0)) - 1.0)
    if act == 'none':
        return y
    raise ValueError(f"unknown act: {act}")


# ----------------------------- Pallas kernel ---------------------------------

def _gemm_bias_act_kernel(x_ref, w_ref, b_ref, o_ref, *, act):
    # x_ref: (tm, K) bf16, w_ref: (K, tn) bf16, b_ref: (1, tn) f32,
    # o_ref: (tm, tn) f32.  MXU matmul with f32 accumulation, f32 epilogue.
    y = jnp.dot(x_ref[...], w_ref[...], preferred_element_type=jnp.float32)
    y = y + b_ref[...]          # f32 bias broadcast over rows (VPU)
    y = _apply_act(y, act)      # f32 epilogue (VPU/EUP)
    o_ref[...] = y.astype(o_ref.dtype)


def fused_matmul_bias_act(x, w, b, act):
    """act(x @ w + b): bf16 MXU operands, f32 accumulation + f32 epilogue."""
    M, K = x.shape
    K2, N = w.shape
    assert K == K2

    # Pad for lane-dense / tile-aligned blocks: lanes -> 128, sublanes -> 16.
    M_pad = _round_up(max(M, 16), 16)
    if M_pad <= 512:
        tm = M_pad
    else:
        tm = 512                        # big tile -> near HBM roofline
        M_pad = _round_up(M_pad, tm)
    K_pad = _round_up(K, 128)           # K stays un-tiled (K <= ~1k here)
    N_pad = _round_up(N, 128)
    if N_pad <= 512:
        tn = N_pad
    else:
        tn = 256
        N_pad = _round_up(N_pad, tn)

    xp = jnp.zeros((M_pad, K_pad), jnp.bfloat16).at[:M, :K].set(
        x.astype(jnp.bfloat16))
    wp = jnp.zeros((K_pad, N_pad), jnp.bfloat16).at[:K, :N].set(
        w.astype(jnp.bfloat16))
    bp = jnp.zeros((1, N_pad), jnp.float32).at[0, :N].set(
        b.astype(jnp.float32))

    kernel = functools.partial(_gemm_bias_act_kernel, act=act)
    out = pl.pallas_call(
        kernel,
        out_shape=jax.ShapeDtypeStruct((M_pad, N_pad), jnp.float32),
        grid_spec=pl.GridSpec(
            grid=(M_pad // tm, N_pad // tn),
            in_specs=[
                pl.BlockSpec((tm, K_pad), lambda i, j: (i, 0)),
                pl.BlockSpec((K_pad, tn), lambda i, j: (0, j)),
                pl.BlockSpec((1, tn), lambda i, j: (0, j)),
            ],
            out_specs=pl.BlockSpec((tm, tn), lambda i, j: (i, j)),
        ),
        compiler_params=pltpu.CompilerParams(
            dimension_semantics=("parallel", "parallel")),
    )(xp, wp, bp)
    return out[:M, :N]


# ----------------------------- conv blocks -----------------------------------

def _im2col(x, ksize, stride, padding):
    """x: (N, H, W, C) -> patches (N*H_out*W_out, ksize*ksize*C)."""
    N, H, W, C = x.shape
    xp = jnp.pad(x, ((0, 0), (padding, padding), (padding, padding), (0, 0)))
    Hp, Wp = H + 2 * padding, W + 2 * padding
    H_out = (Hp - ksize) // stride + 1
    W_out = (Wp - ksize) // stride + 1
    taps = []
    for i in range(ksize):
        for j in range(ksize):
            sl = lax.slice(
                xp,
                (0, i, j, 0),
                (N, i + stride * (H_out - 1) + 1,
                 j + stride * (W_out - 1) + 1, C),
                (1, stride, stride, 1))
            taps.append(sl)
    patches = jnp.concatenate(taps, axis=-1)
    return patches.reshape(N * H_out * W_out, ksize * ksize * C), (N, H_out, W_out)


def _conv_block_pallas(x, w, b, stride, act):
    """Fused Conv2d(+folded BN) + bias + act via ONE Pallas GEMM kernel."""
    ks, _, cin, cout = w.shape
    pad = ks // 2
    patches, (n, ho, wo) = _im2col(x, ks, stride, pad)
    y = fused_matmul_bias_act(patches, w.reshape(ks * ks * cin, cout), b, act)
    return y.reshape(n, ho, wo, cout)


def _conv_block_ref(x, w, b, stride, act):
    """Pure-JAX reference with the same bf16-operand / f32-accum numerics."""
    ks = w.shape[0]
    pad = ks // 2
    y = lax.conv_general_dilated(
        x.astype(jnp.bfloat16), w.astype(jnp.bfloat16),
        window_strides=(stride, stride),
        padding=[(pad, pad), (pad, pad)],
        dimension_numbers=('NHWC', 'HWIO', 'NHWC'),
        preferred_element_type=jnp.float32)
    y = y + b.reshape(1, 1, 1, -1).astype(jnp.float32)
    return _apply_act(y, act)


# ----------------------------- UNet forward ----------------------------------

def _unet_forward(params, x, latent_feature, *, cfg, conv_fn):
    # NCHW (PyTorch interface) -> NHWC (lane-dense channels)
    x = jnp.transpose(x, (0, 2, 3, 1))
    act = cfg['act']

    x_downs = []
    for i, blocks in enumerate(params['down']):
        for bi, (w, b) in enumerate(blocks):
            stride = cfg['strides'][i] if bi == 0 else 1
            x = conv_fn(x, w, b, stride, act)
        x_downs.append(x)

    if cfg['inject_latent']:
        lat = jnp.transpose(latent_feature, (0, 2, 3, 1))
        x = jnp.concatenate([x, lat], axis=-1)

    for i, blocks in enumerate(params['up']):
        if i > 0:
            x = jnp.concatenate([x, x_downs[cfg['layer_num'] - 1 - i]], axis=-1)
        s = cfg['up_strides'][i]
        if s > 1:
            x = jnp.repeat(jnp.repeat(x, s, axis=1), s, axis=2)  # nearest up
        for (w, b) in blocks:
            x = conv_fn(x, w, b, 1, act)

    if cfg['final_conv_to_RGB']:
        wf, bf = params['final']
        x = conv_fn(x, wf, bf, 1, cfg['final_act'])

    return jnp.transpose(x, (0, 3, 1, 2))  # back to NCHW


class UNet:
    """JAX/Pallas port of the PyTorch UNet (inference forward)."""

    def __init__(self, args, key):
        self.args = args
        layer_channels = args['layer_channels']
        layer_num = len(layer_channels)
        ks = args['kernel_size']
        use_bn = args['use_bn']

        def split():
            nonlocal key
            key, sub = jax.random.split(key)
            return sub

        def make_conv(cin, cout, kernel, bn):
            kw_, kb_ = jax.random.split(split())
            fan_in = cin * kernel * kernel
            bound = 1.0 / (fan_in ** 0.5)
            w = jax.random.uniform(kw_, (kernel, kernel, cin, cout),
                                   jnp.float32, minval=-bound, maxval=bound)
            b = jax.random.uniform(kb_, (cout,), jnp.float32,
                                   minval=-bound, maxval=bound)
            if bn:
                # Fold eval-mode BatchNorm (default-init stats) into the conv.
                eps = 1e-5
                scale = 1.0 / jnp.sqrt(jnp.ones((cout,), jnp.float32) + eps)
                w = w * scale
                b = b * scale
            return (w, b)

        params = {'down': [], 'up': [], 'final': None}
        inplanes = args['in_ch']
        for i in range(layer_num):
            blocks = []
            cin = inplanes
            for _ in range(args['block_nums'][i]):
                blocks.append(make_conv(cin, layer_channels[i], ks, use_bn))
                cin = layer_channels[i]
            params['down'].append(blocks)
            inplanes = layer_channels[i]
        for i in range(layer_num):
            blocks = []
            cin = args['up_in_channels'][i]
            for _ in range(args['up_block_nums'][i]):
                blocks.append(make_conv(cin, args['up_layer_channels'][i], ks, use_bn))
                cin = args['up_layer_channels'][i]
            params['up'].append(blocks)
        if args['final_conv_to_RGB']:
            cin = args['up_layer_channels'][-1]
            params['final'] = make_conv(cin, 3, 3, False)
        self.params = params

        cfg = {
            'layer_num': layer_num,
            'strides': tuple(args['strides']),
            'up_strides': tuple(args['up_strides']),
            'act': args['act'],
            'inject_latent': bool(args['inject_latent']),
            'final_conv_to_RGB': bool(args['final_conv_to_RGB']),
            'final_act': args.get('final_conv_to_RGB_act', 'relu'),
        }
        self.cfg = cfg
        self._fwd_pallas = jax.jit(functools.partial(
            _unet_forward, cfg=cfg, conv_fn=_conv_block_pallas))
        self._fwd_ref = jax.jit(functools.partial(
            _unet_forward, cfg=cfg, conv_fn=_conv_block_ref))

    def __call__(self, x, latent_feature=None):
        return self._fwd_pallas(self.params, x, latent_feature)

    def reference(self, x, latent_feature=None):
        return self._fwd_ref(self.params, x, latent_feature)


# ------------------------------- main -----------------------------------------

if __name__ == "__main__":
    key = jax.random.PRNGKey(0)
    key, kx, kl, kp = jax.random.split(key, 4)

    args = {
        'in_ch': 7,
        'layer_channels': [16, 32, 64],
        'strides': [2, 2, 2],
        'block_nums': [1, 1, 1],
        'up_in_channels': [72, 64, 32],      # 64 + 8(latent), 32+32, 16+16
        'up_layer_channels': [32, 16, 16],
        'up_strides': [2, 2, 2],
        'up_block_nums': [1, 1, 1],
        'kernel_size': 3,
        'use_bn': True,
        'act': 'relu',
        'inject_latent': True,
        'final_conv_to_RGB': True,
        'final_conv_to_RGB_act': 'sigmoid',
    }

    N, H, W = 1, 16, 16
    x = jax.random.normal(kx, (N, args['in_ch'], H, W), jnp.float32)
    latent = jax.random.normal(kl, (N, 8, H // 8, W // 8), jnp.float32)  # (1,8,2,2)

    unet = UNet(args, kp)

    out = unet(x, latent)
    out = jax.block_until_ready(out)

    ref = unet.reference(x, latent)
    ref = jax.block_until_ready(ref)

    assert out.shape == (N, 3, H, W), out.shape
    assert jnp.allclose(out, ref, atol=5e-3, rtol=5e-3), \
        float(jnp.max(jnp.abs(out - ref)))

    print("KERNEL_OK")
</pallas_src>

<mosaic_0001>
module attributes {stable_mosaic.version = 11 : i64} {
  func.func @_gemm_bias_act_kernel(%arg0: i32, %arg1: i32, %arg2: memref<64x128xbf16, #tpu.memory_space<vmem>>, %arg3: memref<128x128xbf16, #tpu.memory_space<vmem>>, %arg4: memref<1x128xf32, #tpu.memory_space<vmem>>, %arg5: memref<64x128xf32, #tpu.memory_space<vmem>>) attributes {dimension_semantics = [#tpu.dimension_semantics<parallel>, #tpu.dimension_semantics<parallel>], iteration_bounds = array<i64: 1, 1>, scalar_prefetch = 0 : i64, scratch_operands = 0 : i64, tpu.core_type = #tpu.core_type<tc>, window_params = [{transform_indices = @transform_0, window_bounds = array<i64: 64, 128>}, {transform_indices = @transform_1, window_bounds = array<i64: 128, 128>}, {transform_indices = @transform_2, window_bounds = array<i64: 1, 128>}, {transform_indices = @transform_3, window_bounds = array<i64: 64, 128>}]} {
    %c0 = arith.constant 0 : index
    %c0_0 = arith.constant 0 : index
    %0 = vector.load %arg2[%c0, %c0_0] : memref<64x128xbf16, #tpu.memory_space<vmem>>, vector<64x128xbf16>
    %c0_1 = arith.constant 0 : index
    %c0_2 = arith.constant 0 : index
    %1 = vector.load %arg3[%c0_1, %c0_2] : memref<128x128xbf16, #tpu.memory_space<vmem>>, vector<128x128xbf16>
    %cst = arith.constant dense<0.000000e+00> : vector<64x128xf32>
    %2 = tpu.matmul %0, %1, %cst {dimension_numbers = #tpu.dot_dimension_numbers<[1], [0], [0], [1], [0, 0, 1, 1], [], []>} : vector<64x128xbf16>, vector<128x128xbf16>, vector<64x128xf32> -> vector<64x128xf32>
    %c0_3 = arith.constant 0 : index
    %c0_4 = arith.constant 0 : index
    %3 = vector.load %arg4[%c0_3, %c0_4] : memref<1x128xf32, #tpu.memory_space<vmem>>, vector<1x128xf32>
    %4 = vector.broadcast %3 : vector<1x128xf32> to vector<64x128xf32>
    %5 = arith.addf %2, %4 : vector<64x128xf32>
    %cst_5 = arith.constant 0.000000e+00 : f32
    %6 = vector.broadcast %cst_5 : f32 to vector<64x128xf32>
    %7 = arith.maximumf %5, %6 : vector<64x128xf32>
    %c0_6 = arith.constant 0 : index
    %c0_7 = arith.constant 0 : index
    %8 = vector.load %arg5[%c0_6, %c0_7] : memref<64x128xf32, #tpu.memory_space<vmem>>, vector<64x128xf32>
    tpu.vector_store %arg5[%c0_6, %c0_7], %7 {strides = array<i32>} : memref<64x128xf32, #tpu.memory_space<vmem>>, vector<64x128xf32>,
    return
  }
  func.func @transform_0(%arg0: i32, %arg1: i32) -> (i32, i32) {
    %c0_i32 = arith.constant 0 : i32
    %c0_i32_0 = arith.constant 0 : i32
    return %arg0, %c0_i32 : i32, i32
  }
  func.func @transform_1(%arg0: i32, %arg1: i32) -> (i32, i32) {
    %c0_i32 = arith.constant 0 : i32
    %c0_i32_0 = arith.constant 0 : i32
    return %c0_i32, %arg1 : i32, i32
  }
  func.func @transform_2(%arg0: i32, %arg1: i32) -> (i32, i32) {
    %c0_i32 = arith.constant 0 : i32
    %c0_i32_0 = arith.constant 0 : i32
    return %c0_i32, %arg1 : i32, i32
  }
  func.func @transform_3(%arg0: i32, %arg1: i32) -> (i32, i32) {
    %c0_i32 = arith.constant 0 : i32
    return %arg0, %arg1 : i32, i32
  }
}

module attributes {stable_mosaic.version = 11 : i64} {
  func.func @_gemm_bias_act_kernel(%arg0: i32, %arg1: i32, %arg2: memref<16x256xbf16, #tpu.memory_space<vmem>>, %arg3: memref<256x128xbf16, #tpu.memory_space<vmem>>, %arg4: memref<1x128xf32, #tpu.memory_space<vmem>>, %arg5: memref<16x128xf32, #tpu.memory_space<vmem>>) attributes {dimension_semantics = [#tpu.dimension_semantics<parallel>, #tpu.dimension_semantics<parallel>], iteration_bounds = array<i64: 1, 1>, scalar_prefetch = 0 : i64, scratch_operands = 0 : i64, tpu.core_type = #tpu.core_type<tc>, window_params = [{transform_indices = @transform_0, window_bounds = array<i64: 16, 256>}, {transform_indices = @transform_1, window_bounds = array<i64: 256, 128>}, {transform_indices = @transform_2, window_bounds = array<i64: 1, 128>}, {transform_indices = @transform_3, window_bounds = array<i64: 16, 128>}]} {
    %c0 = arith.constant 0 : index
    %c0_0 = arith.constant 0 : index
    %0 = vector.load %arg2[%c0, %c0_0] : memref<16x256xbf16, #tpu.memory_space<vmem>>, vector<16x256xbf16>
    %c0_1 = arith.constant 0 : index
    %c0_2 = arith.constant 0 : index
    %1 = vector.load %arg3[%c0_1, %c0_2] : memref<256x128xbf16, #tpu.memory_space<vmem>>, vector<256x128xbf16>
    %cst = arith.constant dense<0.000000e+00> : vector<16x128xf32>
    %2 = tpu.matmul %0, %1, %cst {dimension_numbers = #tpu.dot_dimension_numbers<[1], [0], [0], [1], [0, 0, 1, 1], [], []>} : vector<16x256xbf16>, vector<256x128xbf16>, vector<16x128xf32> -> vector<16x128xf32>
    %c0_3 = arith.constant 0 : index
    %c0_4 = arith.constant 0 : index
    %3 = vector.load %arg4[%c0_3, %c0_4] : memref<1x128xf32, #tpu.memory_space<vmem>>, vector<1x128xf32>
    %4 = vector.broadcast %3 : vector<1x128xf32> to vector<16x128xf32>
    %5 = arith.addf %2, %4 : vector<16x128xf32>
    %cst_5 = arith.constant 0.000000e+00 : f32
    %6 = vector.broadcast %cst_5 : f32 to vector<16x128xf32>
    %7 = arith.maximumf %5, %6 : vector<16x128xf32>
    %c0_6 = arith.constant 0 : index
    %c0_7 = arith.constant 0 : index
    %8 = vector.load %arg5[%c0_6, %c0_7] : memref<16x128xf32, #tpu.memory_space<vmem>>, vector<16x128xf32>
    tpu.vector_store %arg5[%c0_6, %c0_7], %7 {strides = array<i32>} : memref<16x128xf32, #tpu.memory_space<vmem>>, vector<16x128xf32>,
    return
  }
  func.func @transform_0(%arg0: i32, %arg1: i32) -> (i32, i32) {
    %c0_i32 = arith.constant 0 : i32
    %c0_i32_0 = arith.constant 0 : i32
    return %arg0, %c0_i32 : i32, i32
  }
  func.func @transform_1(%arg0: i32, %arg1: i32) -> (i32, i32) {
    %c0_i32 = arith.constant 0 : i32
    %c0_i32_0 = arith.constant 0 : i32
    return %c0_i32, %arg1 : i32, i32
  }
  func.func @transform_2(%arg0: i32, %arg1: i32) -> (i32, i32) {
    %c0_i32 = arith.constant 0 : i32
    %c0_i32_0 = arith.constant 0 : i32
    return %c0_i32, %arg1 : i32, i32
  }
  func.func @transform_3(%arg0: i32, %arg1: i32) -> (i32, i32) {
    %c0_i32 = arith.constant 0 : i32
    return %arg0, %arg1 : i32, i32
  }
}

module attributes {stable_mosaic.version = 11 : i64} {
  func.func @_gemm_bias_act_kernel(%arg0: i32, %arg1: i32, %arg2: memref<16x384xbf16, #tpu.memory_space<vmem>>, %arg3: memref<384x128xbf16, #tpu.memory_space<vmem>>, %arg4: memref<1x128xf32, #tpu.memory_space<vmem>>, %arg5: memref<16x128xf32, #tpu.memory_space<vmem>>) attributes {dimension_semantics = [#tpu.dimension_semantics<parallel>, #tpu.dimension_semantics<parallel>], iteration_bounds = array<i64: 1, 1>, scalar_prefetch = 0 : i64, scratch_operands = 0 : i64, tpu.core_type = #tpu.core_type<tc>, window_params = [{transform_indices = @transform_0, window_bounds = array<i64: 16, 384>}, {transform_indices = @transform_1, window_bounds = array<i64: 384, 128>}, {transform_indices = @transform_2, window_bounds = array<i64: 1, 128>}, {transform_indices = @transform_3, window_bounds = array<i64: 16, 128>}]} {
    %c0 = arith.constant 0 : index
    %c0_0 = arith.constant 0 : index
    %0 = vector.load %arg2[%c0, %c0_0] : memref<16x384xbf16, #tpu.memory_space<vmem>>, vector<16x384xbf16>
    %c0_1 = arith.constant 0 : index
    %c0_2 = arith.constant 0 : index
    %1 = vector.load %arg3[%c0_1, %c0_2] : memref<384x128xbf16, #tpu.memory_space<vmem>>, vector<384x128xbf16>
    %cst = arith.constant dense<0.000000e+00> : vector<16x128xf32>
    %2 = tpu.matmul %0, %1, %cst {dimension_numbers = #tpu.dot_dimension_numbers<[1], [0], [0], [1], [0, 0, 1, 1], [], []>} : vector<16x384xbf16>, vector<384x128xbf16>, vector<16x128xf32> -> vector<16x128xf32>
    %c0_3 = arith.constant 0 : index
    %c0_4 = arith.constant 0 : index
    %3 = vector.load %arg4[%c0_3, %c0_4] : memref<1x128xf32, #tpu.memory_space<vmem>>, vector<1x128xf32>
    %4 = vector.broadcast %3 : vector<1x128xf32> to vector<16x128xf32>
    %5 = arith.addf %2, %4 : vector<16x128xf32>
    %cst_5 = arith.constant 0.000000e+00 : f32
    %6 = vector.broadcast %cst_5 : f32 to vector<16x128xf32>
    %7 = arith.maximumf %5, %6 : vector<16x128xf32>
    %c0_6 = arith.constant 0 : index
    %c0_7 = arith.constant 0 : index
    %8 = vector.load %arg5[%c0_6, %c0_7] : memref<16x128xf32, #tpu.memory_space<vmem>>, vector<16x128xf32>
    tpu.vector_store %arg5[%c0_6, %c0_7], %7 {strides = array<i32>} : memref<16x128xf32, #tpu.memory_space<vmem>>, vector<16x128xf32>,
    return
  }
  func.func @transform_0(%arg0: i32, %arg1: i32) -> (i32, i32) {
    %c0_i32 = arith.constant 0 : i32
    %c0_i32_0 = arith.constant 0 : i32
    return %arg0, %c0_i32 : i32, i32
  }
  func.func @transform_1(%arg0: i32, %arg1: i32) -> (i32, i32) {
    %c0_i32 = arith.constant 0 : i32
    %c0_i32_0 = arith.constant 0 : i32
    return %c0_i32, %arg1 : i32, i32
  }
  func.func @transform_2(%arg0: i32, %arg1: i32) -> (i32, i32) {
    %c0_i32 = arith.constant 0 : i32
    %c0_i32_0 = arith.constant 0 : i32
    return %c0_i32, %arg1 : i32, i32
  }
  func.func @transform_3(%arg0: i32, %arg1: i32) -> (i32, i32) {
    %c0_i32 = arith.constant 0 : i32
    return %arg0, %arg1 : i32, i32
  }
}

module attributes {stable_mosaic.version = 11 : i64} {
  func.func @_gemm_bias_act_kernel(%arg0: i32, %arg1: i32, %arg2: memref<16x768xbf16, #tpu.memory_space<vmem>>, %arg3: memref<768x128xbf16, #tpu.memory_space<vmem>>, %arg4: memref<1x128xf32, #tpu.memory_space<vmem>>, %arg5: memref<16x128xf32, #tpu.memory_space<vmem>>) attributes {dimension_semantics = [#tpu.dimension_semantics<parallel>, #tpu.dimension_semantics<parallel>], iteration_bounds = array<i64: 1, 1>, scalar_prefetch = 0 : i64, scratch_operands = 0 : i64, tpu.core_type = #tpu.core_type<tc>, window_params = [{transform_indices = @transform_0, window_bounds = array<i64: 16, 768>}, {transform_indices = @transform_1, window_bounds = array<i64: 768, 128>}, {transform_indices = @transform_2, window_bounds = array<i64: 1, 128>}, {transform_indices = @transform_3, window_bounds = array<i64: 16, 128>}]} {
    %c0 = arith.constant 0 : index
    %c0_0 = arith.constant 0 : index
    %0 = vector.load %arg2[%c0, %c0_0] : memref<16x768xbf16, #tpu.memory_space<vmem>>, vector<16x768xbf16>
    %c0_1 = arith.constant 0 : index
    %c0_2 = arith.constant 0 : index
    %1 = vector.load %arg3[%c0_1, %c0_2] : memref<768x128xbf16, #tpu.memory_space<vmem>>, vector<768x128xbf16>
    %cst = arith.constant dense<0.000000e+00> : vector<16x128xf32>
    %2 = tpu.matmul %0, %1, %cst {dimension_numbers = #tpu.dot_dimension_numbers<[1], [0], [0], [1], [0, 0, 1, 1], [], []>} : vector<16x768xbf16>, vector<768x128xbf16>, vector<16x128xf32> -> vector<16x128xf32>
    %c0_3 = arith.constant 0 : index
    %c0_4 = arith.constant 0 : index
    %3 = vector.load %arg4[%c0_3, %c0_4] : memref<1x128xf32, #tpu.memory_space<vmem>>, vector<1x128xf32>
    %4 = vector.broadcast %3 : vector<1x128xf32> to vector<16x128xf32>
    %5 = arith.addf %2, %4 : vector<16x128xf32>
    %cst_5 = arith.constant 0.000000e+00 : f32
    %6 = vector.broadcast %cst_5 : f32 to vector<16x128xf32>
    %7 = arith.maximumf %5, %6 : vector<16x128xf32>
    %c0_6 = arith.constant 0 : index
    %c0_7 = arith.constant 0 : index
    %8 = vector.load %arg5[%c0_6, %c0_7] : memref<16x128xf32, #tpu.memory_space<vmem>>, vector<16x128xf32>
    tpu.vector_store %arg5[%c0_6, %c0_7], %7 {strides = array<i32>} : memref<16x128xf32, #tpu.memory_space<vmem>>, vector<16x128xf32>,
    return
  }
  func.func @transform_0(%arg0: i32, %arg1: i32) -> (i32, i32) {
    %c0_i32 = arith.constant 0 : i32
    %c0_i32_0 = arith.constant 0 : i32
    return %arg0, %c0_i32 : i32, i32
  }
  func.func @transform_1(%arg0: i32, %arg1: i32) -> (i32, i32) {
    %c0_i32 = arith.constant 0 : i32
    %c0_i32_0 = arith.constant 0 : i32
    return %c0_i32, %arg1 : i32, i32
  }
  func.func @transform_2(%arg0: i32, %arg1: i32) -> (i32, i32) {
    %c0_i32 = arith.constant 0 : i32
    %c0_i32_0 = arith.constant 0 : i32
    return %c0_i32, %arg1 : i32, i32
  }
  func.func @transform_3(%arg0: i32, %arg1: i32) -> (i32, i32) {
    %c0_i32 = arith.constant 0 : i32
    return %arg0, %arg1 : i32, i32
  }
}

module attributes {stable_mosaic.version = 11 : i64} {
  func.func @_gemm_bias_act_kernel(%arg0: i32, %arg1: i32, %arg2: memref<64x640xbf16, #tpu.memory_space<vmem>>, %arg3: memref<640x128xbf16, #tpu.memory_space<vmem>>, %arg4: memref<1x128xf32, #tpu.memory_space<vmem>>, %arg5: memref<64x128xf32, #tpu.memory_space<vmem>>) attributes {dimension_semantics = [#tpu.dimension_semantics<parallel>, #tpu.dimension_semantics<parallel>], iteration_bounds = array<i64: 1, 1>, scalar_prefetch = 0 : i64, scratch_operands = 0 : i64, tpu.core_type = #tpu.core_type<tc>, window_params = [{transform_indices = @transform_0, window_bounds = array<i64: 64, 640>}, {transform_indices = @transform_1, window_bounds = array<i64: 640, 128>}, {transform_indices = @transform_2, window_bounds = array<i64: 1, 128>}, {transform_indices = @transform_3, window_bounds = array<i64: 64, 128>}]} {
    %c0 = arith.constant 0 : index
    %c0_0 = arith.constant 0 : index
    %0 = vector.load %arg2[%c0, %c0_0] : memref<64x640xbf16, #tpu.memory_space<vmem>>, vector<64x640xbf16>
    %c0_1 = arith.constant 0 : index
    %c0_2 = arith.constant 0 : index
    %1 = vector.load %arg3[%c0_1, %c0_2] : memref<640x128xbf16, #tpu.memory_space<vmem>>, vector<640x128xbf16>
    %cst = arith.constant dense<0.000000e+00> : vector<64x128xf32>
    %2 = tpu.matmul %0, %1, %cst {dimension_numbers = #tpu.dot_dimension_numbers<[1], [0], [0], [1], [0, 0, 1, 1], [], []>} : vector<64x640xbf16>, vector<640x128xbf16>, vector<64x128xf32> -> vector<64x128xf32>
    %c0_3 = arith.constant 0 : index
    %c0_4 = arith.constant 0 : index
    %3 = vector.load %arg4[%c0_3, %c0_4] : memref<1x128xf32, #tpu.memory_space<vmem>>, vector<1x128xf32>
    %4 = vector.broadcast %3 : vector<1x128xf32> to vector<64x128xf32>
    %5 = arith.addf %2, %4 : vector<64x128xf32>
    %cst_5 = arith.constant 0.000000e+00 : f32
    %6 = vector.broadcast %cst_5 : f32 to vector<64x128xf32>
    %7 = arith.maximumf %5, %6 : vector<64x128xf32>
    %c0_6 = arith.constant 0 : index
    %c0_7 = arith.constant 0 : index
    %8 = vector.load %arg5[%c0_6, %c0_7] : memref<64x128xf32, #tpu.memory_space<vmem>>, vector<64x128xf32>
    tpu.vector_store %arg5[%c0_6, %c0_7], %7 {strides = array<i32>} : memref<64x128xf32, #tpu.memory_space<vmem>>, vector<64x128xf32>,
    return
  }
  func.func @transform_0(%arg0: i32, %arg1: i32) -> (i32, i32) {
    %c0_i32 = arith.constant 0 : i32
    %c0_i32_0 = arith.constant 0 : i32
    return %arg0, %c0_i32 : i32, i32
  }
  func.func @transform_1(%arg0: i32, %arg1: i32) -> (i32, i32) {
    %c0_i32 = arith.constant 0 : i32
    %c0_i32_0 = arith.constant 0 : i32
    return %c0_i32, %arg1 : i32, i32
  }
  func.func @transform_2(%arg0: i32, %arg1: i32) -> (i32, i32) {
    %c0_i32 = arith.constant 0 : i32
    %c0_i32_0 = arith.constant 0 : i32
    return %c0_i32, %arg1 : i32, i32
  }
  func.func @transform_3(%arg0: i32, %arg1: i32) -> (i32, i32) {
    %c0_i32 = arith.constant 0 : i32
    return %arg0, %arg1 : i32, i32
  }
}

module attributes {stable_mosaic.version = 11 : i64} {
  func.func @_gemm_bias_act_kernel(%arg0: i32, %arg1: i32, %arg2: memref<256x384xbf16, #tpu.memory_space<vmem>>, %arg3: memref<384x128xbf16, #tpu.memory_space<vmem>>, %arg4: memref<1x128xf32, #tpu.memory_space<vmem>>, %arg5: memref<256x128xf32, #tpu.memory_space<vmem>>) attributes {dimension_semantics = [#tpu.dimension_semantics<parallel>, #tpu.dimension_semantics<parallel>], iteration_bounds = array<i64: 1, 1>, scalar_prefetch = 0 : i64, scratch_operands = 0 : i64, tpu.core_type = #tpu.core_type<tc>, window_params = [{transform_indices = @transform_0, window_bounds = array<i64: 256, 384>}, {transform_indices = @transform_1, window_bounds = array<i64: 384, 128>}, {transform_indices = @transform_2, window_bounds = array<i64: 1, 128>}, {transform_indices = @transform_3, window_bounds = array<i64: 256, 128>}]} {
    %c0 = arith.constant 0 : index
    %c0_0 = arith.constant 0 : index
    %0 = vector.load %arg2[%c0, %c0_0] : memref<256x384xbf16, #tpu.memory_space<vmem>>, vector<256x384xbf16>
    %c0_1 = arith.constant 0 : index
    %c0_2 = arith.constant 0 : index
    %1 = vector.load %arg3[%c0_1, %c0_2] : memref<384x128xbf16, #tpu.memory_space<vmem>>, vector<384x128xbf16>
    %cst = arith.constant dense<0.000000e+00> : vector<256x128xf32>
    %2 = tpu.matmul %0, %1, %cst {dimension_numbers = #tpu.dot_dimension_numbers<[1], [0], [0], [1], [0, 0, 1, 1], [], []>} : vector<256x384xbf16>, vector<384x128xbf16>, vector<256x128xf32> -> vector<256x128xf32>
    %c0_3 = arith.constant 0 : index
    %c0_4 = arith.constant 0 : index
    %3 = vector.load %arg4[%c0_3, %c0_4] : memref<1x128xf32, #tpu.memory_space<vmem>>, vector<1x128xf32>
    %4 = vector.broadcast %3 : vector<1x128xf32> to vector<256x128xf32>
    %5 = arith.addf %2, %4 : vector<256x128xf32>
    %cst_5 = arith.constant 0.000000e+00 : f32
    %6 = vector.broadcast %cst_5 : f32 to vector<256x128xf32>
    %7 = arith.maximumf %5, %6 : vector<256x128xf32>
    %c0_6 = arith.constant 0 : index
    %c0_7 = arith.constant 0 : index
    %8 = vector.load %arg5[%c0_6, %c0_7] : memref<256x128xf32, #tpu.memory_space<vmem>>, vector<256x128xf32>
    tpu.vector_store %arg5[%c0_6, %c0_7], %7 {strides = array<i32>} : memref<256x128xf32, #tpu.memory_space<vmem>>, vector<256x128xf32>,
    return
  }
  func.func @transform_0(%arg0: i32, %arg1: i32) -> (i32, i32) {
    %c0_i32 = arith.constant 0 : i32
    %c0_i32_0 = arith.constant 0 : i32
    return %arg0, %c0_i32 : i32, i32
  }
  func.func @transform_1(%arg0: i32, %arg1: i32) -> (i32, i32) {
    %c0_i32 = arith.constant 0 : i32
    %c0_i32_0 = arith.constant 0 : i32
    return %c0_i32, %arg1 : i32, i32
  }
  func.func @transform_2(%arg0: i32, %arg1: i32) -> (i32, i32) {
    %c0_i32 = arith.constant 0 : i32
    %c0_i32_0 = arith.constant 0 : i32
    return %c0_i32, %arg1 : i32, i32
  }
  func.func @transform_3(%arg0: i32, %arg1: i32) -> (i32, i32) {
    %c0_i32 = arith.constant 0 : i32
    return %arg0, %arg1 : i32, i32
  }
}

module attributes {stable_mosaic.version = 11 : i64} {
  func.func @_gemm_bias_act_kernel(%arg0: i32, %arg1: i32, %arg2: memref<256x256xbf16, #tpu.memory_space<vmem>>, %arg3: memref<256x128xbf16, #tpu.memory_space<vmem>>, %arg4: memref<1x128xf32, #tpu.memory_space<vmem>>, %arg5: memref<256x128xf32, #tpu.memory_space<vmem>>) attributes {dimension_semantics = [#tpu.dimension_semantics<parallel>, #tpu.dimension_semantics<parallel>], iteration_bounds = array<i64: 1, 1>, scalar_prefetch = 0 : i64, scratch_operands = 0 : i64, tpu.core_type = #tpu.core_type<tc>, window_params = [{transform_indices = @transform_0, window_bounds = array<i64: 256, 256>}, {transform_indices = @transform_1, window_bounds = array<i64: 256, 128>}, {transform_indices = @transform_2, window_bounds = array<i64: 1, 128>}, {transform_indices = @transform_3, window_bounds = array<i64: 256, 128>}]} {
    %c0 = arith.constant 0 : index
    %c0_0 = arith.constant 0 : index
    %0 = vector.load %arg2[%c0, %c0_0] : memref<256x256xbf16, #tpu.memory_space<vmem>>, vector<256x256xbf16>
    %c0_1 = arith.constant 0 : index
    %c0_2 = arith.constant 0 : index
    %1 = vector.load %arg3[%c0_1, %c0_2] : memref<256x128xbf16, #tpu.memory_space<vmem>>, vector<256x128xbf16>
    %cst = arith.constant dense<0.000000e+00> : vector<256x128xf32>
    %2 = tpu.matmul %0, %1, %cst {dimension_numbers = #tpu.dot_dimension_numbers<[1], [0], [0], [1], [0, 0, 1, 1], [], []>} : vector<256x256xbf16>, vector<256x128xbf16>, vector<256x128xf32> -> vector<256x128xf32>
    %c0_3 = arith.constant 0 : index
    %c0_4 = arith.constant 0 : index
    %3 = vector.load %arg4[%c0_3, %c0_4] : memref<1x128xf32, #tpu.memory_space<vmem>>, vector<1x128xf32>
    %4 = vector.broadcast %3 : vector<1x128xf32> to vector<256x128xf32>
    %5 = arith.addf %2, %4 : vector<256x128xf32>
    %cst_5 = arith.constant 0.000000e+00 : f32
    %6 = vector.broadcast %cst_5 : f32 to vector<256x128xf32>
    %7 = arith.subf %6, %5 : vector<256x128xf32>
    %8 = math.exp %7 : vector<256x128xf32>
    %cst_6 = arith.constant 1.000000e+00 : f32
    %9 = vector.broadcast %cst_6 : f32 to vector<256x128xf32>
    %10 = arith.addf %9, %8 : vector<256x128xf32>
    %cst_7 = arith.constant 1.000000e+00 : f32
    %11 = vector.broadcast %cst_7 : f32 to vector<256x128xf32>
    %12 = arith.divf %11, %10 : vector<256x128xf32>
    %c0_8 = arith.constant 0 : index
    %c0_9 = arith.constant 0 : index
    %13 = vector.load %arg5[%c0_8, %c0_9] : memref<256x128xf32, #tpu.memory_space<vmem>>, vector<256x128xf32>
    tpu.vector_store %arg5[%c0_8, %c0_9], %12 {strides = array<i32>} : memref<256x128xf32, #tpu.memory_space<vmem>>, vector<256x128xf32>,
    return
  }
  func.func @transform_0(%arg0: i32, %arg1: i32) -> (i32, i32) {
    %c0_i32 = arith.constant 0 : i32
    %c0_i32_0 = arith.constant 0 : i32
    return %arg0, %c0_i32 : i32, i32
  }
  func.func @transform_1(%arg0: i32, %arg1: i32) -> (i32, i32) {
    %c0_i32 = arith.constant 0 : i32
    %c0_i32_0 = arith.constant 0 : i32
    return %c0_i32, %arg1 : i32, i32
  }
  func.func @transform_2(%arg0: i32, %arg1: i32) -> (i32, i32) {
    %c0_i32 = arith.constant 0 : i32
    %c0_i32_0 = arith.constant 0 : i32
    return %c0_i32, %arg1 : i32, i32
  }
  func.func @transform_3(%arg0: i32, %arg1: i32) -> (i32, i32) {
    %c0_i32 = arith.constant 0 : i32
    return %arg0, %arg1 : i32, i32
  }
}

</mosaic_0001>

<llo_original>
// kernel: _unet_forward.7
$region0: #{_unet_forward.7}
  #allocation0 [shape = 'u32[]', space=smem, size = 0x4, offset = 0x4, fixed_abs, tag = 'smem constant byte address 0x4 - core index']
  #allocation1 [shape = 'u32[72,128]{1,0:T(1,128)}', space=vmem, size = 0x9000, scoped, tag = 'internal scratch']
  %s0 = inlined_call_operand.vmem [shape: bf16[64,128], index: 0, kind: input, shape index: {}]
  %s1 = inlined_call_operand.vmem [shape: bf16[128,128], index: 1, kind: input, shape index: {}]
  %s2 = inlined_call_operand.vmem [shape: f32[1,128], index: 2, kind: input, shape index: {}]
  %s3 = inlined_call_operand.vmem [shape: f32[64,128], index: 3, kind: output, shape index: {}]
  %s4 = sld [smem:[#allocation0]]
  $region22: #{_unet_forward.7} parent=0
    _
  %s6 = ssub.s32 1, %s4
  %s7 = scalar_select 0, %s6, %s4
  // Predicated region
  $region2: #{_unet_forward.7} parent=0 // pred_check
    _
  $region3: #{_unet_forward.7} parent=0 // pred_check_branch
    %9 = sbr.rel (0) target = $region5
  $region4: #{_unet_forward.7} parent=0 // pred_region
    _
  $region5: #{_unet_forward.7} parent=0 // pred_fallthru
    _
  // Predicated region
  $region6: #{_unet_forward.7} parent=0 // pred_check
    _
  $region7: #{_unet_forward.7} parent=0 // pred_check_branch
    %11 = sbr.rel (0) target = $region9
  $region8: #{_unet_forward.7} parent=0 // pred_region
    _
  $region9: #{_unet_forward.7} parent=0 // pred_fallthru
    _
  // Predicated region
  $region10: #{_unet_forward.7} parent=0 // pred_check
    _
  $region11: #{_unet_forward.7} parent=0 // pred_check_branch
    %13 = sbr.rel (0) target = $region13
  $region12: #{_unet_forward.7} parent=0 // pred_region
    _
  $region13: #{_unet_forward.7} parent=0 // pred_fallthru
    _
  %v14 = vld [vmem:[%s0] sm:$0xf]
  %v15 = vld [vmem:[%s0 + $0x4] sm:$0xf]
  %v16 = vld [vmem:[%s0 + $0x8] sm:$0xf]
  %v17 = vld [vmem:[%s0 + $0xc] sm:$0xf]
  %v18 = vld [vmem:[%s0 + $0x10] sm:$0xf]
  %v19 = vld [vmem:[%s0 + $0x14] sm:$0xf]
  %v20 = vld [vmem:[%s0 + $0x18] sm:$0xf]
  %v21 = vld [vmem:[%s0 + $0x1c] sm:$0xf]
  %v22 = vld [vmem:[%s1] sm:$0xf]
  %v23 = vld [vmem:[%s1 + $0x4] sm:$0xf]
  %v24 = vld [vmem:[%s1 + $0x8] sm:$0xf]
  %v25 = vld [vmem:[%s1 + $0xc] sm:$0xf]
  %v26 = vld [vmem:[%s1 + $0x10] sm:$0xf]
  %v27 = vld [vmem:[%s1 + $0x14] sm:$0xf]
  %v28 = vld [vmem:[%s1 + $0x18] sm:$0xf]
  %v29 = vld [vmem:[%s1 + $0x1c] sm:$0xf]
  %v30 = vld [vmem:[%s1 + $0x20] sm:$0xf]
  %v31 = vld [vmem:[%s1 + $0x24] sm:$0xf]
  %v32 = vld [vmem:[%s1 + $0x28] sm:$0xf]
  %v33 = vld [vmem:[%s1 + $0x2c] sm:$0xf]
  %v34 = vld [vmem:[%s1 + $0x30] sm:$0xf]
  %v35 = vld [vmem:[%s1 + $0x34] sm:$0xf]
  %v36 = vld [vmem:[%s1 + $0x38] sm:$0xf]
  %v37 = vld [vmem:[%s1 + $0x3c] sm:$0xf]
  %v38 = vld [vmem:[%s2] sm:$0x1]
  %v40 = vperm.slane %v38, 0
  %v50 = vunpack.c.l.b16 %v14
  %v51 = vunpack.c.l.b16 %v15
  %v52 = vunpack.c.l.b16 %v16
  %v53 = vunpack.c.l.b16 %v17
  %v54 = vunpack.c.l.b16 %v18
  %v55 = vunpack.c.l.b16 %v19
  %v56 = vunpack.c.l.b16 %v20
  %v57 = vunpack.c.l.b16 %v21
  %v58 = vpack.c.b16 %v51, %v50
  %v59 = vpack.c.b16 %v53, %v52
  %v60 = vpack.c.b16 %v55, %v54
  %v61 = vpack.c.b16 %v57, %v56
  %v82 = vunpack.c.l.b16 %v22
  %v83 = vunpack.c.l.b16 %v23
  %v84 = vunpack.c.l.b16 %v24
  %v85 = vunpack.c.l.b16 %v25
  %v86 = vunpack.c.l.b16 %v26
  %v87 = vunpack.c.l.b16 %v27
  %v88 = vunpack.c.l.b16 %v28
  %v89 = vunpack.c.l.b16 %v29
  %v90 = vunpack.c.l.b16 %v30
  %v91 = vunpack.c.l.b16 %v31
  %v92 = vunpack.c.l.b16 %v32
  %v93 = vunpack.c.l.b16 %v33
  %v94 = vunpack.c.l.b16 %v34
  %v95 = vunpack.c.l.b16 %v35
  %v96 = vunpack.c.l.b16 %v36
  %v97 = vunpack.c.l.b16 %v37
  %v98 = vpack.c.b16 %v83, %v82
  %v99 = vpack.c.b16 %v85, %v84
  %v100 = vpack.c.b16 %v87, %v86
  %v101 = vpack.c.b16 %v89, %v88
  %v102 = vpack.c.b16 %v91, %v90
  %v103 = vpack.c.b16 %v93, %v92
  %v104 = vpack.c.b16 %v95, %v94
  %v105 = vpack.c.b16 %v97, %v96
  %114 = vmatpush.bf16.msra.mxu0 %v105
  %115 = vmatpush.bf16.msra.mxu0 %v104
  %116 = vmatpush.bf16.msra.mxu0 %v103
  %117 = vmatpush.bf16.msra.mxu0 %v102
  %118 = vmatpush.bf16.msra.mxu0 %v101
  %119 = vmatpush.bf16.msra.mxu0 %v100
  %120 = vmatpush.bf16.msra.mxu0 %v99
  %121 = vmatpush.bf16.msra.mxu0 %v98
  %122 = vmatmul.bf16.gmra.mxu0 %v58
  %v123 = vpop.f32.mrf.mxu0
  %v124 = vadd.f32 %v40, %v123
  %v125 = vpop.f32.mrf.mxu0
  %v126 = vadd.f32 %v40, %v125
  %127 = vmatmul.bf16.gmra.mxu0 %v59
  %v128 = vpop.f32.mrf.mxu0
  %v129 = vadd.f32 %v40, %v128
  %v130 = vpop.f32.mrf.mxu0
  %v131 = vadd.f32 %v40, %v130
  %132 = vmatmul.bf16.gmra.mxu0 %v60
  %v133 = vpop.f32.mrf.mxu0
  %v134 = vadd.f32 %v40, %v133
  %v135 = vpop.f32.mrf.mxu0
  %v136 = vadd.f32 %v40, %v135
  %137 = vmatmul.bf16.gmra.mxu0 %v61
  %v138 = vpop.f32.mrf.mxu0
  %v139 = vadd.f32 %v40, %v138
  %v140 = vpop.f32.mrf.mxu0
  %v141 = vadd.f32 %v40, %v140
  %142 = vdwg.mxu0
  %v143 = vmax.f32 %v124, 0.0
  %v144 = vmax.f32 %v126, 0.0
  %v145 = vmax.f32 %v129, 0.0
  %v146 = vmax.f32 %v131, 0.0
  %v147 = vmax.f32 %v134, 0.0
  %v148 = vmax.f32 %v136, 0.0
  %v149 = vmax.f32 %v139, 0.0
  %v150 = vmax.f32 %v141, 0.0
  %151 = vst [vmem:[%s3] sm:$0xff] %v143
  %152 = vst [vmem:[%s3 + $0x8] sm:$0xff] %v144
  %153 = vst [vmem:[%s3 + $0x10] sm:$0xff] %v145
  %154 = vst [vmem:[%s3 + $0x18] sm:$0xff] %v146
  %155 = vst [vmem:[%s3 + $0x20] sm:$0xff] %v147
  %156 = vst [vmem:[%s3 + $0x28] sm:$0xff] %v148
  %157 = vst [vmem:[%s3 + $0x30] sm:$0xff] %v149
  %158 = vst [vmem:[%s3 + $0x38] sm:$0xff] %v150
  // Predicated region
  $region14: #{_unet_forward.7} parent=0 // pred_check
    _
  $region15: #{_unet_forward.7} parent=0 // pred_check_branch
    %160 = sbr.rel (0) target = $region17
  $region16: #{_unet_forward.7} parent=0 // pred_region
    _
  $region17: #{_unet_forward.7} parent=0 // pred_fallthru
    _
  // Predicated region
  $region18: #{_unet_forward.7} parent=0 // pred_check
    _
  $region19: #{_unet_forward.7} parent=0 // pred_check_branch
    %162 = sbr.rel (0) target = $region21
  $region20: #{_unet_forward.7} parent=0 // pred_region
    _
  $region21: #{_unet_forward.7} parent=0 // pred_fallthru
    _

// kernel: _unet_forward.8
$region0: #{_unet_forward.8}
  #allocation0 [shape = 'u32[]', space=smem, size = 0x4, offset = 0x4, fixed_abs, tag = 'smem constant byte address 0x4 - core index']
  #allocation1 [shape = 'u32[72,128]{1,0:T(1,128)}', space=vmem, size = 0x9000, scoped, tag = 'internal scratch']
  %s0 = inlined_call_operand.vmem [shape: bf16[16,256], index: 0, kind: input, shape index: {}]
  %s1 = inlined_call_operand.vmem [shape: bf16[256,128], index: 1, kind: input, shape index: {}]
  %s2 = inlined_call_operand.vmem [shape: f32[1,128], index: 2, kind: input, shape index: {}]
  %s3 = inlined_call_operand.vmem [shape: f32[16,128], index: 3, kind: output, shape index: {}]
  %s4 = sld [smem:[#allocation0]]
  $region22: #{_unet_forward.8} parent=0
    _
  %s6 = ssub.s32 1, %s4
  %s7 = scalar_select 0, %s6, %s4
  // Predicated region
  $region2: #{_unet_forward.8} parent=0 // pred_check
    _
  $region3: #{_unet_forward.8} parent=0 // pred_check_branch
    %9 = sbr.rel (0) target = $region5
  $region4: #{_unet_forward.8} parent=0 // pred_region
    _
  $region5: #{_unet_forward.8} parent=0 // pred_fallthru
    _
  // Predicated region
  $region6: #{_unet_forward.8} parent=0 // pred_check
    _
  $region7: #{_unet_forward.8} parent=0 // pred_check_branch
    %11 = sbr.rel (0) target = $region9
  $region8: #{_unet_forward.8} parent=0 // pred_region
    _
  $region9: #{_unet_forward.8} parent=0 // pred_fallthru
    _
  // Predicated region
  $region10: #{_unet_forward.8} parent=0 // pred_check
    _
  $region11: #{_unet_forward.8} parent=0 // pred_check_branch
    %13 = sbr.rel (0) target = $region13
  $region12: #{_unet_forward.8} parent=0 // pred_region
    _
  $region13: #{_unet_forward.8} parent=0 // pred_fallthru
    _
  %v14 = vld [vmem:[%s0] sm:$0xff]
  %v15 = vld [vmem:[%s0 + $0x8] sm:$0xff]
  %v16 = vld [vmem:[%s1] sm:$0xf]
  %v17 = vld [vmem:[%s1 + $0x4] sm:$0xf]
  %v18 = vld [vmem:[%s1 + $0x8] sm:$0xf]
  %v19 = vld [vmem:[%s1 + $0xc] sm:$0xf]
  %v20 = vld [vmem:[%s1 + $0x10] sm:$0xf]
  %v21 = vld [vmem:[%s1 + $0x14] sm:$0xf]
  %v22 = vld [vmem:[%s1 + $0x18] sm:$0xf]
  %v23 = vld [vmem:[%s1 + $0x1c] sm:$0xf]
  %v24 = vld [vmem:[%s1 + $0x20] sm:$0xf]
  %v25 = vld [vmem:[%s1 + $0x24] sm:$0xf]
  %v26 = vld [vmem:[%s1 + $0x28] sm:$0xf]
  %v27 = vld [vmem:[%s1 + $0x2c] sm:$0xf]
  %v28 = vld [vmem:[%s1 + $0x30] sm:$0xf]
  %v29 = vld [vmem:[%s1 + $0x34] sm:$0xf]
  %v30 = vld [vmem:[%s1 + $0x38] sm:$0xf]
  %v31 = vld [vmem:[%s1 + $0x3c] sm:$0xf]
  %v32 = vld [vmem:[%s1 + $0x40] sm:$0xf]
  %v33 = vld [vmem:[%s1 + $0x44] sm:$0xf]
  %v34 = vld [vmem:[%s1 + $0x48] sm:$0xf]
  %v35 = vld [vmem:[%s1 + $0x4c] sm:$0xf]
  %v36 = vld [vmem:[%s1 + $0x50] sm:$0xf]
  %v37 = vld [vmem:[%s1 + $0x54] sm:$0xf]
  %v38 = vld [vmem:[%s1 + $0x58] sm:$0xf]
  %v39 = vld [vmem:[%s1 + $0x5c] sm:$0xf]
  %v40 = vld [vmem:[%s1 + $0x60] sm:$0xf]
  %v41 = vld [vmem:[%s1 + $0x64] sm:$0xf]
  %v42 = vld [vmem:[%s1 + $0x68] sm:$0xf]
  %v43 = vld [vmem:[%s1 + $0x6c] sm:$0xf]
  %v44 = vld [vmem:[%s1 + $0x70] sm:$0xf]
  %v45 = vld [vmem:[%s1 + $0x74] sm:$0xf]
  %v46 = vld [vmem:[%s1 + $0x78] sm:$0xf]
  %v47 = vld [vmem:[%s1 + $0x7c] sm:$0xf]
  %v48 = vld [vmem:[%s2] sm:$0x1]
  %v50 = vperm.slane %v48, 0
  %v54 = vunpack.c.l.b16 %v14
  %v55 = vunpack.c.h.b16 %v14
  %v56 = vunpack.c.l.b16 %v15
  %v57 = vunpack.c.h.b16 %v15
  %v58 = vpack.c.b16 %v56, %v54
  %v59 = vpack.c.b16 %v57, %v55
  %v94 = vunpack.c.l.b16 %v16
  %v95 = vunpack.c.l.b16 %v17
  %v96 = vunpack.c.l.b16 %v18
  %v97 = vunpack.c.l.b16 %v19
  %v98 = vunpack.c.l.b16 %v20
  %v99 = vunpack.c.l.b16 %v21
  %v100 = vunpack.c.l.b16 %v22
  %v101 = vunpack.c.l.b16 %v23
  %v102 = vunpack.c.l.b16 %v24
  %v103 = vunpack.c.l.b16 %v25
  %v104 = vunpack.c.l.b16 %v26
  %v105 = vunpack.c.l.b16 %v27
  %v106 = vunpack.c.l.b16 %v28
  %v107 = vunpack.c.l.b16 %v29
  %v108 = vunpack.c.l.b16 %v30
  %v109 = vunpack.c.l.b16 %v31
  %v110 = vunpack.c.l.b16 %v32
  %v111 = vunpack.c.l.b16 %v33
  %v112 = vunpack.c.l.b16 %v34
  %v113 = vunpack.c.l.b16 %v35
  %v114 = vunpack.c.l.b16 %v36
  %v115 = vunpack.c.l.b16 %v37
  %v116 = vunpack.c.l.b16 %v38
  %v117 = vunpack.c.l.b16 %v39
  %v118 = vunpack.c.l.b16 %v40
  %v119 = vunpack.c.l.b16 %v41
  %v120 = vunpack.c.l.b16 %v42
  %v121 = vunpack.c.l.b16 %v43
  %v122 = vunpack.c.l.b16 %v44
  %v123 = vunpack.c.l.b16 %v45
  %v124 = vunpack.c.l.b16 %v46
  %v125 = vunpack.c.l.b16 %v47
  %v126 = vpack.c.b16 %v95, %v94
  %v127 = vpack.c.b16 %v97, %v96
  %v128 = vpack.c.b16 %v99, %v98
  %v129 = vpack.c.b16 %v101, %v100
  %v130 = vpack.c.b16 %v103, %v102
  %v131 = vpack.c.b16 %v105, %v104
  %v132 = vpack.c.b16 %v107, %v106
  %v133 = vpack.c.b16 %v109, %v108
  %v134 = vpack.c.b16 %v111, %v110
  %v135 = vpack.c.b16 %v113, %v112
  %v136 = vpack.c.b16 %v115, %v114
  %v137 = vpack.c.b16 %v117, %v116
  %v138 = vpack.c.b16 %v119, %v118
  %v139 = vpack.c.b16 %v121, %v120
  %v140 = vpack.c.b16 %v123, %v122
  %v141 = vpack.c.b16 %v125, %v124
  %158 = vmatpush.bf16.msra.mxu0 %v133
  %159 = vmatpush.bf16.msra.mxu0 %v132
  %160 = vmatpush.bf16.msra.mxu0 %v131
  %161 = vmatpush.bf16.msra.mxu0 %v130
  %162 = vmatpush.bf16.msra.mxu0 %v129
  %163 = vmatpush.bf16.msra.mxu0 %v128
  %164 = vmatpush.bf16.msra.mxu0 %v127
  %165 = vmatpush.bf16.msra.mxu0 %v126
  %166 = vmatmul.bf16.gmra.mxu0 %v58
  %v167 = vpop.f32.mrf.mxu0
  %v168 = vadd.f32 %v50, %v167
  %v169 = vpop.f32.mrf.mxu0
  %v170 = vadd.f32 %v50, %v169
  %171 = vdwg.mxu0
  %172 = vmatpush.bf16.msra.mxu0 %v141
  %173 = vmatpush.bf16.msra.mxu0 %v140
  %174 = vmatpush.bf16.msra.mxu0 %v139
  %175 = vmatpush.bf16.msra.mxu0 %v138
  %176 = vmatpush.bf16.msra.mxu0 %v137
  %177 = vmatpush.bf16.msra.mxu0 %v136
  %178 = vmatpush.bf16.msra.mxu0 %v135
  %179 = vmatpush.bf16.msra.mxu0 %v134
  %180 = vmatmul.bf16.gmra.mxu0 %v59
  %v181 = vpop.f32.mrf.mxu0
  %v182 = vadd.f32 %v168, %v181
  %v183 = vpop.f32.mrf.mxu0
  %v184 = vadd.f32 %v170, %v183
  %185 = vdwg.mxu0
  %v186 = vmax.f32 %v182, 0.0
  %v187 = vmax.f32 %v184, 0.0
  %188 = vst [vmem:[%s3] sm:$0xff] %v186
  %189 = vst [vmem:[%s3 + $0x8] sm:$0xff] %v187
  // Predicated region
  $region14: #{_unet_forward.8} parent=0 // pred_check
    _
  $region15: #{_unet_forward.8} parent=0 // pred_check_branch
    %191 = sbr.rel (0) target = $region17
  $region16: #{_unet_forward.8} parent=0 // pred_region
    _
  $region17: #{_unet_forward.8} parent=0 // pred_fallthru
    _
  // Predicated region
  $region18: #{_unet_forward.8} parent=0 // pred_check
    _
  $region19: #{_unet_forward.8} parent=0 // pred_check_branch
    %193 = sbr.rel (0) target = $region21
  $region20: #{_unet_forward.8} parent=0 // pred_region
    _
  $region21: #{_unet_forward.8} parent=0 // pred_fallthru
    _

// kernel: _unet_forward.9
$region0: #{_unet_forward.9}
  #allocation0 [shape = 'u32[]', space=smem, size = 0x4, offset = 0x4, fixed_abs, tag = 'smem constant byte address 0x4 - core index']
  #allocation1 [shape = 'u32[72,128]{1,0:T(1,128)}', space=vmem, size = 0x9000, scoped, tag = 'internal scratch']
  %s0 = inlined_call_operand.vmem [shape: bf16[16,384], index: 0, kind: input, shape index: {}]
  %s1 = inlined_call_operand.vmem [shape: bf16[384,128], index: 1, kind: input, shape index: {}]
  %s2 = inlined_call_operand.vmem [shape: f32[1,128], index: 2, kind: input, shape index: {}]
  %s3 = inlined_call_operand.vmem [shape: f32[16,128], index: 3, kind: output, shape index: {}]
  %s4 = sld [smem:[#allocation0]]
  $region22: #{_unet_forward.9} parent=0
    _
  %s6 = ssub.s32 1, %s4
  %s7 = scalar_select 0, %s6, %s4
  // Predicated region
  $region2: #{_unet_forward.9} parent=0 // pred_check
    _
  $region3: #{_unet_forward.9} parent=0 // pred_check_branch
    %9 = sbr.rel (0) target = $region5
  $region4: #{_unet_forward.9} parent=0 // pred_region
    _
  $region5: #{_unet_forward.9} parent=0 // pred_fallthru
    _
  // Predicated region
  $region6: #{_unet_forward.9} parent=0 // pred_check
    _
  $region7: #{_unet_forward.9} parent=0 // pred_check_branch
    %11 = sbr.rel (0) target = $region9
  $region8: #{_unet_forward.9} parent=0 // pred_region
    _
  $region9: #{_unet_forward.9} parent=0 // pred_fallthru
    _
  // Predicated region
  $region10: #{_unet_forward.9} parent=0 // pred_check
    _
  $region11: #{_unet_forward.9} parent=0 // pred_check_branch
    %13 = sbr.rel (0) target = $region13
  $region12: #{_unet_forward.9} parent=0 // pred_region
    _
  $region13: #{_unet_forward.9} parent=0 // pred_fallthru
    _
  %v14 = vld [vmem:[%s0] sm:$0xff]
  %v15 = vld [vmem:[%s0 + $0x8] sm:$0xf]
  %v16 = vld [vmem:[%s0 + $0xc] sm:$0xff]
  %v17 = vld [vmem:[%s0 + $0x14] sm:$0xf]
  %v18 = vld [vmem:[%s1] sm:$0xf]
  %v19 = vld [vmem:[%s1 + $0x4] sm:$0xf]
  %v20 = vld [vmem:[%s1 + $0x8] sm:$0xf]
  %v21 = vld [vmem:[%s1 + $0xc] sm:$0xf]
  %v22 = vld [vmem:[%s1 + $0x10] sm:$0xf]
  %v23 = vld [vmem:[%s1 + $0x14] sm:$0xf]
  %v24 = vld [vmem:[%s1 + $0x18] sm:$0xf]
  %v25 = vld [vmem:[%s1 + $0x1c] sm:$0xf]
  %v26 = vld [vmem:[%s1 + $0x20] sm:$0xf]
  %v27 = vld [vmem:[%s1 + $0x24] sm:$0xf]
  %v28 = vld [vmem:[%s1 + $0x28] sm:$0xf]
  %v29 = vld [vmem:[%s1 + $0x2c] sm:$0xf]
  %v30 = vld [vmem:[%s1 + $0x30] sm:$0xf]
  %v31 = vld [vmem:[%s1 + $0x34] sm:$0xf]
  %v32 = vld [vmem:[%s1 + $0x38] sm:$0xf]
  %v33 = vld [vmem:[%s1 + $0x3c] sm:$0xf]
  %v34 = vld [vmem:[%s1 + $0x40] sm:$0xf]
  %v35 = vld [vmem:[%s1 + $0x44] sm:$0xf]
  %v36 = vld [vmem:[%s1 + $0x48] sm:$0xf]
  %v37 = vld [vmem:[%s1 + $0x4c] sm:$0xf]
  %v38 = vld [vmem:[%s1 + $0x50] sm:$0xf]
  %v39 = vld [vmem:[%s1 + $0x54] sm:$0xf]
  %v40 = vld [vmem:[%s1 + $0x58] sm:$0xf]
  %v41 = vld [vmem:[%s1 + $0x5c] sm:$0xf]
  %v42 = vld [vmem:[%s1 + $0x60] sm:$0xf]
  %v43 = vld [vmem:[%s1 + $0x64] sm:$0xf]
  %v44 = vld [vmem:[%s1 + $0x68] sm:$0xf]
  %v45 = vld [vmem:[%s1 + $0x6c] sm:$0xf]
  %v46 = vld [vmem:[%s1 + $0x70] sm:$0xf]
  %v47 = vld [vmem:[%s1 + $0x74] sm:$0xf]
  %v48 = vld [vmem:[%s1 + $0x78] sm:$0xf]
  %v49 = vld [vmem:[%s1 + $0x7c] sm:$0xf]
  %v50 = vld [vmem:[%s1 + $0x80] sm:$0xf]
  %v51 = vld [vmem:[%s1 + $0x84] sm:$0xf]
  %v52 = vld [vmem:[%s1 + $0x88] sm:$0xf]
  %v53 = vld [vmem:[%s1 + $0x8c] sm:$0xf]
  %v54 = vld [vmem:[%s1 + $0x90] sm:$0xf]
  %v55 = vld [vmem:[%s1 + $0x94] sm:$0xf]
  %v56 = vld [vmem:[%s1 + $0x98] sm:$0xf]
  %v57 = vld [vmem:[%s1 + $0x9c] sm:$0xf]
  %v58 = vld [vmem:[%s1 + $0xa0] sm:$0xf]
  %v59 = vld [vmem:[%s1 + $0xa4] sm:$0xf]
  %v60 = vld [vmem:[%s1 + $0xa8] sm:$0xf]
  %v61 = vld [vmem:[%s1 + $0xac] sm:$0xf]
  %v62 = vld [vmem:[%s1 + $0xb0] sm:$0xf]
  %v63 = vld [vmem:[%s1 + $0xb4] sm:$0xf]
  %v64 = vld [vmem:[%s1 + $0xb8] sm:$0xf]
  %v65 = vld [vmem:[%s1 + $0xbc] sm:$0xf]
  %v66 = vld [vmem:[%s2] sm:$0x1]
  %v68 = vperm.slane %v66, 0
  %v74 = vunpack.c.l.b16 %v14
  %v75 = vunpack.c.h.b16 %v14
  %v76 = vunpack.c.l.b16 %v15
  %v77 = vunpack.c.l.b16 %v16
  %v78 = vunpack.c.h.b16 %v16
  %v79 = vunpack.c.l.b16 %v17
  %v80 = vpack.c.b16 %v77, %v74
  %v81 = vpack.c.b16 %v78, %v75
  %v82 = vpack.c.b16 %v79, %v76
  %v134 = vunpack.c.l.b16 %v18
  %v135 = vunpack.c.l.b16 %v19
  %v136 = vunpack.c.l.b16 %v20
  %v137 = vunpack.c.l.b16 %v21
  %v138 = vunpack.c.l.b16 %v22
  %v139 = vunpack.c.l.b16 %v23
  %v140 = vunpack.c.l.b16 %v24
  %v141 = vunpack.c.l.b16 %v25
  %v142 = vunpack.c.l.b16 %v26
  %v143 = vunpack.c.l.b16 %v27
  %v144 = vunpack.c.l.b16 %v28
  %v145 = vunpack.c.l.b16 %v29
  %v146 = vunpack.c.l.b16 %v30
  %v147 = vunpack.c.l.b16 %v31
  %v148 = vunpack.c.l.b16 %v32
  %v149 = vunpack.c.l.b16 %v33
  %v150 = vunpack.c.l.b16 %v34
  %v151 = vunpack.c.l.b16 %v35
  %v152 = vunpack.c.l.b16 %v36
  %v153 = vunpack.c.l.b16 %v37
  %v154 = vunpack.c.l.b16 %v38
  %v155 = vunpack.c.l.b16 %v39
  %v156 = vunpack.c.l.b16 %v40
  %v157 = vunpack.c.l.b16 %v41
  %v158 = vunpack.c.l.b16 %v42
  %v159 = vunpack.c.l.b16 %v43
  %v160 = vunpack.c.l.b16 %v44
  %v161 = vunpack.c.l.b16 %v45
  %v162 = vunpack.c.l.b16 %v46
  %v163 = vunpack.c.l.b16 %v47
  %v164 = vunpack.c.l.b16 %v48
  %v165 = vunpack.c.l.b16 %v49
  %v166 = vunpack.c.l.b16 %v50
  %v167 = vunpack.c.l.b16 %v51
  %v168 = vunpack.c.l.b16 %v52
  %v169 = vunpack.c.l.b16 %v53
  %v170 = vunpack.c.l.b16 %v54
  %v171 = vunpack.c.l.b16 %v55
  %v172 = vunpack.c.l.b16 %v56
  %v173 = vunpack.c.l.b16 %v57
  %v174 = vunpack.c.l.b16 %v58
  %v175 = vunpack.c.l.b16 %v59
  %v176 = vunpack.c.l.b16 %v60
  %v177 = vunpack.c.l.b16 %v61
  %v178 = vunpack.c.l.b16 %v62
  %v179 = vunpack.c.l.b16 %v63
  %v180 = vunpack.c.l.b16 %v64
  %v181 = vunpack.c.l.b16 %v65
  %v182 = vpack.c.b16 %v135, %v134
  %v183 = vpack.c.b16 %v137, %v136
  %v184 = vpack.c.b16 %v139, %v138
  %v185 = vpack.c.b16 %v141, %v140
  %v186 = vpack.c.b16 %v143, %v142
  %v187 = vpack.c.b16 %v145, %v144
  %v188 = vpack.c.b16 %v147, %v146
  %v189 = vpack.c.b16 %v149, %v148
  %v190 = vpack.c.b16 %v151, %v150
  %v191 = vpack.c.b16 %v153, %v152
  %v192 = vpack.c.b16 %v155, %v154
  %v193 = vpack.c.b16 %v157, %v156
  %v194 = vpack.c.b16 %v159, %v158
  %v195 = vpack.c.b16 %v161, %v160
  %v196 = vpack.c.b16 %v163, %v162
  %v197 = vpack.c.b16 %v165, %v164
  %v198 = vpack.c.b16 %v167, %v166
  %v199 = vpack.c.b16 %v169, %v168
  %v200 = vpack.c.b16 %v171, %v170
  %v201 = vpack.c.b16 %v173, %v172
  %v202 = vpack.c.b16 %v175, %v174
  %v203 = vpack.c.b16 %v177, %v176
  %v204 = vpack.c.b16 %v179, %v178
  %v205 = vpack.c.b16 %v181, %v180
  %230 = vmatpush.bf16.msra.mxu0 %v189
  %231 = vmatpush.bf16.msra.mxu0 %v188
  %232 = vmatpush.bf16.msra.mxu0 %v187
  %233 = vmatpush.bf16.msra.mxu0 %v186
  %234 = vmatpush.bf16.msra.mxu0 %v185
  %235 = vmatpush.bf16.msra.mxu0 %v184
  %236 = vmatpush.bf16.msra.mxu0 %v183
  %237 = vmatpush.bf16.msra.mxu0 %v182
  %238 = vmatmul.bf16.gmra.mxu0 %v80
  %v239 = vpop.f32.mrf.mxu0
  %v240 = vadd.f32 %v68, %v239
  %v241 = vpop.f32.mrf.mxu0
  %v242 = vadd.f32 %v68, %v241
  %243 = vdwg.mxu0
  %244 = vmatpush.bf16.msra.mxu0 %v197
  %245 = vmatpush.bf16.msra.mxu0 %v196
  %246 = vmatpush.bf16.msra.mxu0 %v195
  %247 = vmatpush.bf16.msra.mxu0 %v194
  %248 = vmatpush.bf16.msra.mxu0 %v193
  %249 = vmatpush.bf16.msra.mxu0 %v192
  %250 = vmatpush.bf16.msra.mxu0 %v191
  %251 = vmatpush.bf16.msra.mxu0 %v190
  %252 = vmatmul.bf16.gmra.mxu0 %v81
  %v253 = vpop.f32.mrf.mxu0
  %v254 = vadd.f32 %v240, %v253
  %v255 = vpop.f32.mrf.mxu0
  %v256 = vadd.f32 %v242, %v255
  %257 = vdwg.mxu0
  %258 = vmatpush.bf16.msra.mxu0 %v205
  %259 = vmatpush.bf16.msra.mxu0 %v204
  %260 = vmatpush.bf16.msra.mxu0 %v203
  %261 = vmatpush.bf16.msra.mxu0 %v202
  %262 = vmatpush.bf16.msra.mxu0 %v201
  %263 = vmatpush.bf16.msra.mxu0 %v200
  %264 = vmatpush.bf16.msra.mxu0 %v199
  %265 = vmatpush.bf16.msra.mxu0 %v198
  %266 = vmatmul.bf16.gmra.mxu0 %v82
  %v267 = vpop.f32.mrf.mxu0
  %v268 = vadd.f32 %v254, %v267
  %v269 = vpop.f32.mrf.mxu0
  %v270 = vadd.f32 %v256, %v269
  %271 = vdwg.mxu0
  %v272 = vmax.f32 %v268, 0.0
  %v273 = vmax.f32 %v270, 0.0
  %274 = vst [vmem:[%s3] sm:$0xff] %v272
  %275 = vst [vmem:[%s3 + $0x8] sm:$0xff] %v273
  // Predicated region
  $region14: #{_unet_forward.9} parent=0 // pred_check
    _
  $region15: #{_unet_forward.9} parent=0 // pred_check_branch
    %277 = sbr.rel (0) target = $region17
  $region16: #{_unet_forward.9} parent=0 // pred_region
    _
  $region17: #{_unet_forward.9} parent=0 // pred_fallthru
    _
  // Predicated region
  $region18: #{_unet_forward.9} parent=0 // pred_check
    _
  $region19: #{_unet_forward.9} parent=0 // pred_check_branch
    %279 = sbr.rel (0) target = $region21
  $region20: #{_unet_forward.9} parent=0 // pred_region
    _
  $region21: #{_unet_forward.9} parent=0 // pred_fallthru
    _

// kernel: _unet_forward.10
$region0: #{_unet_forward.10}
  #allocation0 [shape = 'u32[]', space=smem, size = 0x4, offset = 0x4, fixed_abs, tag = 'smem constant byte address 0x4 - core index']
  #allocation1 [shape = 'u32[72,128]{1,0:T(1,128)}', space=vmem, size = 0x9000, scoped, tag = 'internal scratch']
  %s0 = inlined_call_operand.vmem [shape: bf16[16,768], index: 0, kind: input, shape index: {}]
  %s1 = inlined_call_operand.vmem [shape: bf16[768,128], index: 1, kind: input, shape index: {}]
  %s2 = inlined_call_operand.vmem [shape: f32[1,128], index: 2, kind: input, shape index: {}]
  %s3 = inlined_call_operand.vmem [shape: f32[16,128], index: 3, kind: output, shape index: {}]
  %s4 = sld [smem:[#allocation0]]
  $region22: #{_unet_forward.10} parent=0
    _
  %s6 = ssub.s32 1, %s4
  %s7 = scalar_select 0, %s6, %s4
  // Predicated region
  $region2: #{_unet_forward.10} parent=0 // pred_check
    _
  $region3: #{_unet_forward.10} parent=0 // pred_check_branch
    %9 = sbr.rel (0) target = $region5
  $region4: #{_unet_forward.10} parent=0 // pred_region
    _
  $region5: #{_unet_forward.10} parent=0 // pred_fallthru
    _
  // Predicated region
  $region6: #{_unet_forward.10} parent=0 // pred_check
    _
  $region7: #{_unet_forward.10} parent=0 // pred_check_branch
    %11 = sbr.rel (0) target = $region9
  $region8: #{_unet_forward.10} parent=0 // pred_region
    _
  $region9: #{_unet_forward.10} parent=0 // pred_fallthru
    _
  // Predicated region
  $region10: #{_unet_forward.10} parent=0 // pred_check
    _
  $region11: #{_unet_forward.10} parent=0 // pred_check_branch
    %13 = sbr.rel (0) target = $region13
  $region12: #{_unet_forward.10} parent=0 // pred_region
    _
  $region13: #{_unet_forward.10} parent=0 // pred_fallthru
    _
  %v14 = vld [vmem:[%s0] sm:$0xff]
  %v15 = vld [vmem:[%s0 + $0x8] sm:$0xff]
  %v16 = vld [vmem:[%s0 + $0x10] sm:$0xff]
  %v17 = vld [vmem:[%s0 + $0x18] sm:$0xff]
  %v18 = vld [vmem:[%s0 + $0x20] sm:$0xff]
  %v19 = vld [vmem:[%s0 + $0x28] sm:$0xff]
  %v20 = vld [vmem:[%s1] sm:$0xf]
  %v21 = vld [vmem:[%s1 + $0x4] sm:$0xf]
  %v22 = vld [vmem:[%s1 + $0x8] sm:$0xf]
  %v23 = vld [vmem:[%s1 + $0xc] sm:$0xf]
  %v24 = vld [vmem:[%s1 + $0x10] sm:$0xf]
  %v25 = vld [vmem:[%s1 + $0x14] sm:$0xf]
  %v26 = vld [vmem:[%s1 + $0x18] sm:$0xf]
  %v27 = vld [vmem:[%s1 + $0x1c] sm:$0xf]
  %v28 = vld [vmem:[%s1 + $0x20] sm:$0xf]
  %v29 = vld [vmem:[%s1 + $0x24] sm:$0xf]
  %v30 = vld [vmem:[%s1 + $0x28] sm:$0xf]
  %v31 = vld [vmem:[%s1 + $0x2c] sm:$0xf]
  %v32 = vld [vmem:[%s1 + $0x30] sm:$0xf]
  %v33 = vld [vmem:[%s1 + $0x34] sm:$0xf]
  %v34 = vld [vmem:[%s1 + $0x38] sm:$0xf]
  %v35 = vld [vmem:[%s1 + $0x3c] sm:$0xf]
  %v36 = vld [vmem:[%s1 + $0x40] sm:$0xf]
  %v37 = vld [vmem:[%s1 + $0x44] sm:$0xf]
  %v38 = vld [vmem:[%s1 + $0x48] sm:$0xf]
  %v39 = vld [vmem:[%s1 + $0x4c] sm:$0xf]
  %v40 = vld [vmem:[%s1 + $0x50] sm:$0xf]
  %v41 = vld [vmem:[%s1 + $0x54] sm:$0xf]
  %v42 = vld [vmem:[%s1 + $0x58] sm:$0xf]
  %v43 = vld [vmem:[%s1 + $0x5c] sm:$0xf]
  %v44 = vld [vmem:[%s1 + $0x60] sm:$0xf]
  %v45 = vld [vmem:[%s1 + $0x64] sm:$0xf]
  %v46 = vld [vmem:[%s1 + $0x68] sm:$0xf]
  %v47 = vld [vmem:[%s1 + $0x6c] sm:$0xf]
  %v48 = vld [vmem:[%s1 + $0x70] sm:$0xf]
  %v49 = vld [vmem:[%s1 + $0x74] sm:$0xf]
  %v50 = vld [vmem:[%s1 + $0x78] sm:$0xf]
  %v51 = vld [vmem:[%s1 + $0x7c] sm:$0xf]
  %v52 = vld [vmem:[%s1 + $0x80] sm:$0xf]
  %v53 = vld [vmem:[%s1 + $0x84] sm:$0xf]
  %v54 = vld [vmem:[%s1 + $0x88] sm:$0xf]
  %v55 = vld [vmem:[%s1 + $0x8c] sm:$0xf]
  %v56 = vld [vmem:[%s1 + $0x90] sm:$0xf]
  %v57 = vld [vmem:[%s1 + $0x94] sm:$0xf]
  %v58 = vld [vmem:[%s1 + $0x98] sm:$0xf]
  %v59 = vld [vmem:[%s1 + $0x9c] sm:$0xf]
  %v60 = vld [vmem:[%s1 + $0xa0] sm:$0xf]
  %v61 = vld [vmem:[%s1 + $0xa4] sm:$0xf]
  %v62 = vld [vmem:[%s1 + $0xa8] sm:$0xf]
  %v63 = vld [vmem:[%s1 + $0xac] sm:$0xf]
  %v64 = vld [vmem:[%s1 + $0xb0] sm:$0xf]
  %v65 = vld [vmem:[%s1 + $0xb4] sm:$0xf]
  %v66 = vld [vmem:[%s1 + $0xb8] sm:$0xf]
  %v67 = vld [vmem:[%s1 + $0xbc] sm:$0xf]
  %v68 = vld [vmem:[%s1 + $0xc0] sm:$0xf]
  %v69 = vld [vmem:[%s1 + $0xc4] sm:$0xf]
  %v70 = vld [vmem:[%s1 + $0xc8] sm:$0xf]
  %v71 = vld [vmem:[%s1 + $0xcc] sm:$0xf]
  %v72 = vld [vmem:[%s1 + $0xd0] sm:$0xf]
  %v73 = vld [vmem:[%s1 + $0xd4] sm:$0xf]
  %v74 = vld [vmem:[%s1 + $0xd8] sm:$0xf]
  %v75 = vld [vmem:[%s1 + $0xdc] sm:$0xf]
  %v76 = vld [vmem:[%s1 + $0xe0] sm:$0xf]
  %v77 = vld [vmem:[%s1 + $0xe4] sm:$0xf]
  %v78 = vld [vmem:[%s1 + $0xe8] sm:$0xf]
  %v79 = vld [vmem:[%s1 + $0xec] sm:$0xf]
  %v80 = vld [vmem:[%s1 + $0xf0] sm:$0xf]
  %v81 = vld [vmem:[%s1 + $0xf4] sm:$0xf]
  %v82 = vld [vmem:[%s1 + $0xf8] sm:$0xf]
  %v83 = vld [vmem:[%s1 + $0xfc] sm:$0xf]
  %v84 = vld [vmem:[%s1 + $0x100] sm:$0xf]
  %v85 = vld [vmem:[%s1 + $0x104] sm:$0xf]
  %v86 = vld [vmem:[%s1 + $0x108] sm:$0xf]
  %v87 = vld [vmem:[%s1 + $0x10c] sm:$0xf]
  %v88 = vld [vmem:[%s1 + $0x110] sm:$0xf]
  %v89 = vld [vmem:[%s1 + $0x114] sm:$0xf]
  %v90 = vld [vmem:[%s1 + $0x118] sm:$0xf]
  %v91 = vld [vmem:[%s1 + $0x11c] sm:$0xf]
  %v92 = vld [vmem:[%s1 + $0x120] sm:$0xf]
  %v93 = vld [vmem:[%s1 + $0x124] sm:$0xf]
  %v94 = vld [vmem:[%s1 + $0x128] sm:$0xf]
  %v95 = vld [vmem:[%s1 + $0x12c] sm:$0xf]
  %v96 = vld [vmem:[%s1 + $0x130] sm:$0xf]
  %v97 = vld [vmem:[%s1 + $0x134] sm:$0xf]
  %v98 = vld [vmem:[%s1 + $0x138] sm:$0xf]
  %v99 = vld [vmem:[%s1 + $0x13c] sm:$0xf]
  %v100 = vld [vmem:[%s1 + $0x140] sm:$0xf]
  %v101 = vld [vmem:[%s1 + $0x144] sm:$0xf]
  %v102 = vld [vmem:[%s1 + $0x148] sm:$0xf]
  %v103 = vld [vmem:[%s1 + $0x14c] sm:$0xf]
  %v104 = vld [vmem:[%s1 + $0x150] sm:$0xf]
  %v105 = vld [vmem:[%s1 + $0x154] sm:$0xf]
  %v106 = vld [vmem:[%s1 + $0x158] sm:$0xf]
  %v107 = vld [vmem:[%s1 + $0x15c] sm:$0xf]
  %v108 = vld [vmem:[%s1 + $0x160] sm:$0xf]
  %v109 = vld [vmem:[%s1 + $0x164] sm:$0xf]
  %v110 = vld [vmem:[%s1 + $0x168] sm:$0xf]
  %v111 = vld [vmem:[%s1 + $0x16c] sm:$0xf]
  %v112 = vld [vmem:[%s1 + $0x170] sm:$0xf]
  %v113 = vld [vmem:[%s1 + $0x174] sm:$0xf]
  %v114 = vld [vmem:[%s1 + $0x178] sm:$0xf]
  %v115 = vld [vmem:[%s1 + $0x17c] sm:$0xf]
  %v116 = vld [vmem:[%s2] sm:$0x1]
  %v118 = vperm.slane %v116, 0
  %v126 = vunpack.c.l.b16 %v14
  %v127 = vunpack.c.h.b16 %v14
  %v128 = vunpack.c.l.b16 %v15
  %v129 = vunpack.c.h.b16 %v15
  %v130 = vunpack.c.l.b16 %v16
  %v131 = vunpack.c.h.b16 %v16
  %v132 = vunpack.c.l.b16 %v17
  %v133 = vunpack.c.h.b16 %v17
  %v134 = vunpack.c.l.b16 %v18
  %v135 = vunpack.c.h.b16 %v18
  %v136 = vunpack.c.l.b16 %v19
  %v137 = vunpack.c.h.b16 %v19
  %v138 = vpack.c.b16 %v132, %v126
  %v139 = vpack.c.b16 %v133, %v127
  %v140 = vpack.c.b16 %v134, %v128
  %v141 = vpack.c.b16 %v135, %v129
  %v142 = vpack.c.b16 %v136, %v130
  %v143 = vpack.c.b16 %v137, %v131
  %v246 = vunpack.c.l.b16 %v20
  %v247 = vunpack.c.l.b16 %v21
  %v248 = vunpack.c.l.b16 %v22
  %v249 = vunpack.c.l.b16 %v23
  %v250 = vunpack.c.l.b16 %v24
  %v251 = vunpack.c.l.b16 %v25
  %v252 = vunpack.c.l.b16 %v26
  %v253 = vunpack.c.l.b16 %v27
  %v254 = vunpack.c.l.b16 %v28
  %v255 = vunpack.c.l.b16 %v29
  %v256 = vunpack.c.l.b16 %v30
  %v257 = vunpack.c.l.b16 %v31
  %v258 = vunpack.c.l.b16 %v32
  %v259 = vunpack.c.l.b16 %v33
  %v260 = vunpack.c.l.b16 %v34
  %v261 = vunpack.c.l.b16 %v35
  %v262 = vunpack.c.l.b16 %v36
  %v263 = vunpack.c.l.b16 %v37
  %v264 = vunpack.c.l.b16 %v38
  %v265 = vunpack.c.l.b16 %v39
  %v266 = vunpack.c.l.b16 %v40
  %v267 = vunpack.c.l.b16 %v41
  %v268 = vunpack.c.l.b16 %v42
  %v269 = vunpack.c.l.b16 %v43
  %v270 = vunpack.c.l.b16 %v44
  %v271 = vunpack.c.l.b16 %v45
  %v272 = vunpack.c.l.b16 %v46
  %v273 = vunpack.c.l.b16 %v47
  %v274 = vunpack.c.l.b16 %v48
  %v275 = vunpack.c.l.b16 %v49
  %v276 = vunpack.c.l.b16 %v50
  %v277 = vunpack.c.l.b16 %v51
  %v278 = vunpack.c.l.b16 %v52
  %v279 = vunpack.c.l.b16 %v53
  %v280 = vunpack.c.l.b16 %v54
  %v281 = vunpack.c.l.b16 %v55
  %v282 = vunpack.c.l.b16 %v56
  %v283 = vunpack.c.l.b16 %v57
  %v284 = vunpack.c.l.b16 %v58
  %v285 = vunpack.c.l.b16 %v59
  %v286 = vunpack.c.l.b16 %v60
  %v287 = vunpack.c.l.b16 %v61
  %v288 = vunpack.c.l.b16 %v62
  %v289 = vunpack.c.l.b16 %v63
  %v290 = vunpack.c.l.b16 %v64
  %v291 = vunpack.c.l.b16 %v65
  %v292 = vunpack.c.l.b16 %v66
  %v293 = vunpack.c.l.b16 %v67
  %v294 = vunpack.c.l.b16 %v68
  %v295 = vunpack.c.l.b16 %v69
  %v296 = vunpack.c.l.b16 %v70
  %v297 = vunpack.c.l.b16 %v71
  %v298 = vunpack.c.l.b16 %v72
  %v299 = vunpack.c.l.b16 %v73
  %v300 = vunpack.c.l.b16 %v74
  %v301 = vunpack.c.l.b16 %v75
  %v302 = vunpack.c.l.b16 %v76
  %v303 = vunpack.c.l.b16 %v77
  %v304 = vunpack.c.l.b16 %v78
  %v305 = vunpack.c.l.b16 %v79
  %v306 = vunpack.c.l.b16 %v80
  %v307 = vunpack.c.l.b16 %v81
  %v308 = vunpack.c.l.b16 %v82
  %v309 = vunpack.c.l.b16 %v83
  %v310 = vunpack.c.l.b16 %v84
  %v311 = vunpack.c.l.b16 %v85
  %v312 = vunpack.c.l.b16 %v86
  %v313 = vunpack.c.l.b16 %v87
  %v314 = vunpack.c.l.b16 %v88
  %v315 = vunpack.c.l.b16 %v89
  %v316 = vunpack.c.l.b16 %v90
  %v317 = vunpack.c.l.b16 %v91
  %v318 = vunpack.c.l.b16 %v92
  %v319 = vunpack.c.l.b16 %v93
  %v320 = vunpack.c.l.b16 %v94
  %v321 = vunpack.c.l.b16 %v95
  %v322 = vunpack.c.l.b16 %v96
  %v323 = vunpack.c.l.b16 %v97
  %v324 = vunpack.c.l.b16 %v98
  %v325 = vunpack.c.l.b16 %v99
  %v326 = vunpack.c.l.b16 %v100
  %v327 = vunpack.c.l.b16 %v101
  %v328 = vunpack.c.l.b16 %v102
  %v329 = vunpack.c.l.b16 %v103
  %v330 = vunpack.c.l.b16 %v104
  %v331 = vunpack.c.l.b16 %v105
  %v332 = vunpack.c.l.b16 %v106
  %v333 = vunpack.c.l.b16 %v107
  %v334 = vunpack.c.l.b16 %v108
  %v335 = vunpack.c.l.b16 %v109
  %v336 = vunpack.c.l.b16 %v110
  %v337 = vunpack.c.l.b16 %v111
  %v338 = vunpack.c.l.b16 %v112
  %v339 = vunpack.c.l.b16 %v113
  %v340 = vunpack.c.l.b16 %v114
  %v341 = vunpack.c.l.b16 %v115
  %v342 = vpack.c.b16 %v247, %v246
  %v343 = vpack.c.b16 %v249, %v248
  %v344 = vpack.c.b16 %v251, %v250
  %v345 = vpack.c.b16 %v253, %v252
  %v346 = vpack.c.b16 %v255, %v254
  %v347 = vpack.c.b16 %v257, %v256
  %v348 = vpack.c.b16 %v259, %v258
  %v349 = vpack.c.b16 %v261, %v260
  %v350 = vpack.c.b16 %v263, %v262
  %v351 = vpack.c.b16 %v265, %v264
  %v352 = vpack.c.b16 %v267, %v266
  %v353 = vpack.c.b16 %v269, %v268
  %v354 = vpack.c.b16 %v271, %v270
  %v355 = vpack.c.b16 %v273, %v272
  %v356 = vpack.c.b16 %v275, %v274
  %v357 = vpack.c.b16 %v277, %v276
  %v358 = vpack.c.b16 %v279, %v278
  %v359 = vpack.c.b16 %v281, %v280
  %v360 = vpack.c.b16 %v283, %v282
  %v361 = vpack.c.b16 %v285, %v284
  %v362 = vpack.c.b16 %v287, %v286
  %v363 = vpack.c.b16 %v289, %v288
  %v364 = vpack.c.b16 %v291, %v290
  %v365 = vpack.c.b16 %v293, %v292
  %v366 = vpack.c.b16 %v295, %v294
  %v367 = vpack.c.b16 %v297, %v296
  %v368 = vpack.c.b16 %v299, %v298
  %v369 = vpack.c.b16 %v301, %v300
  %v370 = vpack.c.b16 %v303, %v302
  %v371 = vpack.c.b16 %v305, %v304
  %v372 = vpack.c.b16 %v307, %v306
  %v373 = vpack.c.b16 %v309, %v308
  %v374 = vpack.c.b16 %v311, %v310
  %v375 = vpack.c.b16 %v313, %v312
  %v376 = vpack.c.b16 %v315, %v314
  %v377 = vpack.c.b16 %v317, %v316
  %v378 = vpack.c.b16 %v319, %v318
  %v379 = vpack.c.b16 %v321, %v320
  %v380 = vpack.c.b16 %v323, %v322
  %v381 = vpack.c.b16 %v325, %v324
  %v382 = vpack.c.b16 %v327, %v326
  %v383 = vpack.c.b16 %v329, %v328
  %v384 = vpack.c.b16 %v331, %v330
  %v385 = vpack.c.b16 %v333, %v332
  %v386 = vpack.c.b16 %v335, %v334
  %v387 = vpack.c.b16 %v337, %v336
  %v388 = vpack.c.b16 %v339, %v338
  %v389 = vpack.c.b16 %v341, %v340
  %438 = vmatpush.bf16.msra.mxu0 %v349
  %439 = vmatpush.bf16.msra.mxu0 %v348
  %440 = vmatpush.bf16.msra.mxu0 %v347
  %441 = vmatpush.bf16.msra.mxu0 %v346
  %442 = vmatpush.bf16.msra.mxu0 %v345
  %443 = vmatpush.bf16.msra.mxu0 %v344
  %444 = vmatpush.bf16.msra.mxu0 %v343
  %445 = vmatpush.bf16.msra.mxu0 %v342
  %446 = vmatmul.bf16.gmra.mxu0 %v138
  %v447 = vpop.f32.mrf.mxu0
  %v448 = vadd.f32 %v118, %v447
  %v449 = vpop.f32.mrf.mxu0
  %v450 = vadd.f32 %v118, %v449
  %451 = vdwg.mxu0
  %452 = vmatpush.bf16.msra.mxu0 %v357
  %453 = vmatpush.bf16.msra.mxu0 %v356
  %454 = vmatpush.bf16.msra.mxu0 %v355
  %455 = vmatpush.bf16.msra.mxu0 %v354
  %456 = vmatpush.bf16.msra.mxu0 %v353
  %457 = vmatpush.bf16.msra.mxu0 %v352
  %458 = vmatpush.bf16.msra.mxu0 %v351
  %459 = vmatpush.bf16.msra.mxu0 %v350
  %460 = vmatmul.bf16.gmra.mxu0 %v139
  %v461 = vpop.f32.mrf.mxu0
  %v462 = vadd.f32 %v448, %v461
  %v463 = vpop.f32.mrf.mxu0
  %v464 = vadd.f32 %v450, %v463
  %465 = vdwg.mxu0
  %466 = vmatpush.bf16.msra.mxu0 %v365
  %467 = vmatpush.bf16.msra.mxu0 %v364
  %468 = vmatpush.bf16.msra.mxu0 %v363
  %469 = vmatpush.bf16.msra.mxu0 %v362
  %470 = vmatpush.bf16.msra.mxu0 %v361
  %471 = vmatpush.bf16.msra.mxu0 %v360
  %472 = vmatpush.bf16.msra.mxu0 %v359
  %473 = vmatpush.bf16.msra.mxu0 %v358
  %474 = vmatmul.bf16.gmra.mxu0 %v140
  %v475 = vpop.f32.mrf.mxu0
  %v476 = vadd.f32 %v462, %v475
  %v477 = vpop.f32.mrf.mxu0
  %v478 = vadd.f32 %v464, %v477
  %479 = vdwg.mxu0
  %480 = vmatpush.bf16.msra.mxu0 %v373
  %481 = vmatpush.bf16.msra.mxu0 %v372
  %482 = vmatpush.bf16.msra.mxu0 %v371
  %483 = vmatpush.bf16.msra.mxu0 %v370
  %484 = vmatpush.bf16.msra.mxu0 %v369
  %485 = vmatpush.bf16.msra.mxu0 %v368
  %486 = vmatpush.bf16.msra.mxu0 %v367
  %487 = vmatpush.bf16.msra.mxu0 %v366
  %488 = vmatmul.bf16.gmra.mxu0 %v141
  %v489 = vpop.f32.mrf.mxu0
  %v490 = vadd.f32 %v476, %v489
  %v491 = vpop.f32.mrf.mxu0
  %v492 = vadd.f32 %v478, %v491
  %493 = vdwg.mxu0
  %494 = vmatpush.bf16.msra.mxu0 %v381
  %495 = vmatpush.bf16.msra.mxu0 %v380
  %496 = vmatpush.bf16.msra.mxu0 %v379
  %497 = vmatpush.bf16.msra.mxu0 %v378
  %498 = vmatpush.bf16.msra.mxu0 %v377
  %499 = vmatpush.bf16.msra.mxu0 %v376
  %500 = vmatpush.bf16.msra.mxu0 %v375
  %501 = vmatpush.bf16.msra.mxu0 %v374
  %502 = vmatmul.bf16.gmra.mxu0 %v142
  %v503 = vpop.f32.mrf.mxu0
  %v504 = vadd.f32 %v490, %v503
  %v505 = vpop.f32.mrf.mxu0
  %v506 = vadd.f32 %v492, %v505
  %507 = vdwg.mxu0
  %508 = vmatpush.bf16.msra.mxu0 %v389
  %509 = vmatpush.bf16.msra.mxu0 %v388
  %510 = vmatpush.bf16.msra.mxu0 %v387
  %511 = vmatpush.bf16.msra.mxu0 %v386
  %512 = vmatpush.bf16.msra.mxu0 %v385
  %513 = vmatpush.bf16.msra.mxu0 %v384
  %514 = vmatpush.bf16.msra.mxu0 %v383
  %515 = vmatpush.bf16.msra.mxu0 %v382
  %516 = vmatmul.bf16.gmra.mxu0 %v143
  %v517 = vpop.f32.mrf.mxu0
  %v518 = vadd.f32 %v504, %v517
  %v519 = vpop.f32.mrf.mxu0
  %v520 = vadd.f32 %v506, %v519
  %521 = vdwg.mxu0
  %v522 = vmax.f32 %v518, 0.0
  %v523 = vmax.f32 %v520, 0.0
  %524 = vst [vmem:[%s3] sm:$0xff] %v522
  %525 = vst [vmem:[%s3 + $0x8] sm:$0xff] %v523
  // Predicated region
  $region14: #{_unet_forward.10} parent=0 // pred_check
    _
  $region15: #{_unet_forward.10} parent=0 // pred_check_branch
    %527 = sbr.rel (0) target = $region17
  $region16: #{_unet_forward.10} parent=0 // pred_region
    _
  $region17: #{_unet_forward.10} parent=0 // pred_fallthru
    _
  // Predicated region
  $region18: #{_unet_forward.10} parent=0 // pred_check
    _
  $region19: #{_unet_forward.10} parent=0 // pred_check_branch
    %529 = sbr.rel (0) target = $region21
  $region20: #{_unet_forward.10} parent=0 // pred_region
    _
  $region21: #{_unet_forward.10} parent=0 // pred_fallthru
    _

// kernel: _unet_forward.11
$region0: #{_unet_forward.11}
  #allocation0 [shape = 'u32[]', space=smem, size = 0x4, offset = 0x4, fixed_abs, tag = 'smem constant byte address 0x4 - core index']
  #allocation1 [shape = 'u32[72,128]{1,0:T(1,128)}', space=vmem, size = 0x9000, scoped, tag = 'internal scratch']
  %s0 = inlined_call_operand.vmem [shape: bf16[64,640], index: 0, kind: input, shape index: {}]
  %s1 = inlined_call_operand.vmem [shape: bf16[640,128], index: 1, kind: input, shape index: {}]
  %s2 = inlined_call_operand.vmem [shape: f32[1,128], index: 2, kind: input, shape index: {}]
  %s3 = inlined_call_operand.vmem [shape: f32[64,128], index: 3, kind: output, shape index: {}]
  %s4 = sld [smem:[#allocation0]]
  $region22: #{_unet_forward.11} parent=0
    _
  %s6 = ssub.s32 1, %s4
  %s7 = scalar_select 0, %s6, %s4
  // Predicated region
  $region2: #{_unet_forward.11} parent=0 // pred_check
    _
  $region3: #{_unet_forward.11} parent=0 // pred_check_branch
    %9 = sbr.rel (0) target = $region5
  $region4: #{_unet_forward.11} parent=0 // pred_region
    _
  $region5: #{_unet_forward.11} parent=0 // pred_fallthru
    _
  // Predicated region
  $region6: #{_unet_forward.11} parent=0 // pred_check
    _
  $region7: #{_unet_forward.11} parent=0 // pred_check_branch
    %11 = sbr.rel (0) target = $region9
  $region8: #{_unet_forward.11} parent=0 // pred_region
    _
  $region9: #{_unet_forward.11} parent=0 // pred_fallthru
    _
  // Predicated region
  $region10: #{_unet_forward.11} parent=0 // pred_check
    _
  $region11: #{_unet_forward.11} parent=0 // pred_check_branch
    %13 = sbr.rel (0) target = $region13
  $region12: #{_unet_forward.11} parent=0 // pred_region
    _
  $region13: #{_unet_forward.11} parent=0 // pred_fallthru
    _
  %v14 = vld [vmem:[%s0] sm:$0xff]
  %v15 = vld [vmem:[%s0 + $0x8] sm:$0xff]
  %v16 = vld [vmem:[%s0 + $0x10] sm:$0xf]
  %v17 = vld [vmem:[%s0 + $0x14] sm:$0xff]
  %v18 = vld [vmem:[%s0 + $0x1c] sm:$0xff]
  %v19 = vld [vmem:[%s0 + $0x24] sm:$0xf]
  %v20 = vld [vmem:[%s0 + $0x28] sm:$0xff]
  %v21 = vld [vmem:[%s0 + $0x30] sm:$0xff]
  %v22 = vld [vmem:[%s0 + $0x38] sm:$0xf]
  %v23 = vld [vmem:[%s0 + $0x3c] sm:$0xff]
  %v24 = vld [vmem:[%s0 + $0x44] sm:$0xff]
  %v25 = vld [vmem:[%s0 + $0x4c] sm:$0xf]
  %v26 = vld [vmem:[%s0 + $0x50] sm:$0xff]
  %v27 = vld [vmem:[%s0 + $0x58] sm:$0xff]
  %v28 = vld [vmem:[%s0 + $0x60] sm:$0xf]
  %v29 = vld [vmem:[%s0 + $0x64] sm:$0xff]
  %v30 = vld [vmem:[%s0 + $0x6c] sm:$0xff]
  %v31 = vld [vmem:[%s0 + $0x74] sm:$0xf]
  %v32 = vld [vmem:[%s0 + $0x78] sm:$0xff]
  %v33 = vld [vmem:[%s0 + $0x80] sm:$0xff]
  %v34 = vld [vmem:[%s0 + $0x88] sm:$0xf]
  %v35 = vld [vmem:[%s0 + $0x8c] sm:$0xff]
  %v36 = vld [vmem:[%s0 + $0x94] sm:$0xff]
  %v37 = vld [vmem:[%s0 + $0x9c] sm:$0xf]
  %v38 = vld [vmem:[%s1] sm:$0xf]
  %v39 = vld [vmem:[%s1 + $0x4] sm:$0xf]
  %v40 = vld [vmem:[%s1 + $0x8] sm:$0xf]
  %v41 = vld [vmem:[%s1 + $0xc] sm:$0xf]
  %v42 = vld [vmem:[%s1 + $0x10] sm:$0xf]
  %v43 = vld [vmem:[%s1 + $0x14] sm:$0xf]
  %v44 = vld [vmem:[%s1 + $0x18] sm:$0xf]
  %v45 = vld [vmem:[%s1 + $0x1c] sm:$0xf]
  %v46 = vld [vmem:[%s1 + $0x20] sm:$0xf]
  %v47 = vld [vmem:[%s1 + $0x24] sm:$0xf]
  %v48 = vld [vmem:[%s1 + $0x28] sm:$0xf]
  %v49 = vld [vmem:[%s1 + $0x2c] sm:$0xf]
  %v50 = vld [vmem:[%s1 + $0x30] sm:$0xf]
  %v51 = vld [vmem:[%s1 + $0x34] sm:$0xf]
  %v52 = vld [vmem:[%s1 + $0x38] sm:$0xf]
  %v53 = vld [vmem:[%s1 + $0x3c] sm:$0xf]
  %v54 = vld [vmem:[%s1 + $0x40] sm:$0xf]
  %v55 = vld [vmem:[%s1 + $0x44] sm:$0xf]
  %v56 = vld [vmem:[%s1 + $0x48] sm:$0xf]
  %v57 = vld [vmem:[%s1 + $0x4c] sm:$0xf]
  %v58 = vld [vmem:[%s1 + $0x50] sm:$0xf]
  %v59 = vld [vmem:[%s1 + $0x54] sm:$0xf]
  %v60 = vld [vmem:[%s1 + $0x58] sm:$0xf]
  %v61 = vld [vmem:[%s1 + $0x5c] sm:$0xf]
  %v62 = vld [vmem:[%s1 + $0x60] sm:$0xf]
  %v63 = vld [vmem:[%s1 + $0x64] sm:$0xf]
  %v64 = vld [vmem:[%s1 + $0x68] sm:$0xf]
  %v65 = vld [vmem:[%s1 + $0x6c] sm:$0xf]
  %v66 = vld [vmem:[%s1 + $0x70] sm:$0xf]
  %v67 = vld [vmem:[%s1 + $0x74] sm:$0xf]
  %v68 = vld [vmem:[%s1 + $0x78] sm:$0xf]
  %v69 = vld [vmem:[%s1 + $0x7c] sm:$0xf]
  %v70 = vld [vmem:[%s1 + $0x80] sm:$0xf]
  %v71 = vld [vmem:[%s1 + $0x84] sm:$0xf]
  %v72 = vld [vmem:[%s1 + $0x88] sm:$0xf]
  %v73 = vld [vmem:[%s1 + $0x8c] sm:$0xf]
  %v74 = vld [vmem:[%s1 + $0x90] sm:$0xf]
  %v75 = vld [vmem:[%s1 + $0x94] sm:$0xf]
  %v76 = vld [vmem:[%s1 + $0x98] sm:$0xf]
  %v77 = vld [vmem:[%s1 + $0x9c] sm:$0xf]
  %v78 = vld [vmem:[%s1 + $0xa0] sm:$0xf]
  %v79 = vld [vmem:[%s1 + $0xa4] sm:$0xf]
  %v80 = vld [vmem:[%s1 + $0xa8] sm:$0xf]
  %v81 = vld [vmem:[%s1 + $0xac] sm:$0xf]
  %v82 = vld [vmem:[%s1 + $0xb0] sm:$0xf]
  %v83 = vld [vmem:[%s1 + $0xb4] sm:$0xf]
  %v84 = vld [vmem:[%s1 + $0xb8] sm:$0xf]
  %v85 = vld [vmem:[%s1 + $0xbc] sm:$0xf]
  %v86 = vld [vmem:[%s1 + $0xc0] sm:$0xf]
  %v87 = vld [vmem:[%s1 + $0xc4] sm:$0xf]
  %v88 = vld [vmem:[%s1 + $0xc8] sm:$0xf]
  %v89 = vld [vmem:[%s1 + $0xcc] sm:$0xf]
  %v90 = vld [vmem:[%s1 + $0xd0] sm:$0xf]
  %v91 = vld [vmem:[%s1 + $0xd4] sm:$0xf]
  %v92 = vld [vmem:[%s1 + $0xd8] sm:$0xf]
  %v93 = vld [vmem:[%s1 + $0xdc] sm:$0xf]
  %v94 = vld [vmem:[%s1 + $0xe0] sm:$0xf]
  %v95 = vld [vmem:[%s1 + $0xe4] sm:$0xf]
  %v96 = vld [vmem:[%s1 + $0xe8] sm:$0xf]
  %v97 = vld [vmem:[%s1 + $0xec] sm:$0xf]
  %v98 = vld [vmem:[%s1 + $0xf0] sm:$0xf]
  %v99 = vld [vmem:[%s1 + $0xf4] sm:$0xf]
  %v100 = vld [vmem:[%s1 + $0xf8] sm:$0xf]
  %v101 = vld [vmem:[%s1 + $0xfc] sm:$0xf]
  %v102 = vld [vmem:[%s1 + $0x100] sm:$0xf]
  %v103 = vld [vmem:[%s1 + $0x104] sm:$0xf]
  %v104 = vld [vmem:[%s1 + $0x108] sm:$0xf]
  %v105 = vld [vmem:[%s1 + $0x10c] sm:$0xf]
  %v106 = vld [vmem:[%s1 + $0x110] sm:$0xf]
  %v107 = vld [vmem:[%s1 + $0x114] sm:$0xf]
  %v108 = vld [vmem:[%s1 + $0x118] sm:$0xf]
  %v109 = vld [vmem:[%s1 + $0x11c] sm:$0xf]
  %v110 = vld [vmem:[%s1 + $0x120] sm:$0xf]
  %v111 = vld [vmem:[%s1 + $0x124] sm:$0xf]
  %v112 = vld [vmem:[%s1 + $0x128] sm:$0xf]
  %v113 = vld [vmem:[%s1 + $0x12c] sm:$0xf]
  %v114 = vld [vmem:[%s1 + $0x130] sm:$0xf]
  %v115 = vld [vmem:[%s1 + $0x134] sm:$0xf]
  %v116 = vld [vmem:[%s1 + $0x138] sm:$0xf]
  %v117 = vld [vmem:[%s1 + $0x13c] sm:$0xf]
  %v118 = vld [vmem:[%s2] sm:$0x1]
  %v120 = vperm.slane %v118, 0
  %v146 = vunpack.c.l.b16 %v14
  %v147 = vunpack.c.h.b16 %v14
  %v148 = vunpack.c.l.b16 %v15
  %v149 = vunpack.c.h.b16 %v15
  %v150 = vunpack.c.l.b16 %v16
  %v151 = vunpack.c.l.b16 %v17
  %v152 = vunpack.c.h.b16 %v17
  %v153 = vunpack.c.l.b16 %v18
  %v154 = vunpack.c.h.b16 %v18
  %v155 = vunpack.c.l.b16 %v19
  %v156 = vunpack.c.l.b16 %v20
  %v157 = vunpack.c.h.b16 %v20
  %v158 = vunpack.c.l.b16 %v21
  %v159 = vunpack.c.h.b16 %v21
  %v160 = vunpack.c.l.b16 %v22
  %v161 = vunpack.c.l.b16 %v23
  %v162 = vunpack.c.h.b16 %v23
  %v163 = vunpack.c.l.b16 %v24
  %v164 = vunpack.c.h.b16 %v24
  %v165 = vunpack.c.l.b16 %v25
  %v166 = vunpack.c.l.b16 %v26
  %v167 = vunpack.c.h.b16 %v26
  %v168 = vunpack.c.l.b16 %v27
  %v169 = vunpack.c.h.b16 %v27
  %v170 = vunpack.c.l.b16 %v28
  %v171 = vunpack.c.l.b16 %v29
  %v172 = vunpack.c.h.b16 %v29
  %v173 = vunpack.c.l.b16 %v30
  %v174 = vunpack.c.h.b16 %v30
  %v175 = vunpack.c.l.b16 %v31
  %v176 = vunpack.c.l.b16 %v32
  %v177 = vunpack.c.h.b16 %v32
  %v178 = vunpack.c.l.b16 %v33
  %v179 = vunpack.c.h.b16 %v33
  %v180 = vunpack.c.l.b16 %v34
  %v181 = vunpack.c.l.b16 %v35
  %v182 = vunpack.c.h.b16 %v35
  %v183 = vunpack.c.l.b16 %v36
  %v184 = vunpack.c.h.b16 %v36
  %v185 = vunpack.c.l.b16 %v37
  %v186 = vpack.c.b16 %v151, %v146
  %v187 = vpack.c.b16 %v152, %v147
  %v188 = vpack.c.b16 %v153, %v148
  %v189 = vpack.c.b16 %v154, %v149
  %v190 = vpack.c.b16 %v155, %v150
  %v191 = vpack.c.b16 %v161, %v156
  %v192 = vpack.c.b16 %v162, %v157
  %v193 = vpack.c.b16 %v163, %v158
  %v194 = vpack.c.b16 %v164, %v159
  %v195 = vpack.c.b16 %v165, %v160
  %v196 = vpack.c.b16 %v171, %v166
  %v197 = vpack.c.b16 %v172, %v167
  %v198 = vpack.c.b16 %v173, %v168
  %v199 = vpack.c.b16 %v174, %v169
  %v200 = vpack.c.b16 %v175, %v170
  %v201 = vpack.c.b16 %v181, %v176
  %v202 = vpack.c.b16 %v182, %v177
  %v203 = vpack.c.b16 %v183, %v178
  %v204 = vpack.c.b16 %v184, %v179
  %v205 = vpack.c.b16 %v185, %v180
  %v306 = vunpack.c.l.b16 %v38
  %v307 = vunpack.c.l.b16 %v39
  %v308 = vunpack.c.l.b16 %v40
  %v309 = vunpack.c.l.b16 %v41
  %v310 = vunpack.c.l.b16 %v42
  %v311 = vunpack.c.l.b16 %v43
  %v312 = vunpack.c.l.b16 %v44
  %v313 = vunpack.c.l.b16 %v45
  %v314 = vunpack.c.l.b16 %v46
  %v315 = vunpack.c.l.b16 %v47
  %v316 = vunpack.c.l.b16 %v48
  %v317 = vunpack.c.l.b16 %v49
  %v318 = vunpack.c.l.b16 %v50
  %v319 = vunpack.c.l.b16 %v51
  %v320 = vunpack.c.l.b16 %v52
  %v321 = vunpack.c.l.b16 %v53
  %v322 = vunpack.c.l.b16 %v54
  %v323 = vunpack.c.l.b16 %v55
  %v324 = vunpack.c.l.b16 %v56
  %v325 = vunpack.c.l.b16 %v57
  %v326 = vunpack.c.l.b16 %v58
  %v327 = vunpack.c.l.b16 %v59
  %v328 = vunpack.c.l.b16 %v60
  %v329 = vunpack.c.l.b16 %v61
  %v330 = vunpack.c.l.b16 %v62
  %v331 = vunpack.c.l.b16 %v63
  %v332 = vunpack.c.l.b16 %v64
  %v333 = vunpack.c.l.b16 %v65
  %v334 = vunpack.c.l.b16 %v66
  %v335 = vunpack.c.l.b16 %v67
  %v336 = vunpack.c.l.b16 %v68
  %v337 = vunpack.c.l.b16 %v69
  %v338 = vunpack.c.l.b16 %v70
  %v339 = vunpack.c.l.b16 %v71
  %v340 = vunpack.c.l.b16 %v72
  %v341 = vunpack.c.l.b16 %v73
  %v342 = vunpack.c.l.b16 %v74
  %v343 = vunpack.c.l.b16 %v75
  %v344 = vunpack.c.l.b16 %v76
  %v345 = vunpack.c.l.b16 %v77
  %v346 = vunpack.c.l.b16 %v78
  %v347 = vunpack.c.l.b16 %v79
  %v348 = vunpack.c.l.b16 %v80
  %v349 = vunpack.c.l.b16 %v81
  %v350 = vunpack.c.l.b16 %v82
  %v351 = vunpack.c.l.b16 %v83
  %v352 = vunpack.c.l.b16 %v84
  %v353 = vunpack.c.l.b16 %v85
  %v354 = vunpack.c.l.b16 %v86
  %v355 = vunpack.c.l.b16 %v87
  %v356 = vunpack.c.l.b16 %v88
  %v357 = vunpack.c.l.b16 %v89
  %v358 = vunpack.c.l.b16 %v90
  %v359 = vunpack.c.l.b16 %v91
  %v360 = vunpack.c.l.b16 %v92
  %v361 = vunpack.c.l.b16 %v93
  %v362 = vunpack.c.l.b16 %v94
  %v363 = vunpack.c.l.b16 %v95
  %v364 = vunpack.c.l.b16 %v96
  %v365 = vunpack.c.l.b16 %v97
  %v366 = vunpack.c.l.b16 %v98
  %v367 = vunpack.c.l.b16 %v99
  %v368 = vunpack.c.l.b16 %v100
  %v369 = vunpack.c.l.b16 %v101
  %v370 = vunpack.c.l.b16 %v102
  %v371 = vunpack.c.l.b16 %v103
  %v372 = vunpack.c.l.b16 %v104
  %v373 = vunpack.c.l.b16 %v105
  %v374 = vunpack.c.l.b16 %v106
  %v375 = vunpack.c.l.b16 %v107
  %v376 = vunpack.c.l.b16 %v108
  %v377 = vunpack.c.l.b16 %v109
  %v378 = vunpack.c.l.b16 %v110
  %v379 = vunpack.c.l.b16 %v111
  %v380 = vunpack.c.l.b16 %v112
  %v381 = vunpack.c.l.b16 %v113
  %v382 = vunpack.c.l.b16 %v114
  %v383 = vunpack.c.l.b16 %v115
  %v384 = vunpack.c.l.b16 %v116
  %v385 = vunpack.c.l.b16 %v117
  %v386 = vpack.c.b16 %v307, %v306
  %v387 = vpack.c.b16 %v309, %v308
  %v388 = vpack.c.b16 %v311, %v310
  %v389 = vpack.c.b16 %v313, %v312
  %v390 = vpack.c.b16 %v315, %v314
  %v391 = vpack.c.b16 %v317, %v316
  %v392 = vpack.c.b16 %v319, %v318
  %v393 = vpack.c.b16 %v321, %v320
  %v394 = vpack.c.b16 %v323, %v322
  %v395 = vpack.c.b16 %v325, %v324
  %v396 = vpack.c.b16 %v327, %v326
  %v397 = vpack.c.b16 %v329, %v328
  %v398 = vpack.c.b16 %v331, %v330
  %v399 = vpack.c.b16 %v333, %v332
  %v400 = vpack.c.b16 %v335, %v334
  %v401 = vpack.c.b16 %v337, %v336
  %v402 = vpack.c.b16 %v339, %v338
  %v403 = vpack.c.b16 %v341, %v340
  %v404 = vpack.c.b16 %v343, %v342
  %v405 = vpack.c.b16 %v345, %v344
  %v406 = vpack.c.b16 %v347, %v346
  %v407 = vpack.c.b16 %v349, %v348
  %v408 = vpack.c.b16 %v351, %v350
  %v409 = vpack.c.b16 %v353, %v352
  %v410 = vpack.c.b16 %v355, %v354
  %v411 = vpack.c.b16 %v357, %v356
  %v412 = vpack.c.b16 %v359, %v358
  %v413 = vpack.c.b16 %v361, %v360
  %v414 = vpack.c.b16 %v363, %v362
  %v415 = vpack.c.b16 %v365, %v364
  %v416 = vpack.c.b16 %v367, %v366
  %v417 = vpack.c.b16 %v369, %v368
  %v418 = vpack.c.b16 %v371, %v370
  %v419 = vpack.c.b16 %v373, %v372
  %v420 = vpack.c.b16 %v375, %v374
  %v421 = vpack.c.b16 %v377, %v376
  %v422 = vpack.c.b16 %v379, %v378
  %v423 = vpack.c.b16 %v381, %v380
  %v424 = vpack.c.b16 %v383, %v382
  %v425 = vpack.c.b16 %v385, %v384
  %466 = vmatpush.bf16.msra.mxu0 %v393
  %467 = vmatpush.bf16.msra.mxu0 %v392
  %468 = vmatpush.bf16.msra.mxu0 %v391
  %469 = vmatpush.bf16.msra.mxu0 %v390
  %470 = vmatpush.bf16.msra.mxu0 %v389
  %471 = vmatpush.bf16.msra.mxu0 %v388
  %472 = vmatpush.bf16.msra.mxu0 %v387
  %473 = vmatpush.bf16.msra.mxu0 %v386
  %474 = vmatmul.bf16.gmra.mxu0 %v186
  %v475 = vpop.f32.mrf.mxu0
  %v476 = vadd.f32 %v120, %v475
  %v477 = vpop.f32.mrf.mxu0
  %v478 = vadd.f32 %v120, %v477
  %479 = vmatmul.bf16.gmra.mxu0 %v191
  %v480 = vpop.f32.mrf.mxu0
  %v481 = vadd.f32 %v120, %v480
  %v482 = vpop.f32.mrf.mxu0
  %v483 = vadd.f32 %v120, %v482
  %484 = vmatmul.bf16.gmra.mxu0 %v196
  %v485 = vpop.f32.mrf.mxu0
  %v486 = vadd.f32 %v120, %v485
  %v487 = vpop.f32.mrf.mxu0
  %v488 = vadd.f32 %v120, %v487
  %489 = vmatmul.bf16.gmra.mxu0 %v201
  %v490 = vpop.f32.mrf.mxu0
  %v491 = vadd.f32 %v120, %v490
  %v492 = vpop.f32.mrf.mxu0
  %v493 = vadd.f32 %v120, %v492
  %494 = vdwg.mxu0
  %495 = vmatpush.bf16.msra.mxu0 %v401
  %496 = vmatpush.bf16.msra.mxu0 %v400
  %497 = vmatpush.bf16.msra.mxu0 %v399
  %498 = vmatpush.bf16.msra.mxu0 %v398
  %499 = vmatpush.bf16.msra.mxu0 %v397
  %500 = vmatpush.bf16.msra.mxu0 %v396
  %501 = vmatpush.bf16.msra.mxu0 %v395
  %502 = vmatpush.bf16.msra.mxu0 %v394
  %503 = vmatmul.bf16.gmra.mxu0 %v187
  %v504 = vpop.f32.mrf.mxu0
  %v505 = vadd.f32 %v476, %v504
  %v506 = vpop.f32.mrf.mxu0
  %v507 = vadd.f32 %v478, %v506
  %508 = vmatmul.bf16.gmra.mxu0 %v192
  %v509 = vpop.f32.mrf.mxu0
  %v510 = vadd.f32 %v481, %v509
  %v511 = vpop.f32.mrf.mxu0
  %v512 = vadd.f32 %v483, %v511
  %513 = vmatmul.bf16.gmra.mxu0 %v197
  %v514 = vpop.f32.mrf.mxu0
  %v515 = vadd.f32 %v486, %v514
  %v516 = vpop.f32.mrf.mxu0
  %v517 = vadd.f32 %v488, %v516
  %518 = vmatmul.bf16.gmra.mxu0 %v202
  %v519 = vpop.f32.mrf.mxu0
  %v520 = vadd.f32 %v491, %v519
  %v521 = vpop.f32.mrf.mxu0
  %v522 = vadd.f32 %v493, %v521
  %523 = vdwg.mxu0
  %524 = vmatpush.bf16.msra.mxu0 %v409
  %525 = vmatpush.bf16.msra.mxu0 %v408
  %526 = vmatpush.bf16.msra.mxu0 %v407
  %527 = vmatpush.bf16.msra.mxu0 %v406
  %528 = vmatpush.bf16.msra.mxu0 %v405
  %529 = vmatpush.bf16.msra.mxu0 %v404
  %530 = vmatpush.bf16.msra.mxu0 %v403
  %531 = vmatpush.bf16.msra.mxu0 %v402
  %532 = vmatmul.bf16.gmra.mxu0 %v188
  %v533 = vpop.f32.mrf.mxu0
  %v534 = vadd.f32 %v505, %v533
  %v535 = vpop.f32.mrf.mxu0
  %v536 = vadd.f32 %v507, %v535
  %537 = vmatmul.bf16.gmra.mxu0 %v193
  %v538 = vpop.f32.mrf.mxu0
  %v539 = vadd.f32 %v510, %v538
  %v540 = vpop.f32.mrf.mxu0
  %v541 = vadd.f32 %v512, %v540
  %542 = vmatmul.bf16.gmra.mxu0 %v198
  %v543 = vpop.f32.mrf.mxu0
  %v544 = vadd.f32 %v515, %v543
  %v545 = vpop.f32.mrf.mxu0
  %v546 = vadd.f32 %v517, %v545
  %547 = vmatmul.bf16.gmra.mxu0 %v203
  %v548 = vpop.f32.mrf.mxu0
  %v549 = vadd.f32 %v520, %v548
  %v550 = vpop.f32.mrf.mxu0
  %v551 = vadd.f32 %v522, %v550
  %552 = vdwg.mxu0
  %553 = vmatpush.bf16.msra.mxu0 %v417
  %554 = vmatpush.bf16.msra.mxu0 %v416
  %555 = vmatpush.bf16.msra.mxu0 %v415
  %556 = vmatpush.bf16.msra.mxu0 %v414
  %557 = vmatpush.bf16.msra.mxu0 %v413
  %558 = vmatpush.bf16.msra.mxu0 %v412
  %559 = vmatpush.bf16.msra.mxu0 %v411
  %560 = vmatpush.bf16.msra.mxu0 %v410
  %561 = vmatmul.bf16.gmra.mxu0 %v189
  %v562 = vpop.f32.mrf.mxu0
  %v563 = vadd.f32 %v534, %v562
  %v564 = vpop.f32.mrf.mxu0
  %v565 = vadd.f32 %v536, %v564
  %566 = vmatmul.bf16.gmra.mxu0 %v194
  %v567 = vpop.f32.mrf.mxu0
  %v568 = vadd.f32 %v539, %v567
  %v569 = vpop.f32.mrf.mxu0
  %v570 = vadd.f32 %v541, %v569
  %571 = vmatmul.bf16.gmra.mxu0 %v199
  %v572 = vpop.f32.mrf.mxu0
  %v573 = vadd.f32 %v544, %v572
  %v574 = vpop.f32.mrf.mxu0
  %v575 = vadd.f32 %v546, %v574
  %576 = vmatmul.bf16.gmra.mxu0 %v204
  %v577 = vpop.f32.mrf.mxu0
  %v578 = vadd.f32 %v549, %v577
  %v579 = vpop.f32.mrf.mxu0
  %v580 = vadd.f32 %v551, %v579
  %581 = vdwg.mxu0
  %582 = vmatpush.bf16.msra.mxu0 %v425
  %583 = vmatpush.bf16.msra.mxu0 %v424
  %584 = vmatpush.bf16.msra.mxu0 %v423
  %585 = vmatpush.bf16.msra.mxu0 %v422
  %586 = vmatpush.bf16.msra.mxu0 %v421
  %587 = vmatpush.bf16.msra.mxu0 %v420
  %588 = vmatpush.bf16.msra.mxu0 %v419
  %589 = vmatpush.bf16.msra.mxu0 %v418
  %590 = vmatmul.bf16.gmra.mxu0 %v190
  %v591 = vpop.f32.mrf.mxu0
  %v592 = vadd.f32 %v563, %v591
  %v593 = vpop.f32.mrf.mxu0
  %v594 = vadd.f32 %v565, %v593
  %595 = vmatmul.bf16.gmra.mxu0 %v195
  %v596 = vpop.f32.mrf.mxu0
  %v597 = vadd.f32 %v568, %v596
  %v598 = vpop.f32.mrf.mxu0
  %v599 = vadd.f32 %v570, %v598
  %600 = vmatmul.bf16.gmra.mxu0 %v200
  %v601 = vpop.f32.mrf.mxu0
  %v602 = vadd.f32 %v573, %v601
  %v603 = vpop.f32.mrf.mxu0
  %v604 = vadd.f32 %v575, %v603
  %605 = vmatmul.bf16.gmra.mxu0 %v205
  %v606 = vpop.f32.mrf.mxu0
  %v607 = vadd.f32 %v578, %v606
  %v608 = vpop.f32.mrf.mxu0
  %v609 = vadd.f32 %v580, %v608
  %610 = vdwg.mxu0
  %v611 = vmax.f32 %v592, 0.0
  %v612 = vmax.f32 %v594, 0.0
  %v613 = vmax.f32 %v597, 0.0
  %v614 = vmax.f32 %v599, 0.0
  %v615 = vmax.f32 %v602, 0.0
  %v616 = vmax.f32 %v604, 0.0
  %v617 = vmax.f32 %v607, 0.0
  %v618 = vmax.f32 %v609, 0.0
  %619 = vst [vmem:[%s3] sm:$0xff] %v611
  %620 = vst [vmem:[%s3 + $0x8] sm:$0xff] %v612
  %621 = vst [vmem:[%s3 + $0x10] sm:$0xff] %v613
  %622 = vst [vmem:[%s3 + $0x18] sm:$0xff] %v614
  %623 = vst [vmem:[%s3 + $0x20] sm:$0xff] %v615
  %624 = vst [vmem:[%s3 + $0x28] sm:$0xff] %v616
  %625 = vst [vmem:[%s3 + $0x30] sm:$0xff] %v617
  %626 = vst [vmem:[%s3 + $0x38] sm:$0xff] %v618
  // Predicated region
  $region14: #{_unet_forward.11} parent=0 // pred_check
    _
  $region15: #{_unet_forward.11} parent=0 // pred_check_branch
    %628 = sbr.rel (0) target = $region17
  $region16: #{_unet_forward.11} parent=0 // pred_region
    _
  $region17: #{_unet_forward.11} parent=0 // pred_fallthru
    _
  // Predicated region
  $region18: #{_unet_forward.11} parent=0 // pred_check
    _
  $region19: #{_unet_forward.11} parent=0 // pred_check_branch
    %630 = sbr.rel (0) target = $region21
  $region20: #{_unet_forward.11} parent=0 // pred_region
    _
  $region21: #{_unet_forward.11} parent=0 // pred_fallthru
    _

// kernel: _unet_forward.12
$region0: #{_unet_forward.12}
  #allocation0 [shape = 'u32[]', space=smem, size = 0x4, offset = 0x4, fixed_abs, tag = 'smem constant byte address 0x4 - core index']
  #allocation1 [shape = 'u32[72,128]{1,0:T(1,128)}', space=vmem, size = 0x9000, scoped, tag = 'internal scratch']
  %s0 = inlined_call_operand.vmem [shape: bf16[256,384], index: 0, kind: input, shape index: {}]
  %s1 = inlined_call_operand.vmem [shape: bf16[384,128], index: 1, kind: input, shape index: {}]
  %s2 = inlined_call_operand.vmem [shape: f32[1,128], index: 2, kind: input, shape index: {}]
  %s3 = inlined_call_operand.vmem [shape: f32[256,128], index: 3, kind: output, shape index: {}]
  %s4 = sld [smem:[#allocation0]]
  $region22: #{_unet_forward.12} parent=0
    _
  %s6 = ssub.s32 1, %s4
  %s7 = scalar_select 0, %s6, %s4
  // Predicated region
  $region2: #{_unet_forward.12} parent=0 // pred_check
    _
  $region3: #{_unet_forward.12} parent=0 // pred_check_branch
    %9 = sbr.rel (0) target = $region5
  $region4: #{_unet_forward.12} parent=0 // pred_region
    _
  $region5: #{_unet_forward.12} parent=0 // pred_fallthru
    _
  // Predicated region
  $region6: #{_unet_forward.12} parent=0 // pred_check
    _
  $region7: #{_unet_forward.12} parent=0 // pred_check_branch
    %11 = sbr.rel (0) target = $region9
  $region8: #{_unet_forward.12} parent=0 // pred_region
    _
  $region9: #{_unet_forward.12} parent=0 // pred_fallthru
    _
  // Predicated region
  $region10: #{_unet_forward.12} parent=0 // pred_check
    _
  $region11: #{_unet_forward.12} parent=0 // pred_check_branch
    %13 = sbr.rel (0) target = $region13
  $region12: #{_unet_forward.12} parent=0 // pred_region
    _
  $region13: #{_unet_forward.12} parent=0 // pred_fallthru
    _
  %v14 = vld [vmem:[%s0] sm:$0xff]
  %v15 = vld [vmem:[%s0 + $0x8] sm:$0xf]
  %v16 = vld [vmem:[%s0 + $0xc] sm:$0xff]
  %v17 = vld [vmem:[%s0 + $0x14] sm:$0xf]
  %v18 = vld [vmem:[%s0 + $0x18] sm:$0xff]
  %v19 = vld [vmem:[%s0 + $0x20] sm:$0xf]
  %v20 = vld [vmem:[%s0 + $0x24] sm:$0xff]
  %v21 = vld [vmem:[%s0 + $0x2c] sm:$0xf]
  %v22 = vld [vmem:[%s0 + $0x30] sm:$0xff]
  %v23 = vld [vmem:[%s0 + $0x38] sm:$0xf]
  %v24 = vld [vmem:[%s0 + $0x3c] sm:$0xff]
  %v25 = vld [vmem:[%s0 + $0x44] sm:$0xf]
  %v26 = vld [vmem:[%s0 + $0x48] sm:$0xff]
  %v27 = vld [vmem:[%s0 + $0x50] sm:$0xf]
  %v28 = vld [vmem:[%s0 + $0x54] sm:$0xff]
  %v29 = vld [vmem:[%s0 + $0x5c] sm:$0xf]
  %v30 = vld [vmem:[%s0 + $0x60] sm:$0xff]
  %v31 = vld [vmem:[%s0 + $0x68] sm:$0xf]
  %v32 = vld [vmem:[%s0 + $0x6c] sm:$0xff]
  %v33 = vld [vmem:[%s0 + $0x74] sm:$0xf]
  %v34 = vld [vmem:[%s0 + $0x78] sm:$0xff]
  %v35 = vld [vmem:[%s0 + $0x80] sm:$0xf]
  %v36 = vld [vmem:[%s0 + $0x84] sm:$0xff]
  %v37 = vld [vmem:[%s0 + $0x8c] sm:$0xf]
  %v38 = vld [vmem:[%s0 + $0x90] sm:$0xff]
  %v39 = vld [vmem:[%s0 + $0x98] sm:$0xf]
  %v40 = vld [vmem:[%s0 + $0x9c] sm:$0xff]
  %v41 = vld [vmem:[%s0 + $0xa4] sm:$0xf]
  %v42 = vld [vmem:[%s0 + $0xa8] sm:$0xff]
  %v43 = vld [vmem:[%s0 + $0xb0] sm:$0xf]
  %v44 = vld [vmem:[%s0 + $0xb4] sm:$0xff]
  %v45 = vld [vmem:[%s0 + $0xbc] sm:$0xf]
  %v46 = vld [vmem:[%s0 + $0xc0] sm:$0xff]
  %v47 = vld [vmem:[%s0 + $0xc8] sm:$0xf]
  %v48 = vld [vmem:[%s0 + $0xcc] sm:$0xff]
  %v49 = vld [vmem:[%s0 + $0xd4] sm:$0xf]
  %v50 = vld [vmem:[%s0 + $0xd8] sm:$0xff]
  %v51 = vld [vmem:[%s0 + $0xe0] sm:$0xf]
  %v52 = vld [vmem:[%s0 + $0xe4] sm:$0xff]
  %v53 = vld [vmem:[%s0 + $0xec] sm:$0xf]
  %v54 = vld [vmem:[%s0 + $0xf0] sm:$0xff]
  %v55 = vld [vmem:[%s0 + $0xf8] sm:$0xf]
  %v56 = vld [vmem:[%s0 + $0xfc] sm:$0xff]
  %v57 = vld [vmem:[%s0 + $0x104] sm:$0xf]
  %v58 = vld [vmem:[%s0 + $0x108] sm:$0xff]
  %v59 = vld [vmem:[%s0 + $0x110] sm:$0xf]
  %v60 = vld [vmem:[%s0 + $0x114] sm:$0xff]
  %v61 = vld [vmem:[%s0 + $0x11c] sm:$0xf]
  %v62 = vld [vmem:[%s0 + $0x120] sm:$0xff]
  %v63 = vld [vmem:[%s0 + $0x128] sm:$0xf]
  %v64 = vld [vmem:[%s0 + $0x12c] sm:$0xff]
  %v65 = vld [vmem:[%s0 + $0x134] sm:$0xf]
  %v66 = vld [vmem:[%s0 + $0x138] sm:$0xff]
  %v67 = vld [vmem:[%s0 + $0x140] sm:$0xf]
  %v68 = vld [vmem:[%s0 + $0x144] sm:$0xff]
  %v69 = vld [vmem:[%s0 + $0x14c] sm:$0xf]
  %v70 = vld [vmem:[%s0 + $0x150] sm:$0xff]
  %v71 = vld [vmem:[%s0 + $0x158] sm:$0xf]
  %v72 = vld [vmem:[%s0 + $0x15c] sm:$0xff]
  %v73 = vld [vmem:[%s0 + $0x164] sm:$0xf]
  %v74 = vld [vmem:[%s0 + $0x168] sm:$0xff]
  %v75 = vld [vmem:[%s0 + $0x170] sm:$0xf]
  %v76 = vld [vmem:[%s0 + $0x174] sm:$0xff]
  %v77 = vld [vmem:[%s0 + $0x17c] sm:$0xf]
  %v78 = vld [vmem:[%s1] sm:$0xf]
  %v79 = vld [vmem:[%s1 + $0x4] sm:$0xf]
  %v80 = vld [vmem:[%s1 + $0x8] sm:$0xf]
  %v81 = vld [vmem:[%s1 + $0xc] sm:$0xf]
  %v82 = vld [vmem:[%s1 + $0x10] sm:$0xf]
  %v83 = vld [vmem:[%s1 + $0x14] sm:$0xf]
  %v84 = vld [vmem:[%s1 + $0x18] sm:$0xf]
  %v85 = vld [vmem:[%s1 + $0x1c] sm:$0xf]
  %v86 = vld [vmem:[%s1 + $0x20] sm:$0xf]
  %v87 = vld [vmem:[%s1 + $0x24] sm:$0xf]
  %v88 = vld [vmem:[%s1 + $0x28] sm:$0xf]
  %v89 = vld [vmem:[%s1 + $0x2c] sm:$0xf]
  %v90 = vld [vmem:[%s1 + $0x30] sm:$0xf]
  %v91 = vld [vmem:[%s1 + $0x34] sm:$0xf]
  %v92 = vld [vmem:[%s1 + $0x38] sm:$0xf]
  %v93 = vld [vmem:[%s1 + $0x3c] sm:$0xf]
  %v94 = vld [vmem:[%s1 + $0x40] sm:$0xf]
  %v95 = vld [vmem:[%s1 + $0x44] sm:$0xf]
  %v96 = vld [vmem:[%s1 + $0x48] sm:$0xf]
  %v97 = vld [vmem:[%s1 + $0x4c] sm:$0xf]
  %v98 = vld [vmem:[%s1 + $0x50] sm:$0xf]
  %v99 = vld [vmem:[%s1 + $0x54] sm:$0xf]
  %v100 = vld [vmem:[%s1 + $0x58] sm:$0xf]
  %v101 = vld [vmem:[%s1 + $0x5c] sm:$0xf]
  %v102 = vld [vmem:[%s1 + $0x60] sm:$0xf]
  %v103 = vld [vmem:[%s1 + $0x64] sm:$0xf]
  %v104 = vld [vmem:[%s1 + $0x68] sm:$0xf]
  %v105 = vld [vmem:[%s1 + $0x6c] sm:$0xf]
  %v106 = vld [vmem:[%s1 + $0x70] sm:$0xf]
  %v107 = vld [vmem:[%s1 + $0x74] sm:$0xf]
  %v108 = vld [vmem:[%s1 + $0x78] sm:$0xf]
  %v109 = vld [vmem:[%s1 + $0x7c] sm:$0xf]
  %v110 = vld [vmem:[%s1 + $0x80] sm:$0xf]
  %v111 = vld [vmem:[%s1 + $0x84] sm:$0xf]
  %v112 = vld [vmem:[%s1 + $0x88] sm:$0xf]
  %v113 = vld [vmem:[%s1 + $0x8c] sm:$0xf]
  %v114 = vld [vmem:[%s1 + $0x90] sm:$0xf]
  %v115 = vld [vmem:[%s1 + $0x94] sm:$0xf]
  %v116 = vld [vmem:[%s1 + $0x98] sm:$0xf]
  %v117 = vld [vmem:[%s1 + $0x9c] sm:$0xf]
  %v118 = vld [vmem:[%s1 + $0xa0] sm:$0xf]
  %v119 = vld [vmem:[%s1 + $0xa4] sm:$0xf]
  %v120 = vld [vmem:[%s1 + $0xa8] sm:$0xf]
  %v121 = vld [vmem:[%s1 + $0xac] sm:$0xf]
  %v122 = vld [vmem:[%s1 + $0xb0] sm:$0xf]
  %v123 = vld [vmem:[%s1 + $0xb4] sm:$0xf]
  %v124 = vld [vmem:[%s1 + $0xb8] sm:$0xf]
  %v125 = vld [vmem:[%s1 + $0xbc] sm:$0xf]
  %v126 = vld [vmem:[%s2] sm:$0x1]
  %v128 = vperm.slane %v126, 0
  %v194 = vunpack.c.l.b16 %v14
  %v195 = vunpack.c.h.b16 %v14
  %v196 = vunpack.c.l.b16 %v15
  %v197 = vunpack.c.l.b16 %v16
  %v198 = vunpack.c.h.b16 %v16
  %v199 = vunpack.c.l.b16 %v17
  %v200 = vunpack.c.l.b16 %v18
  %v201 = vunpack.c.h.b16 %v18
  %v202 = vunpack.c.l.b16 %v19
  %v203 = vunpack.c.l.b16 %v20
  %v204 = vunpack.c.h.b16 %v20
  %v205 = vunpack.c.l.b16 %v21
  %v206 = vunpack.c.l.b16 %v22
  %v207 = vunpack.c.h.b16 %v22
  %v208 = vunpack.c.l.b16 %v23
  %v209 = vunpack.c.l.b16 %v24
  %v210 = vunpack.c.h.b16 %v24
  %v211 = vunpack.c.l.b16 %v25
  %v212 = vunpack.c.l.b16 %v26
  %v213 = vunpack.c.h.b16 %v26
  %v214 = vunpack.c.l.b16 %v27
  %v215 = vunpack.c.l.b16 %v28
  %v216 = vunpack.c.h.b16 %v28
  %v217 = vunpack.c.l.b16 %v29
  %v218 = vunpack.c.l.b16 %v30
  %v219 = vunpack.c.h.b16 %v30
  %v220 = vunpack.c.l.b16 %v31
  %v221 = vunpack.c.l.b16 %v32
  %v222 = vunpack.c.h.b16 %v32
  %v223 = vunpack.c.l.b16 %v33
  %v224 = vunpack.c.l.b16 %v34
  %v225 = vunpack.c.h.b16 %v34
  %v226 = vunpack.c.l.b16 %v35
  %v227 = vunpack.c.l.b16 %v36
  %v228 = vunpack.c.h.b16 %v36
  %v229 = vunpack.c.l.b16 %v37
  %v230 = vunpack.c.l.b16 %v38
  %v231 = vunpack.c.h.b16 %v38
  %v232 = vunpack.c.l.b16 %v39
  %v233 = vunpack.c.l.b16 %v40
  %v234 = vunpack.c.h.b16 %v40
  %v235 = vunpack.c.l.b16 %v41
  %v236 = vunpack.c.l.b16 %v42
  %v237 = vunpack.c.h.b16 %v42
  %v238 = vunpack.c.l.b16 %v43
  %v239 = vunpack.c.l.b16 %v44
  %v240 = vunpack.c.h.b16 %v44
  %v241 = vunpack.c.l.b16 %v45
  %v242 = vunpack.c.l.b16 %v46
  %v243 = vunpack.c.h.b16 %v46
  %v244 = vunpack.c.l.b16 %v47
  %v245 = vunpack.c.l.b16 %v48
  %v246 = vunpack.c.h.b16 %v48
  %v247 = vunpack.c.l.b16 %v49
  %v248 = vunpack.c.l.b16 %v50
  %v249 = vunpack.c.h.b16 %v50
  %v250 = vunpack.c.l.b16 %v51
  %v251 = vunpack.c.l.b16 %v52
  %v252 = vunpack.c.h.b16 %v52
  %v253 = vunpack.c.l.b16 %v53
  %v254 = vunpack.c.l.b16 %v54
  %v255 = vunpack.c.h.b16 %v54
  %v256 = vunpack.c.l.b16 %v55
  %v257 = vunpack.c.l.b16 %v56
  %v258 = vunpack.c.h.b16 %v56
  %v259 = vunpack.c.l.b16 %v57
  %v260 = vunpack.c.l.b16 %v58
  %v261 = vunpack.c.h.b16 %v58
  %v262 = vunpack.c.l.b16 %v59
  %v263 = vunpack.c.l.b16 %v60
  %v264 = vunpack.c.h.b16 %v60
  %v265 = vunpack.c.l.b16 %v61
  %v266 = vunpack.c.l.b16 %v62
  %v267 = vunpack.c.h.b16 %v62
  %v268 = vunpack.c.l.b16 %v63
  %v269 = vunpack.c.l.b16 %v64
  %v270 = vunpack.c.h.b16 %v64
  %v271 = vunpack.c.l.b16 %v65
  %v272 = vunpack.c.l.b16 %v66
  %v273 = vunpack.c.h.b16 %v66
  %v274 = vunpack.c.l.b16 %v67
  %v275 = vunpack.c.l.b16 %v68
  %v276 = vunpack.c.h.b16 %v68
  %v277 = vunpack.c.l.b16 %v69
  %v278 = vunpack.c.l.b16 %v70
  %v279 = vunpack.c.h.b16 %v70
  %v280 = vunpack.c.l.b16 %v71
  %v281 = vunpack.c.l.b16 %v72
  %v282 = vunpack.c.h.b16 %v72
  %v283 = vunpack.c.l.b16 %v73
  %v284 = vunpack.c.l.b16 %v74
  %v285 = vunpack.c.h.b16 %v74
  %v286 = vunpack.c.l.b16 %v75
  %v287 = vunpack.c.l.b16 %v76
  %v288 = vunpack.c.h.b16 %v76
  %v289 = vunpack.c.l.b16 %v77
  %v290 = vpack.c.b16 %v197, %v194
  %v291 = vpack.c.b16 %v198, %v195
  %v292 = vpack.c.b16 %v199, %v196
  %v293 = vpack.c.b16 %v203, %v200
  %v294 = vpack.c.b16 %v204, %v201
  %v295 = vpack.c.b16 %v205, %v202
  %v296 = vpack.c.b16 %v209, %v206
  %v297 = vpack.c.b16 %v210, %v207
  %v298 = vpack.c.b16 %v211, %v208
  %v299 = vpack.c.b16 %v215, %v212
  %v300 = vpack.c.b16 %v216, %v213
  %v301 = vpack.c.b16 %v217, %v214
  %v302 = vpack.c.b16 %v221, %v218
  %v303 = vpack.c.b16 %v222, %v219
  %v304 = vpack.c.b16 %v223, %v220
  %v305 = vpack.c.b16 %v227, %v224
  %v306 = vpack.c.b16 %v228, %v225
  %v307 = vpack.c.b16 %v229, %v226
  %v308 = vpack.c.b16 %v233, %v230
  %v309 = vpack.c.b16 %v234, %v231
  %v310 = vpack.c.b16 %v235, %v232
  %v311 = vpack.c.b16 %v239, %v236
  %v312 = vpack.c.b16 %v240, %v237
  %v313 = vpack.c.b16 %v241, %v238
  %v314 = vpack.c.b16 %v245, %v242
  %v315 = vpack.c.b16 %v246, %v243
  %v316 = vpack.c.b16 %v247, %v244
  %v317 = vpack.c.b16 %v251, %v248
  %v318 = vpack.c.b16 %v252, %v249
  %v319 = vpack.c.b16 %v253, %v250
  %v320 = vpack.c.b16 %v257, %v254
  %v321 = vpack.c.b16 %v258, %v255
  %v322 = vpack.c.b16 %v259, %v256
  %v323 = vpack.c.b16 %v263, %v260
  %v324 = vpack.c.b16 %v264, %v261
  %v325 = vpack.c.b16 %v265, %v262
  %v326 = vpack.c.b16 %v269, %v266
  %v327 = vpack.c.b16 %v270, %v267
  %v328 = vpack.c.b16 %v271, %v268
  %v329 = vpack.c.b16 %v275, %v272
  %v330 = vpack.c.b16 %v276, %v273
  %v331 = vpack.c.b16 %v277, %v274
  %v332 = vpack.c.b16 %v281, %v278
  %v333 = vpack.c.b16 %v282, %v279
  %v334 = vpack.c.b16 %v283, %v280
  %v335 = vpack.c.b16 %v287, %v284
  %v336 = vpack.c.b16 %v288, %v285
  %v337 = vpack.c.b16 %v289, %v286
  %v434 = vunpack.c.l.b16 %v78
  %v435 = vunpack.c.l.b16 %v79
  %v436 = vunpack.c.l.b16 %v80
  %v437 = vunpack.c.l.b16 %v81
  %v438 = vunpack.c.l.b16 %v82
  %v439 = vunpack.c.l.b16 %v83
  %v440 = vunpack.c.l.b16 %v84
  %v441 = vunpack.c.l.b16 %v85
  %v442 = vunpack.c.l.b16 %v86
  %v443 = vunpack.c.l.b16 %v87
  %v444 = vunpack.c.l.b16 %v88
  %v445 = vunpack.c.l.b16 %v89
  %v446 = vunpack.c.l.b16 %v90
  %v447 = vunpack.c.l.b16 %v91
  %v448 = vunpack.c.l.b16 %v92
  %v449 = vunpack.c.l.b16 %v93
  %v450 = vunpack.c.l.b16 %v94
  %v451 = vunpack.c.l.b16 %v95
  %v452 = vunpack.c.l.b16 %v96
  %v453 = vunpack.c.l.b16 %v97
  %v454 = vunpack.c.l.b16 %v98
  %v455 = vunpack.c.l.b16 %v99
  %v456 = vunpack.c.l.b16 %v100
  %v457 = vunpack.c.l.b16 %v101
  %v458 = vunpack.c.l.b16 %v102
  %v459 = vunpack.c.l.b16 %v103
  %v460 = vunpack.c.l.b16 %v104
  %v461 = vunpack.c.l.b16 %v105
  %v462 = vunpack.c.l.b16 %v106
  %v463 = vunpack.c.l.b16 %v107
  %v464 = vunpack.c.l.b16 %v108
  %v465 = vunpack.c.l.b16 %v109
  %v466 = vunpack.c.l.b16 %v110
  %v467 = vunpack.c.l.b16 %v111
  %v468 = vunpack.c.l.b16 %v112
  %v469 = vunpack.c.l.b16 %v113
  %v470 = vunpack.c.l.b16 %v114
  %v471 = vunpack.c.l.b16 %v115
  %v472 = vunpack.c.l.b16 %v116
  %v473 = vunpack.c.l.b16 %v117
  %v474 = vunpack.c.l.b16 %v118
  %v475 = vunpack.c.l.b16 %v119
  %v476 = vunpack.c.l.b16 %v120
  %v477 = vunpack.c.l.b16 %v121
  %v478 = vunpack.c.l.b16 %v122
  %v479 = vunpack.c.l.b16 %v123
  %v480 = vunpack.c.l.b16 %v124
  %v481 = vunpack.c.l.b16 %v125
  %v482 = vpack.c.b16 %v435, %v434
  %v483 = vpack.c.b16 %v437, %v436
  %v484 = vpack.c.b16 %v439, %v438
  %v485 = vpack.c.b16 %v441, %v440
  %v486 = vpack.c.b16 %v443, %v442
  %v487 = vpack.c.b16 %v445, %v444
  %v488 = vpack.c.b16 %v447, %v446
  %v489 = vpack.c.b16 %v449, %v448
  %v490 = vpack.c.b16 %v451, %v450
  %v491 = vpack.c.b16 %v453, %v452
  %v492 = vpack.c.b16 %v455, %v454
  %v493 = vpack.c.b16 %v457, %v456
  %v494 = vpack.c.b16 %v459, %v458
  %v495 = vpack.c.b16 %v461, %v460
  %v496 = vpack.c.b16 %v463, %v462
  %v497 = vpack.c.b16 %v465, %v464
  %v498 = vpack.c.b16 %v467, %v466
  %v499 = vpack.c.b16 %v469, %v468
  %v500 = vpack.c.b16 %v471, %v470
  %v501 = vpack.c.b16 %v473, %v472
  %v502 = vpack.c.b16 %v475, %v474
  %v503 = vpack.c.b16 %v477, %v476
  %v504 = vpack.c.b16 %v479, %v478
  %v505 = vpack.c.b16 %v481, %v480
  %530 = vmatpush.bf16.msra.mxu0 %v489
  %531 = vmatpush.bf16.msra.mxu0 %v488
  %532 = vmatpush.bf16.msra.mxu0 %v487
  %533 = vmatpush.bf16.msra.mxu0 %v486
  %534 = vmatpush.bf16.msra.mxu0 %v485
  %535 = vmatpush.bf16.msra.mxu0 %v484
  %536 = vmatpush.bf16.msra.mxu0 %v483
  %537 = vmatpush.bf16.msra.mxu0 %v482
  %538 = vmatmul.bf16.gmra.mxu0 %v290
  %v539 = vpop.f32.mrf.mxu0
  %v540 = vadd.f32 %v128, %v539
  %v541 = vpop.f32.mrf.mxu0
  %v542 = vadd.f32 %v128, %v541
  %543 = vmatmul.bf16.gmra.mxu0 %v293
  %v544 = vpop.f32.mrf.mxu0
  %v545 = vadd.f32 %v128, %v544
  %v546 = vpop.f32.mrf.mxu0
  %v547 = vadd.f32 %v128, %v546
  %548 = vmatmul.bf16.gmra.mxu0 %v296
  %v549 = vpop.f32.mrf.mxu0
  %v550 = vadd.f32 %v128, %v549
  %v551 = vpop.f32.mrf.mxu0
  %v552 = vadd.f32 %v128, %v551
  %553 = vmatmul.bf16.gmra.mxu0 %v299
  %v554 = vpop.f32.mrf.mxu0
  %v555 = vadd.f32 %v128, %v554
  %v556 = vpop.f32.mrf.mxu0
  %v557 = vadd.f32 %v128, %v556
  %558 = vmatmul.bf16.gmra.mxu0 %v302
  %v559 = vpop.f32.mrf.mxu0
  %v560 = vadd.f32 %v128, %v559
  %v561 = vpop.f32.mrf.mxu0
  %v562 = vadd.f32 %v128, %v561
  %563 = vmatmul.bf16.gmra.mxu0 %v305
  %v564 = vpop.f32.mrf.mxu0
  %v565 = vadd.f32 %v128, %v564
  %v566 = vpop.f32.mrf.mxu0
  %v567 = vadd.f32 %v128, %v566
  %568 = vmatmul.bf16.gmra.mxu0 %v308
  %v569 = vpop.f32.mrf.mxu0
  %v570 = vadd.f32 %v128, %v569
  %v571 = vpop.f32.mrf.mxu0
  %v572 = vadd.f32 %v128, %v571
  %573 = vmatmul.bf16.gmra.mxu0 %v311
  %v574 = vpop.f32.mrf.mxu0
  %v575 = vadd.f32 %v128, %v574
  %v576 = vpop.f32.mrf.mxu0
  %v577 = vadd.f32 %v128, %v576
  %578 = vmatmul.bf16.gmra.mxu0 %v314
  %v579 = vpop.f32.mrf.mxu0
  %v580 = vadd.f32 %v128, %v579
  %v581 = vpop.f32.mrf.mxu0
  %v582 = vadd.f32 %v128, %v581
  %583 = vmatmul.bf16.gmra.mxu0 %v317
  %v584 = vpop.f32.mrf.mxu0
  %v585 = vadd.f32 %v128, %v584
  %v586 = vpop.f32.mrf.mxu0
  %v587 = vadd.f32 %v128, %v586
  %588 = vmatmul.bf16.gmra.mxu0 %v320
  %v589 = vpop.f32.mrf.mxu0
  %v590 = vadd.f32 %v128, %v589
  %v591 = vpop.f32.mrf.mxu0
  %v592 = vadd.f32 %v128, %v591
  %593 = vmatmul.bf16.gmra.mxu0 %v323
  %v594 = vpop.f32.mrf.mxu0
  %v595 = vadd.f32 %v128, %v594
  %v596 = vpop.f32.mrf.mxu0
  %v597 = vadd.f32 %v128, %v596
  %598 = vmatmul.bf16.gmra.mxu0 %v326
  %v599 = vpop.f32.mrf.mxu0
  %v600 = vadd.f32 %v128, %v599
  %v601 = vpop.f32.mrf.mxu0
  %v602 = vadd.f32 %v128, %v601
  %603 = vmatmul.bf16.gmra.mxu0 %v329
  %v604 = vpop.f32.mrf.mxu0
  %v605 = vadd.f32 %v128, %v604
  %v606 = vpop.f32.mrf.mxu0
  %v607 = vadd.f32 %v128, %v606
  %608 = vmatmul.bf16.gmra.mxu0 %v332
  %v609 = vpop.f32.mrf.mxu0
  %v610 = vadd.f32 %v128, %v609
  %v611 = vpop.f32.mrf.mxu0
  %v612 = vadd.f32 %v128, %v611
  %613 = vmatmul.bf16.gmra.mxu0 %v335
  %v614 = vpop.f32.mrf.mxu0
  %v615 = vadd.f32 %v128, %v614
  %v616 = vpop.f32.mrf.mxu0
  %v617 = vadd.f32 %v128, %v616
  %618 = vdwg.mxu0
  %619 = vmatpush.bf16.msra.mxu0 %v497
  %620 = vmatpush.bf16.msra.mxu0 %v496
  %621 = vmatpush.bf16.msra.mxu0 %v495
  %622 = vmatpush.bf16.msra.mxu0 %v494
  %623 = vmatpush.bf16.msra.mxu0 %v493
  %624 = vmatpush.bf16.msra.mxu0 %v492
  %625 = vmatpush.bf16.msra.mxu0 %v491
  %626 = vmatpush.bf16.msra.mxu0 %v490
  %627 = vmatmul.bf16.gmra.mxu0 %v291
  %v628 = vpop.f32.mrf.mxu0
  %v629 = vadd.f32 %v540, %v628
  %v630 = vpop.f32.mrf.mxu0
  %v631 = vadd.f32 %v542, %v630
  %632 = vmatmul.bf16.gmra.mxu0 %v294
  %v633 = vpop.f32.mrf.mxu0
  %v634 = vadd.f32 %v545, %v633
  %v635 = vpop.f32.mrf.mxu0
  %v636 = vadd.f32 %v547, %v635
  %637 = vmatmul.bf16.gmra.mxu0 %v297
  %v638 = vpop.f32.mrf.mxu0
  %v639 = vadd.f32 %v550, %v638
  %v640 = vpop.f32.mrf.mxu0
  %v641 = vadd.f32 %v552, %v640
  %642 = vmatmul.bf16.gmra.mxu0 %v300
  %v643 = vpop.f32.mrf.mxu0
  %v644 = vadd.f32 %v555, %v643
  %v645 = vpop.f32.mrf.mxu0
  %v646 = vadd.f32 %v557, %v645
  %647 = vmatmul.bf16.gmra.mxu0 %v303
  %v648 = vpop.f32.mrf.mxu0
  %v649 = vadd.f32 %v560, %v648
  %v650 = vpop.f32.mrf.mxu0
  %v651 = vadd.f32 %v562, %v650
  %652 = vmatmul.bf16.gmra.mxu0 %v306
  %v653 = vpop.f32.mrf.mxu0
  %v654 = vadd.f32 %v565, %v653
  %v655 = vpop.f32.mrf.mxu0
  %v656 = vadd.f32 %v567, %v655
  %657 = vmatmul.bf16.gmra.mxu0 %v309
  %v658 = vpop.f32.mrf.mxu0
  %v659 = vadd.f32 %v570, %v658
  %v660 = vpop.f32.mrf.mxu0
  %v661 = vadd.f32 %v572, %v660
  %662 = vmatmul.bf16.gmra.mxu0 %v312
  %v663 = vpop.f32.mrf.mxu0
  %v664 = vadd.f32 %v575, %v663
  %v665 = vpop.f32.mrf.mxu0
  %v666 = vadd.f32 %v577, %v665
  %667 = vmatmul.bf16.gmra.mxu0 %v315
  %v668 = vpop.f32.mrf.mxu0
  %v669 = vadd.f32 %v580, %v668
  %v670 = vpop.f32.mrf.mxu0
  %v671 = vadd.f32 %v582, %v670
  %672 = vmatmul.bf16.gmra.mxu0 %v318
  %v673 = vpop.f32.mrf.mxu0
  %v674 = vadd.f32 %v585, %v673
  %v675 = vpop.f32.mrf.mxu0
  %v676 = vadd.f32 %v587, %v675
  %677 = vmatmul.bf16.gmra.mxu0 %v321
  %v678 = vpop.f32.mrf.mxu0
  %v679 = vadd.f32 %v590, %v678
  %v680 = vpop.f32.mrf.mxu0
  %v681 = vadd.f32 %v592, %v680
  %682 = vmatmul.bf16.gmra.mxu0 %v324
  %v683 = vpop.f32.mrf.mxu0
  %v684 = vadd.f32 %v595, %v683
  %v685 = vpop.f32.mrf.mxu0
  %v686 = vadd.f32 %v597, %v685
  %687 = vmatmul.bf16.gmra.mxu0 %v327
  %v688 = vpop.f32.mrf.mxu0
  %v689 = vadd.f32 %v600, %v688
  %v690 = vpop.f32.mrf.mxu0
  %v691 = vadd.f32 %v602, %v690
  %692 = vmatmul.bf16.gmra.mxu0 %v330
  %v693 = vpop.f32.mrf.mxu0
  %v694 = vadd.f32 %v605, %v693
  %v695 = vpop.f32.mrf.mxu0
  %v696 = vadd.f32 %v607, %v695
  %697 = vmatmul.bf16.gmra.mxu0 %v333
  %v698 = vpop.f32.mrf.mxu0
  %v699 = vadd.f32 %v610, %v698
  %v700 = vpop.f32.mrf.mxu0
  %v701 = vadd.f32 %v612, %v700
  %702 = vmatmul.bf16.gmra.mxu0 %v336
  %v703 = vpop.f32.mrf.mxu0
  %v704 = vadd.f32 %v615, %v703
  %v705 = vpop.f32.mrf.mxu0
  %v706 = vadd.f32 %v617, %v705
  %707 = vdwg.mxu0
  %708 = vmatpush.bf16.msra.mxu0 %v505
  %709 = vmatpush.bf16.msra.mxu0 %v504
  %710 = vmatpush.bf16.msra.mxu0 %v503
  %711 = vmatpush.bf16.msra.mxu0 %v502
  %712 = vmatpush.bf16.msra.mxu0 %v501
  %713 = vmatpush.bf16.msra.mxu0 %v500
  %714 = vmatpush.bf16.msra.mxu0 %v499
  %715 = vmatpush.bf16.msra.mxu0 %v498
  %716 = vmatmul.bf16.gmra.mxu0 %v292
  %v717 = vpop.f32.mrf.mxu0
  %v718 = vadd.f32 %v629, %v717
  %v719 = vpop.f32.mrf.mxu0
  %v720 = vadd.f32 %v631, %v719
  %721 = vmatmul.bf16.gmra.mxu0 %v295
  %v722 = vpop.f32.mrf.mxu0
  %v723 = vadd.f32 %v634, %v722
  %v724 = vpop.f32.mrf.mxu0
  %v725 = vadd.f32 %v636, %v724
  %726 = vmatmul.bf16.gmra.mxu0 %v298
  %v727 = vpop.f32.mrf.mxu0
  %v728 = vadd.f32 %v639, %v727
  %v729 = vpop.f32.mrf.mxu0
  %v730 = vadd.f32 %v641, %v729
  %731 = vmatmul.bf16.gmra.mxu0 %v301
  %v732 = vpop.f32.mrf.mxu0
  %v733 = vadd.f32 %v644, %v732
  %v734 = vpop.f32.mrf.mxu0
  %v735 = vadd.f32 %v646, %v734
  %736 = vmatmul.bf16.gmra.mxu0 %v304
  %v737 = vpop.f32.mrf.mxu0
  %v738 = vadd.f32 %v649, %v737
  %v739 = vpop.f32.mrf.mxu0
  %v740 = vadd.f32 %v651, %v739
  %741 = vmatmul.bf16.gmra.mxu0 %v307
  %v742 = vpop.f32.mrf.mxu0
  %v743 = vadd.f32 %v654, %v742
  %v744 = vpop.f32.mrf.mxu0
  %v745 = vadd.f32 %v656, %v744
  %746 = vmatmul.bf16.gmra.mxu0 %v310
  %v747 = vpop.f32.mrf.mxu0
  %v748 = vadd.f32 %v659, %v747
  %v749 = vpop.f32.mrf.mxu0
  %v750 = vadd.f32 %v661, %v749
  %751 = vmatmul.bf16.gmra.mxu0 %v313
  %v752 = vpop.f32.mrf.mxu0
  %v753 = vadd.f32 %v664, %v752
  %v754 = vpop.f32.mrf.mxu0
  %v755 = vadd.f32 %v666, %v754
  %756 = vmatmul.bf16.gmra.mxu0 %v316
  %v757 = vpop.f32.mrf.mxu0
  %v758 = vadd.f32 %v669, %v757
  %v759 = vpop.f32.mrf.mxu0
  %v760 = vadd.f32 %v671, %v759
  %761 = vmatmul.bf16.gmra.mxu0 %v319
  %v762 = vpop.f32.mrf.mxu0
  %v763 = vadd.f32 %v674, %v762
  %v764 = vpop.f32.mrf.mxu0
  %v765 = vadd.f32 %v676, %v764
  %766 = vmatmul.bf16.gmra.mxu0 %v322
  %v767 = vpop.f32.mrf.mxu0
  %v768 = vadd.f32 %v679, %v767
  %v769 = vpop.f32.mrf.mxu0
  %v770 = vadd.f32 %v681, %v769
  %771 = vmatmul.bf16.gmra.mxu0 %v325
  %v772 = vpop.f32.mrf.mxu0
  %v773 = vadd.f32 %v684, %v772
  %v774 = vpop.f32.mrf.mxu0
  %v775 = vadd.f32 %v686, %v774
  %776 = vmatmul.bf16.gmra.mxu0 %v328
  %v777 = vpop.f32.mrf.mxu0
  %v778 = vadd.f32 %v689, %v777
  %v779 = vpop.f32.mrf.mxu0
  %v780 = vadd.f32 %v691, %v779
  %781 = vmatmul.bf16.gmra.mxu0 %v331
  %v782 = vpop.f32.mrf.mxu0
  %v783 = vadd.f32 %v694, %v782
  %v784 = vpop.f32.mrf.mxu0
  %v785 = vadd.f32 %v696, %v784
  %786 = vmatmul.bf16.gmra.mxu0 %v334
  %v787 = vpop.f32.mrf.mxu0
  %v788 = vadd.f32 %v699, %v787
  %v789 = vpop.f32.mrf.mxu0
  %v790 = vadd.f32 %v701, %v789
  %791 = vmatmul.bf16.gmra.mxu0 %v337
  %v792 = vpop.f32.mrf.mxu0
  %v793 = vadd.f32 %v704, %v792
  %v794 = vpop.f32.mrf.mxu0
  %v795 = vadd.f32 %v706, %v794
  %796 = vdwg.mxu0
  %v797 = vmax.f32 %v718, 0.0
  %v798 = vmax.f32 %v720, 0.0
  %v799 = vmax.f32 %v723, 0.0
  %v800 = vmax.f32 %v725, 0.0
  %v801 = vmax.f32 %v728, 0.0
  %v802 = vmax.f32 %v730, 0.0
  %v803 = vmax.f32 %v733, 0.0
  %v804 = vmax.f32 %v735, 0.0
  %v805 = vmax.f32 %v738, 0.0
  %v806 = vmax.f32 %v740, 0.0
  %v807 = vmax.f32 %v743, 0.0
  %v808 = vmax.f32 %v745, 0.0
  %v809 = vmax.f32 %v748, 0.0
  %v810 = vmax.f32 %v750, 0.0
  %v811 = vmax.f32 %v753, 0.0
  %v812 = vmax.f32 %v755, 0.0
  %v813 = vmax.f32 %v758, 0.0
  %v814 = vmax.f32 %v760, 0.0
  %v815 = vmax.f32 %v763, 0.0
  %v816 = vmax.f32 %v765, 0.0
  %v817 = vmax.f32 %v768, 0.0
  %v818 = vmax.f32 %v770, 0.0
  %v819 = vmax.f32 %v773, 0.0
  %v820 = vmax.f32 %v775, 0.0
  %v821 = vmax.f32 %v778, 0.0
  %v822 = vmax.f32 %v780, 0.0
  %v823 = vmax.f32 %v783, 0.0
  %v824 = vmax.f32 %v785, 0.0
  %v825 = vmax.f32 %v788, 0.0
  %v826 = vmax.f32 %v790, 0.0
  %v827 = vmax.f32 %v793, 0.0
  %v828 = vmax.f32 %v795, 0.0
  %829 = vst [vmem:[%s3] sm:$0xff] %v797
  %830 = vst [vmem:[%s3 + $0x8] sm:$0xff] %v798
  %831 = vst [vmem:[%s3 + $0x10] sm:$0xff] %v799
  %832 = vst [vmem:[%s3 + $0x18] sm:$0xff] %v800
  %833 = vst [vmem:[%s3 + $0x20] sm:$0xff] %v801
  %834 = vst [vmem:[%s3 + $0x28] sm:$0xff] %v802
  %835 = vst [vmem:[%s3 + $0x30] sm:$0xff] %v803
  %836 = vst [vmem:[%s3 + $0x38] sm:$0xff] %v804
  %837 = vst [vmem:[%s3 + $0x40] sm:$0xff] %v805
  %838 = vst [vmem:[%s3 + $0x48] sm:$0xff] %v806
  %839 = vst [vmem:[%s3 + $0x50] sm:$0xff] %v807
  %840 = vst [vmem:[%s3 + $0x58] sm:$0xff] %v808
  %841 = vst [vmem:[%s3 + $0x60] sm:$0xff] %v809
  %842 = vst [vmem:[%s3 + $0x68] sm:$0xff] %v810
  %843 = vst [vmem:[%s3 + $0x70] sm:$0xff] %v811
  %844 = vst [vmem:[%s3 + $0x78] sm:$0xff] %v812
  %845 = vst [vmem:[%s3 + $0x80] sm:$0xff] %v813
  %846 = vst [vmem:[%s3 + $0x88] sm:$0xff] %v814
  %847 = vst [vmem:[%s3 + $0x90] sm:$0xff] %v815
  %848 = vst [vmem:[%s3 + $0x98] sm:$0xff] %v816
  %849 = vst [vmem:[%s3 + $0xa0] sm:$0xff] %v817
  %850 = vst [vmem:[%s3 + $0xa8] sm:$0xff] %v818
  %851 = vst [vmem:[%s3 + $0xb0] sm:$0xff] %v819
  %852 = vst [vmem:[%s3 + $0xb8] sm:$0xff] %v820
  %853 = vst [vmem:[%s3 + $0xc0] sm:$0xff] %v821
  %854 = vst [vmem:[%s3 + $0xc8] sm:$0xff] %v822
  %855 = vst [vmem:[%s3 + $0xd0] sm:$0xff] %v823
  %856 = vst [vmem:[%s3 + $0xd8] sm:$0xff] %v824
  %857 = vst [vmem:[%s3 + $0xe0] sm:$0xff] %v825
  %858 = vst [vmem:[%s3 + $0xe8] sm:$0xff] %v826
  %859 = vst [vmem:[%s3 + $0xf0] sm:$0xff] %v827
  %860 = vst [vmem:[%s3 + $0xf8] sm:$0xff] %v828
  // Predicated region
  $region14: #{_unet_forward.12} parent=0 // pred_check
    _
  $region15: #{_unet_forward.12} parent=0 // pred_check_branch
    %862 = sbr.rel (0) target = $region17
  $region16: #{_unet_forward.12} parent=0 // pred_region
    _
  $region17: #{_unet_forward.12} parent=0 // pred_fallthru
    _
  // Predicated region
  $region18: #{_unet_forward.12} parent=0 // pred_check
    _
  $region19: #{_unet_forward.12} parent=0 // pred_check_branch
    %864 = sbr.rel (0) target = $region21
  $region20: #{_unet_forward.12} parent=0 // pred_region
    _
  $region21: #{_unet_forward.12} parent=0 // pred_fallthru
    _

// kernel: _unet_forward.13
$region0: #{_unet_forward.13}
  #allocation0 [shape = 'u32[]', space=smem, size = 0x4, offset = 0x4, fixed_abs, tag = 'smem constant byte address 0x4 - core index']
  #allocation1 [shape = 'u32[72,128]{1,0:T(1,128)}', space=vmem, size = 0x9000, scoped, tag = 'internal scratch']
  %s0 = inlined_call_operand.vmem [shape: bf16[256,256], index: 0, kind: input, shape index: {}]
  %s1 = inlined_call_operand.vmem [shape: bf16[256,128], index: 1, kind: input, shape index: {}]
  %s2 = inlined_call_operand.vmem [shape: f32[1,128], index: 2, kind: input, shape index: {}]
  %s3 = inlined_call_operand.vmem [shape: f32[256,128], index: 3, kind: output, shape index: {}]
  %s4 = sld [smem:[#allocation0]]
  $region22: #{_unet_forward.13} parent=0
    _
  %s6 = ssub.s32 1, %s4
  %s7 = scalar_select 0, %s6, %s4
  // Predicated region
  $region2: #{_unet_forward.13} parent=0 // pred_check
    _
  $region3: #{_unet_forward.13} parent=0 // pred_check_branch
    %9 = sbr.rel (0) target = $region5
  $region4: #{_unet_forward.13} parent=0 // pred_region
    _
  $region5: #{_unet_forward.13} parent=0 // pred_fallthru
    _
  // Predicated region
  $region6: #{_unet_forward.13} parent=0 // pred_check
    _
  $region7: #{_unet_forward.13} parent=0 // pred_check_branch
    %11 = sbr.rel (0) target = $region9
  $region8: #{_unet_forward.13} parent=0 // pred_region
    _
  $region9: #{_unet_forward.13} parent=0 // pred_fallthru
    _
  // Predicated region
  $region10: #{_unet_forward.13} parent=0 // pred_check
    _
  $region11: #{_unet_forward.13} parent=0 // pred_check_branch
    %13 = sbr.rel (0) target = $region13
  $region12: #{_unet_forward.13} parent=0 // pred_region
    _
  $region13: #{_unet_forward.13} parent=0 // pred_fallthru
    _
  %v14 = vld [vmem:[%s0] sm:$0xff]
  %v15 = vld [vmem:[%s0 + $0x8] sm:$0xff]
  %v16 = vld [vmem:[%s0 + $0x10] sm:$0xff]
  %v17 = vld [vmem:[%s0 + $0x18] sm:$0xff]
  %v18 = vld [vmem:[%s0 + $0x20] sm:$0xff]
  %v19 = vld [vmem:[%s0 + $0x28] sm:$0xff]
  %v20 = vld [vmem:[%s0 + $0x30] sm:$0xff]
  %v21 = vld [vmem:[%s0 + $0x38] sm:$0xff]
  %v22 = vld [vmem:[%s0 + $0x40] sm:$0xff]
  %v23 = vld [vmem:[%s0 + $0x48] sm:$0xff]
  %v24 = vld [vmem:[%s0 + $0x50] sm:$0xff]
  %v25 = vld [vmem:[%s0 + $0x58] sm:$0xff]
  %v26 = vld [vmem:[%s0 + $0x60] sm:$0xff]
  %v27 = vld [vmem:[%s0 + $0x68] sm:$0xff]
  %v28 = vld [vmem:[%s0 + $0x70] sm:$0xff]
  %v29 = vld [vmem:[%s0 + $0x78] sm:$0xff]
  %v30 = vld [vmem:[%s0 + $0x80] sm:$0xff]
  %v31 = vld [vmem:[%s0 + $0x88] sm:$0xff]
  %v32 = vld [vmem:[%s0 + $0x90] sm:$0xff]
  %v33 = vld [vmem:[%s0 + $0x98] sm:$0xff]
  %v34 = vld [vmem:[%s0 + $0xa0] sm:$0xff]
  %v35 = vld [vmem:[%s0 + $0xa8] sm:$0xff]
  %v36 = vld [vmem:[%s0 + $0xb0] sm:$0xff]
  %v37 = vld [vmem:[%s0 + $0xb8] sm:$0xff]
  %v38 = vld [vmem:[%s0 + $0xc0] sm:$0xff]
  %v39 = vld [vmem:[%s0 + $0xc8] sm:$0xff]
  %v40 = vld [vmem:[%s0 + $0xd0] sm:$0xff]
  %v41 = vld [vmem:[%s0 + $0xd8] sm:$0xff]
  %v42 = vld [vmem:[%s0 + $0xe0] sm:$0xff]
  %v43 = vld [vmem:[%s0 + $0xe8] sm:$0xff]
  %v44 = vld [vmem:[%s0 + $0xf0] sm:$0xff]
  %v45 = vld [vmem:[%s0 + $0xf8] sm:$0xff]
  %v46 = vld [vmem:[%s1] sm:$0xf]
  %v47 = vld [vmem:[%s1 + $0x4] sm:$0xf]
  %v48 = vld [vmem:[%s1 + $0x8] sm:$0xf]
  %v49 = vld [vmem:[%s1 + $0xc] sm:$0xf]
  %v50 = vld [vmem:[%s1 + $0x10] sm:$0xf]
  %v51 = vld [vmem:[%s1 + $0x14] sm:$0xf]
  %v52 = vld [vmem:[%s1 + $0x18] sm:$0xf]
  %v53 = vld [vmem:[%s1 + $0x1c] sm:$0xf]
  %v54 = vld [vmem:[%s1 + $0x20] sm:$0xf]
  %v55 = vld [vmem:[%s1 + $0x24] sm:$0xf]
  %v56 = vld [vmem:[%s1 + $0x28] sm:$0xf]
  %v57 = vld [vmem:[%s1 + $0x2c] sm:$0xf]
  %v58 = vld [vmem:[%s1 + $0x30] sm:$0xf]
  %v59 = vld [vmem:[%s1 + $0x34] sm:$0xf]
  %v60 = vld [vmem:[%s1 + $0x38] sm:$0xf]
  %v61 = vld [vmem:[%s1 + $0x3c] sm:$0xf]
  %v62 = vld [vmem:[%s1 + $0x40] sm:$0xf]
  %v63 = vld [vmem:[%s1 + $0x44] sm:$0xf]
  %v64 = vld [vmem:[%s1 + $0x48] sm:$0xf]
  %v65 = vld [vmem:[%s1 + $0x4c] sm:$0xf]
  %v66 = vld [vmem:[%s1 + $0x50] sm:$0xf]
  %v67 = vld [vmem:[%s1 + $0x54] sm:$0xf]
  %v68 = vld [vmem:[%s1 + $0x58] sm:$0xf]
  %v69 = vld [vmem:[%s1 + $0x5c] sm:$0xf]
  %v70 = vld [vmem:[%s1 + $0x60] sm:$0xf]
  %v71 = vld [vmem:[%s1 + $0x64] sm:$0xf]
  %v72 = vld [vmem:[%s1 + $0x68] sm:$0xf]
  %v73 = vld [vmem:[%s1 + $0x6c] sm:$0xf]
  %v74 = vld [vmem:[%s1 + $0x70] sm:$0xf]
  %v75 = vld [vmem:[%s1 + $0x74] sm:$0xf]
  %v76 = vld [vmem:[%s1 + $0x78] sm:$0xf]
  %v77 = vld [vmem:[%s1 + $0x7c] sm:$0xf]
  %v78 = vld [vmem:[%s2] sm:$0x1]
  %v80 = vperm.slane %v78, 0
  %v114 = vunpack.c.l.b16 %v14
  %v115 = vunpack.c.h.b16 %v14
  %v116 = vunpack.c.l.b16 %v15
  %v117 = vunpack.c.h.b16 %v15
  %v118 = vunpack.c.l.b16 %v16
  %v119 = vunpack.c.h.b16 %v16
  %v120 = vunpack.c.l.b16 %v17
  %v121 = vunpack.c.h.b16 %v17
  %v122 = vunpack.c.l.b16 %v18
  %v123 = vunpack.c.h.b16 %v18
  %v124 = vunpack.c.l.b16 %v19
  %v125 = vunpack.c.h.b16 %v19
  %v126 = vunpack.c.l.b16 %v20
  %v127 = vunpack.c.h.b16 %v20
  %v128 = vunpack.c.l.b16 %v21
  %v129 = vunpack.c.h.b16 %v21
  %v130 = vunpack.c.l.b16 %v22
  %v131 = vunpack.c.h.b16 %v22
  %v132 = vunpack.c.l.b16 %v23
  %v133 = vunpack.c.h.b16 %v23
  %v134 = vunpack.c.l.b16 %v24
  %v135 = vunpack.c.h.b16 %v24
  %v136 = vunpack.c.l.b16 %v25
  %v137 = vunpack.c.h.b16 %v25
  %v138 = vunpack.c.l.b16 %v26
  %v139 = vunpack.c.h.b16 %v26
  %v140 = vunpack.c.l.b16 %v27
  %v141 = vunpack.c.h.b16 %v27
  %v142 = vunpack.c.l.b16 %v28
  %v143 = vunpack.c.h.b16 %v28
  %v144 = vunpack.c.l.b16 %v29
  %v145 = vunpack.c.h.b16 %v29
  %v146 = vunpack.c.l.b16 %v30
  %v147 = vunpack.c.h.b16 %v30
  %v148 = vunpack.c.l.b16 %v31
  %v149 = vunpack.c.h.b16 %v31
  %v150 = vunpack.c.l.b16 %v32
  %v151 = vunpack.c.h.b16 %v32
  %v152 = vunpack.c.l.b16 %v33
  %v153 = vunpack.c.h.b16 %v33
  %v154 = vunpack.c.l.b16 %v34
  %v155 = vunpack.c.h.b16 %v34
  %v156 = vunpack.c.l.b16 %v35
  %v157 = vunpack.c.h.b16 %v35
  %v158 = vunpack.c.l.b16 %v36
  %v159 = vunpack.c.h.b16 %v36
  %v160 = vunpack.c.l.b16 %v37
  %v161 = vunpack.c.h.b16 %v37
  %v162 = vunpack.c.l.b16 %v38
  %v163 = vunpack.c.h.b16 %v38
  %v164 = vunpack.c.l.b16 %v39
  %v165 = vunpack.c.h.b16 %v39
  %v166 = vunpack.c.l.b16 %v40
  %v167 = vunpack.c.h.b16 %v40
  %v168 = vunpack.c.l.b16 %v41
  %v169 = vunpack.c.h.b16 %v41
  %v170 = vunpack.c.l.b16 %v42
  %v171 = vunpack.c.h.b16 %v42
  %v172 = vunpack.c.l.b16 %v43
  %v173 = vunpack.c.h.b16 %v43
  %v174 = vunpack.c.l.b16 %v44
  %v175 = vunpack.c.h.b16 %v44
  %v176 = vunpack.c.l.b16 %v45
  %v177 = vunpack.c.h.b16 %v45
  %v178 = vpack.c.b16 %v116, %v114
  %v179 = vpack.c.b16 %v117, %v115
  %v180 = vpack.c.b16 %v120, %v118
  %v181 = vpack.c.b16 %v121, %v119
  %v182 = vpack.c.b16 %v124, %v122
  %v183 = vpack.c.b16 %v125, %v123
  %v184 = vpack.c.b16 %v128, %v126
  %v185 = vpack.c.b16 %v129, %v127
  %v186 = vpack.c.b16 %v132, %v130
  %v187 = vpack.c.b16 %v133, %v131
  %v188 = vpack.c.b16 %v136, %v134
  %v189 = vpack.c.b16 %v137, %v135
  %v190 = vpack.c.b16 %v140, %v138
  %v191 = vpack.c.b16 %v141, %v139
  %v192 = vpack.c.b16 %v144, %v142
  %v193 = vpack.c.b16 %v145, %v143
  %v194 = vpack.c.b16 %v148, %v146
  %v195 = vpack.c.b16 %v149, %v147
  %v196 = vpack.c.b16 %v152, %v150
  %v197 = vpack.c.b16 %v153, %v151
  %v198 = vpack.c.b16 %v156, %v154
  %v199 = vpack.c.b16 %v157, %v155
  %v200 = vpack.c.b16 %v160, %v158
  %v201 = vpack.c.b16 %v161, %v159
  %v202 = vpack.c.b16 %v164, %v162
  %v203 = vpack.c.b16 %v165, %v163
  %v204 = vpack.c.b16 %v168, %v166
  %v205 = vpack.c.b16 %v169, %v167
  %v206 = vpack.c.b16 %v172, %v170
  %v207 = vpack.c.b16 %v173, %v171
  %v208 = vpack.c.b16 %v176, %v174
  %v209 = vpack.c.b16 %v177, %v175
  %v274 = vunpack.c.l.b16 %v46
  %v275 = vunpack.c.l.b16 %v47
  %v276 = vunpack.c.l.b16 %v48
  %v277 = vunpack.c.l.b16 %v49
  %v278 = vunpack.c.l.b16 %v50
  %v279 = vunpack.c.l.b16 %v51
  %v280 = vunpack.c.l.b16 %v52
  %v281 = vunpack.c.l.b16 %v53
  %v282 = vunpack.c.l.b16 %v54
  %v283 = vunpack.c.l.b16 %v55
  %v284 = vunpack.c.l.b16 %v56
  %v285 = vunpack.c.l.b16 %v57
  %v286 = vunpack.c.l.b16 %v58
  %v287 = vunpack.c.l.b16 %v59
  %v288 = vunpack.c.l.b16 %v60
  %v289 = vunpack.c.l.b16 %v61
  %v290 = vunpack.c.l.b16 %v62
  %v291 = vunpack.c.l.b16 %v63
  %v292 = vunpack.c.l.b16 %v64
  %v293 = vunpack.c.l.b16 %v65
  %v294 = vunpack.c.l.b16 %v66
  %v295 = vunpack.c.l.b16 %v67
  %v296 = vunpack.c.l.b16 %v68
  %v297 = vunpack.c.l.b16 %v69
  %v298 = vunpack.c.l.b16 %v70
  %v299 = vunpack.c.l.b16 %v71
  %v300 = vunpack.c.l.b16 %v72
  %v301 = vunpack.c.l.b16 %v73
  %v302 = vunpack.c.l.b16 %v74
  %v303 = vunpack.c.l.b16 %v75
  %v304 = vunpack.c.l.b16 %v76
  %v305 = vunpack.c.l.b16 %v77
  %v306 = vpack.c.b16 %v275, %v274
  %v307 = vpack.c.b16 %v277, %v276
  %v308 = vpack.c.b16 %v279, %v278
  %v309 = vpack.c.b16 %v281, %v280
  %v310 = vpack.c.b16 %v283, %v282
  %v311 = vpack.c.b16 %v285, %v284
  %v312 = vpack.c.b16 %v287, %v286
  %v313 = vpack.c.b16 %v289, %v288
  %v314 = vpack.c.b16 %v291, %v290
  %v315 = vpack.c.b16 %v293, %v292
  %v316 = vpack.c.b16 %v295, %v294
  %v317 = vpack.c.b16 %v297, %v296
  %v318 = vpack.c.b16 %v299, %v298
  %v319 = vpack.c.b16 %v301, %v300
  %v320 = vpack.c.b16 %v303, %v302
  %v321 = vpack.c.b16 %v305, %v304
  %338 = vmatpush.bf16.msra.mxu0 %v313
  %339 = vmatpush.bf16.msra.mxu0 %v312
  %340 = vmatpush.bf16.msra.mxu0 %v311
  %341 = vmatpush.bf16.msra.mxu0 %v310
  %342 = vmatpush.bf16.msra.mxu0 %v309
  %343 = vmatpush.bf16.msra.mxu0 %v308
  %344 = vmatpush.bf16.msra.mxu0 %v307
  %345 = vmatpush.bf16.msra.mxu0 %v306
  %346 = vmatmul.bf16.gmra.mxu0 %v178
  %v347 = vpop.f32.mrf.mxu0
  %v348 = vadd.f32 %v80, %v347
  %v349 = vpop.f32.mrf.mxu0
  %v350 = vadd.f32 %v80, %v349
  %351 = vmatmul.bf16.gmra.mxu0 %v180
  %v352 = vpop.f32.mrf.mxu0
  %v353 = vadd.f32 %v80, %v352
  %v354 = vpop.f32.mrf.mxu0
  %v355 = vadd.f32 %v80, %v354
  %356 = vmatmul.bf16.gmra.mxu0 %v182
  %v357 = vpop.f32.mrf.mxu0
  %v358 = vadd.f32 %v80, %v357
  %v359 = vpop.f32.mrf.mxu0
  %v360 = vadd.f32 %v80, %v359
  %361 = vmatmul.bf16.gmra.mxu0 %v184
  %v362 = vpop.f32.mrf.mxu0
  %v363 = vadd.f32 %v80, %v362
  %v364 = vpop.f32.mrf.mxu0
  %v365 = vadd.f32 %v80, %v364
  %366 = vmatmul.bf16.gmra.mxu0 %v186
  %v367 = vpop.f32.mrf.mxu0
  %v368 = vadd.f32 %v80, %v367
  %v369 = vpop.f32.mrf.mxu0
  %v370 = vadd.f32 %v80, %v369
  %371 = vmatmul.bf16.gmra.mxu0 %v188
  %v372 = vpop.f32.mrf.mxu0
  %v373 = vadd.f32 %v80, %v372
  %v374 = vpop.f32.mrf.mxu0
  %v375 = vadd.f32 %v80, %v374
  %376 = vmatmul.bf16.gmra.mxu0 %v190
  %v377 = vpop.f32.mrf.mxu0
  %v378 = vadd.f32 %v80, %v377
  %v379 = vpop.f32.mrf.mxu0
  %v380 = vadd.f32 %v80, %v379
  %381 = vmatmul.bf16.gmra.mxu0 %v192
  %v382 = vpop.f32.mrf.mxu0
  %v383 = vadd.f32 %v80, %v382
  %v384 = vpop.f32.mrf.mxu0
  %v385 = vadd.f32 %v80, %v384
  %386 = vmatmul.bf16.gmra.mxu0 %v194
  %v387 = vpop.f32.mrf.mxu0
  %v388 = vadd.f32 %v80, %v387
  %v389 = vpop.f32.mrf.mxu0
  %v390 = vadd.f32 %v80, %v389
  %391 = vmatmul.bf16.gmra.mxu0 %v196
  %v392 = vpop.f32.mrf.mxu0
  %v393 = vadd.f32 %v80, %v392
  %v394 = vpop.f32.mrf.mxu0
  %v395 = vadd.f32 %v80, %v394
  %396 = vmatmul.bf16.gmra.mxu0 %v198
  %v397 = vpop.f32.mrf.mxu0
  %v398 = vadd.f32 %v80, %v397
  %v399 = vpop.f32.mrf.mxu0
  %v400 = vadd.f32 %v80, %v399
  %401 = vmatmul.bf16.gmra.mxu0 %v200
  %v402 = vpop.f32.mrf.mxu0
  %v403 = vadd.f32 %v80, %v402
  %v404 = vpop.f32.mrf.mxu0
  %v405 = vadd.f32 %v80, %v404
  %406 = vmatmul.bf16.gmra.mxu0 %v202
  %v407 = vpop.f32.mrf.mxu0
  %v408 = vadd.f32 %v80, %v407
  %v409 = vpop.f32.mrf.mxu0
  %v410 = vadd.f32 %v80, %v409
  %411 = vmatmul.bf16.gmra.mxu0 %v204
  %v412 = vpop.f32.mrf.mxu0
  %v413 = vadd.f32 %v80, %v412
  %v414 = vpop.f32.mrf.mxu0
  %v415 = vadd.f32 %v80, %v414
  %416 = vmatmul.bf16.gmra.mxu0 %v206
  %v417 = vpop.f32.mrf.mxu0
  %v418 = vadd.f32 %v80, %v417
  %v419 = vpop.f32.mrf.mxu0
  %v420 = vadd.f32 %v80, %v419
  %421 = vmatmul.bf16.gmra.mxu0 %v208
  %v422 = vpop.f32.mrf.mxu0
  %v423 = vadd.f32 %v80, %v422
  %v424 = vpop.f32.mrf.mxu0
  %v425 = vadd.f32 %v80, %v424
  %426 = vdwg.mxu0
  %427 = vmatpush.bf16.msra.mxu0 %v321
  %428 = vmatpush.bf16.msra.mxu0 %v320
  %429 = vmatpush.bf16.msra.mxu0 %v319
  %430 = vmatpush.bf16.msra.mxu0 %v318
  %431 = vmatpush.bf16.msra.mxu0 %v317
  %432 = vmatpush.bf16.msra.mxu0 %v316
  %433 = vmatpush.bf16.msra.mxu0 %v315
  %434 = vmatpush.bf16.msra.mxu0 %v314
  %435 = vmatmul.bf16.gmra.mxu0 %v179
  %v436 = vpop.f32.mrf.mxu0
  %v437 = vadd.f32 %v348, %v436
  %v438 = vpop.f32.mrf.mxu0
  %v439 = vadd.f32 %v350, %v438
  %440 = vmatmul.bf16.gmra.mxu0 %v181
  %v441 = vpop.f32.mrf.mxu0
  %v442 = vadd.f32 %v353, %v441
  %v443 = vpop.f32.mrf.mxu0
  %v444 = vadd.f32 %v355, %v443
  %445 = vmatmul.bf16.gmra.mxu0 %v183
  %v446 = vpop.f32.mrf.mxu0
  %v447 = vadd.f32 %v358, %v446
  %v448 = vpop.f32.mrf.mxu0
  %v449 = vadd.f32 %v360, %v448
  %450 = vmatmul.bf16.gmra.mxu0 %v185
  %v451 = vpop.f32.mrf.mxu0
  %v452 = vadd.f32 %v363, %v451
  %v453 = vpop.f32.mrf.mxu0
  %v454 = vadd.f32 %v365, %v453
  %455 = vmatmul.bf16.gmra.mxu0 %v187
  %v456 = vpop.f32.mrf.mxu0
  %v457 = vadd.f32 %v368, %v456
  %v458 = vpop.f32.mrf.mxu0
  %v459 = vadd.f32 %v370, %v458
  %460 = vmatmul.bf16.gmra.mxu0 %v189
  %v461 = vpop.f32.mrf.mxu0
  %v462 = vadd.f32 %v373, %v461
  %v463 = vpop.f32.mrf.mxu0
  %v464 = vadd.f32 %v375, %v463
  %465 = vmatmul.bf16.gmra.mxu0 %v191
  %v466 = vpop.f32.mrf.mxu0
  %v467 = vadd.f32 %v378, %v466
  %v468 = vpop.f32.mrf.mxu0
  %v469 = vadd.f32 %v380, %v468
  %470 = vmatmul.bf16.gmra.mxu0 %v193
  %v471 = vpop.f32.mrf.mxu0
  %v472 = vadd.f32 %v383, %v471
  %v473 = vpop.f32.mrf.mxu0
  %v474 = vadd.f32 %v385, %v473
  %475 = vmatmul.bf16.gmra.mxu0 %v195
  %v476 = vpop.f32.mrf.mxu0
  %v477 = vadd.f32 %v388, %v476
  %v478 = vpop.f32.mrf.mxu0
  %v479 = vadd.f32 %v390, %v478
  %480 = vmatmul.bf16.gmra.mxu0 %v197
  %v481 = vpop.f32.mrf.mxu0
  %v482 = vadd.f32 %v393, %v481
  %v483 = vpop.f32.mrf.mxu0
  %v484 = vadd.f32 %v395, %v483
  %485 = vmatmul.bf16.gmra.mxu0 %v199
  %v486 = vpop.f32.mrf.mxu0
  %v487 = vadd.f32 %v398, %v486
  %v488 = vpop.f32.mrf.mxu0
  %v489 = vadd.f32 %v400, %v488
  %490 = vmatmul.bf16.gmra.mxu0 %v201
  %v491 = vpop.f32.mrf.mxu0
  %v492 = vadd.f32 %v403, %v491
  %v493 = vpop.f32.mrf.mxu0
  %v494 = vadd.f32 %v405, %v493
  %495 = vmatmul.bf16.gmra.mxu0 %v203
  %v496 = vpop.f32.mrf.mxu0
  %v497 = vadd.f32 %v408, %v496
  %v498 = vpop.f32.mrf.mxu0
  %v499 = vadd.f32 %v410, %v498
  %500 = vmatmul.bf16.gmra.mxu0 %v205
  %v501 = vpop.f32.mrf.mxu0
  %v502 = vadd.f32 %v413, %v501
  %v503 = vpop.f32.mrf.mxu0
  %v504 = vadd.f32 %v415, %v503
  %505 = vmatmul.bf16.gmra.mxu0 %v207
  %v506 = vpop.f32.mrf.mxu0
  %v507 = vadd.f32 %v418, %v506
  %v508 = vpop.f32.mrf.mxu0
  %v509 = vadd.f32 %v420, %v508
  %510 = vmatmul.bf16.gmra.mxu0 %v209
  %v511 = vpop.f32.mrf.mxu0
  %v512 = vadd.f32 %v423, %v511
  %v513 = vpop.f32.mrf.mxu0
  %v514 = vadd.f32 %v425, %v513
  %515 = vdwg.mxu0
  %v516 = vsub.f32 0.0, %v437
  %v517 = vsub.f32 0.0, %v439
  %v518 = vsub.f32 0.0, %v442
  %v519 = vsub.f32 0.0, %v444
  %v520 = vsub.f32 0.0, %v447
  %v521 = vsub.f32 0.0, %v449
  %v522 = vsub.f32 0.0, %v452
  %v523 = vsub.f32 0.0, %v454
  %v524 = vsub.f32 0.0, %v457
  %v525 = vsub.f32 0.0, %v459
  %v526 = vsub.f32 0.0, %v462
  %v527 = vsub.f32 0.0, %v464
  %v528 = vsub.f32 0.0, %v467
  %v529 = vsub.f32 0.0, %v469
  %v530 = vsub.f32 0.0, %v472
  %v531 = vsub.f32 0.0, %v474
  %v532 = vsub.f32 0.0, %v477
  %v533 = vsub.f32 0.0, %v479
  %v534 = vsub.f32 0.0, %v482
  %v535 = vsub.f32 0.0, %v484
  %v536 = vsub.f32 0.0, %v487
  %v537 = vsub.f32 0.0, %v489
  %v538 = vsub.f32 0.0, %v492
  %v539 = vsub.f32 0.0, %v494
  %v540 = vsub.f32 0.0, %v497
  %v541 = vsub.f32 0.0, %v499
  %v542 = vsub.f32 0.0, %v502
  %v543 = vsub.f32 0.0, %v504
  %v544 = vsub.f32 0.0, %v507
  %v545 = vsub.f32 0.0, %v509
  %v546 = vsub.f32 0.0, %v512
  %v547 = vsub.f32 0.0, %v514
  %v548 = vmul.f32 %v516, 1.442695
  %v549 = vpow.pop %v548
  %v550 = vmul.f32 %v517, 1.442695
  %v551 = vpow.pop %v550
  %v552 = vmul.f32 %v518, 1.442695
  %v553 = vpow.pop %v552
  %v554 = vmul.f32 %v519, 1.442695
  %v555 = vpow.pop %v554
  %v556 = vmul.f32 %v520, 1.442695
  %v557 = vpow.pop %v556
  %v558 = vmul.f32 %v521, 1.442695
  %v559 = vpow.pop %v558
  %v560 = vmul.f32 %v522, 1.442695
  %v561 = vpow.pop %v560
  %v562 = vmul.f32 %v523, 1.442695
  %v563 = vpow.pop %v562
  %v564 = vmul.f32 %v524, 1.442695
  %v565 = vpow.pop %v564
  %v566 = vmul.f32 %v525, 1.442695
  %v567 = vpow.pop %v566
  %v568 = vmul.f32 %v526, 1.442695
  %v569 = vpow.pop %v568
  %v570 = vmul.f32 %v527, 1.442695
  %v571 = vpow.pop %v570
  %v572 = vmul.f32 %v528, 1.442695
  %v573 = vpow.pop %v572
  %v574 = vmul.f32 %v529, 1.442695
  %v575 = vpow.pop %v574
  %v576 = vmul.f32 %v530, 1.442695
  %v577 = vpow.pop %v576
  %v578 = vmul.f32 %v531, 1.442695
  %v579 = vpow.pop %v578
  %v580 = vmul.f32 %v532, 1.442695
  %v581 = vpow.pop %v580
  %v582 = vmul.f32 %v533, 1.442695
  %v583 = vpow.pop %v582
  %v584 = vmul.f32 %v534, 1.442695
  %v585 = vpow.pop %v584
  %v586 = vmul.f32 %v535, 1.442695
  %v587 = vpow.pop %v586
  %v588 = vmul.f32 %v536, 1.442695
  %v589 = vpow.pop %v588
  %v590 = vmul.f32 %v537, 1.442695
  %v591 = vpow.pop %v590
  %v592 = vmul.f32 %v538, 1.442695
  %v593 = vpow.pop %v592
  %v594 = vmul.f32 %v539, 1.442695
  %v595 = vpow.pop %v594
  %v596 = vmul.f32 %v540, 1.442695
  %v597 = vpow.pop %v596
  %v598 = vmul.f32 %v541, 1.442695
  %v599 = vpow.pop %v598
  %v600 = vmul.f32 %v542, 1.442695
  %v601 = vpow.pop %v600
  %v602 = vmul.f32 %v543, 1.442695
  %v603 = vpow.pop %v602
  %v604 = vmul.f32 %v544, 1.442695
  %v605 = vpow.pop %v604
  %v606 = vmul.f32 %v545, 1.442695
  %v607 = vpow.pop %v606
  %v608 = vmul.f32 %v546, 1.442695
  %v609 = vpow.pop %v608
  %v610 = vmul.f32 %v547, 1.442695
  %v611 = vpow.pop %v610
  %v612 = vadd.f32 %v549, 1.0
  %v613 = vadd.f32 %v551, 1.0
  %v614 = vadd.f32 %v553, 1.0
  %v615 = vadd.f32 %v555, 1.0
  %v616 = vadd.f32 %v557, 1.0
  %v617 = vadd.f32 %v559, 1.0
  %v618 = vadd.f32 %v561, 1.0
  %v619 = vadd.f32 %v563, 1.0
  %v620 = vadd.f32 %v565, 1.0
  %v621 = vadd.f32 %v567, 1.0
  %v622 = vadd.f32 %v569, 1.0
  %v623 = vadd.f32 %v571, 1.0
  %v624 = vadd.f32 %v573, 1.0
  %v625 = vadd.f32 %v575, 1.0
  %v626 = vadd.f32 %v577, 1.0
  %v627 = vadd.f32 %v579, 1.0
  %v628 = vadd.f32 %v581, 1.0
  %v629 = vadd.f32 %v583, 1.0
  %v630 = vadd.f32 %v585, 1.0
  %v631 = vadd.f32 %v587, 1.0
  %v632 = vadd.f32 %v589, 1.0
  %v633 = vadd.f32 %v591, 1.0
  %v634 = vadd.f32 %v593, 1.0
  %v635 = vadd.f32 %v595, 1.0
  %v636 = vadd.f32 %v597, 1.0
  %v637 = vadd.f32 %v599, 1.0
  %v638 = vadd.f32 %v601, 1.0
  %v639 = vadd.f32 %v603, 1.0
  %v640 = vadd.f32 %v605, 1.0
  %v641 = vadd.f32 %v607, 1.0
  %v642 = vadd.f32 %v609, 1.0
  %v643 = vadd.f32 %v611, 1.0
  %v644 = vrcp.pop %v612
  %v645 = vmul.f32 %v612, %v644
  %v646 = vsub.f32 1.0, %v645
  %v647 = vmul.f32 %v644, %v646
  %v648 = vadd.f32 %v644, %v647
  %vm649 = vweird.f32 %v612
  %vm650 = vweird.f32 %v644
  %vm651 = vmor %vm649, %vm650
  %v652 = vsel %vm651, %v644, %v648
  %v653 = vand.u32 2147483647, %v612
  %vm654 = vcmp.eq.f32.partialorder %v653, 8.507059e+37
  %v655 = vand.u32 %v612, 2147483648
  %v656 = vor.u32 1.1754944e-38, %v655
  %v657 = vsel %vm654, %v656, %v652
  %v658 = vmul.f32 1.0, %v657
  %v659 = vrcp.pop %v613
  %v660 = vmul.f32 %v613, %v659
  %v661 = vsub.f32 1.0, %v660
  %v662 = vmul.f32 %v659, %v661
  %v663 = vadd.f32 %v659, %v662
  %vm664 = vweird.f32 %v613
  %vm665 = vweird.f32 %v659
  %vm666 = vmor %vm664, %vm665
  %v667 = vsel %vm666, %v659, %v663
  %v668 = vand.u32 2147483647, %v613
  %vm669 = vcmp.eq.f32.partialorder %v668, 8.507059e+37
  %v670 = vand.u32 %v613, 2147483648
  %v671 = vor.u32 1.1754944e-38, %v670
  %v672 = vsel %vm669, %v671, %v667
  %v673 = vmul.f32 1.0, %v672
  %v674 = vrcp.pop %v614
  %v675 = vmul.f32 %v614, %v674
  %v676 = vsub.f32 1.0, %v675
  %v677 = vmul.f32 %v674, %v676
  %v678 = vadd.f32 %v674, %v677
  %vm679 = vweird.f32 %v614
  %vm680 = vweird.f32 %v674
  %vm681 = vmor %vm679, %vm680
  %v682 = vsel %vm681, %v674, %v678
  %v683 = vand.u32 2147483647, %v614
  %vm684 = vcmp.eq.f32.partialorder %v683, 8.507059e+37
  %v685 = vand.u32 %v614, 2147483648
  %v686 = vor.u32 1.1754944e-38, %v685
  %v687 = vsel %vm684, %v686, %v682
  %v688 = vmul.f32 1.0, %v687
  %v689 = vrcp.pop %v615
  %v690 = vmul.f32 %v615, %v689
  %v691 = vsub.f32 1.0, %v690
  %v692 = vmul.f32 %v689, %v691
  %v693 = vadd.f32 %v689, %v692
  %vm694 = vweird.f32 %v615
  %vm695 = vweird.f32 %v689
  %vm696 = vmor %vm694, %vm695
  %v697 = vsel %vm696, %v689, %v693
  %v698 = vand.u32 2147483647, %v615
  %vm699 = vcmp.eq.f32.partialorder %v698, 8.507059e+37
  %v700 = vand.u32 %v615, 2147483648
  %v701 = vor.u32 1.1754944e-38, %v700
  %v702 = vsel %vm699, %v701, %v697
  %v703 = vmul.f32 1.0, %v702
  %v704 = vrcp.pop %v616
  %v705 = vmul.f32 %v616, %v704
  %v706 = vsub.f32 1.0, %v705
  %v707 = vmul.f32 %v704, %v706
  %v708 = vadd.f32 %v704, %v707
  %vm709 = vweird.f32 %v616
  %vm710 = vweird.f32 %v704
  %vm711 = vmor %vm709, %vm710
  %v712 = vsel %vm711, %v704, %v708
  %v713 = vand.u32 2147483647, %v616
  %vm714 = vcmp.eq.f32.partialorder %v713, 8.507059e+37
  %v715 = vand.u32 %v616, 2147483648
  %v716 = vor.u32 1.1754944e-38, %v715
  %v717 = vsel %vm714, %v716, %v712
  %v718 = vmul.f32 1.0, %v717
  %v719 = vrcp.pop %v617
  %v720 = vmul.f32 %v617, %v719
  %v721 = vsub.f32 1.0, %v720
  %v722 = vmul.f32 %v719, %v721
  %v723 = vadd.f32 %v719, %v722
  %vm724 = vweird.f32 %v617
  %vm725 = vweird.f32 %v719
  %vm726 = vmor %vm724, %vm725
  %v727 = vsel %vm726, %v719, %v723
  %v728 = vand.u32 2147483647, %v617
  %vm729 = vcmp.eq.f32.partialorder %v728, 8.507059e+37
  %v730 = vand.u32 %v617, 2147483648
  %v731 = vor.u32 1.1754944e-38, %v730
  %v732 = vsel %vm729, %v731, %v727
  %v733 = vmul.f32 1.0, %v732
  %v734 = vrcp.pop %v618
  %v735 = vmul.f32 %v618, %v734
  %v736 = vsub.f32 1.0, %v735
  %v737 = vmul.f32 %v734, %v736
  %v738 = vadd.f32 %v734, %v737
  %vm739 = vweird.f32 %v618
  %vm740 = vweird.f32 %v734
  %vm741 = vmor %vm739, %vm740
  %v742 = vsel %vm741, %v734, %v738
  %v743 = vand.u32 2147483647, %v618
  %vm744 = vcmp.eq.f32.partialorder %v743, 8.507059e+37
  %v745 = vand.u32 %v618, 2147483648
  %v746 = vor.u32 1.1754944e-38, %v745
  %v747 = vsel %vm744, %v746, %v742
  %v748 = vmul.f32 1.0, %v747
  %v749 = vrcp.pop %v619
  %v750 = vmul.f32 %v619, %v749
  %v751 = vsub.f32 1.0, %v750
  %v752 = vmul.f32 %v749, %v751
  %v753 = vadd.f32 %v749, %v752
  %vm754 = vweird.f32 %v619
  %vm755 = vweird.f32 %v749
  %vm756 = vmor %vm754, %vm755
  %v757 = vsel %vm756, %v749, %v753
  %v758 = vand.u32 2147483647, %v619
  %vm759 = vcmp.eq.f32.partialorder %v758, 8.507059e+37
  %v760 = vand.u32 %v619, 2147483648
  %v761 = vor.u32 1.1754944e-38, %v760
  %v762 = vsel %vm759, %v761, %v757
  %v763 = vmul.f32 1.0, %v762
  %v764 = vrcp.pop %v620
  %v765 = vmul.f32 %v620, %v764
  %v766 = vsub.f32 1.0, %v765
  %v767 = vmul.f32 %v764, %v766
  %v768 = vadd.f32 %v764, %v767
  %vm769 = vweird.f32 %v620
  %vm770 = vweird.f32 %v764
  %vm771 = vmor %vm769, %vm770
  %v772 = vsel %vm771, %v764, %v768
  %v773 = vand.u32 2147483647, %v620
  %vm774 = vcmp.eq.f32.partialorder %v773, 8.507059e+37
  %v775 = vand.u32 %v620, 2147483648
  %v776 = vor.u32 1.1754944e-38, %v775
  %v777 = vsel %vm774, %v776, %v772
  %v778 = vmul.f32 1.0, %v777
  %v779 = vrcp.pop %v621
  %v780 = vmul.f32 %v621, %v779
  %v781 = vsub.f32 1.0, %v780
  %v782 = vmul.f32 %v779, %v781
  %v783 = vadd.f32 %v779, %v782
  %vm784 = vweird.f32 %v621
  %vm785 = vweird.f32 %v779
  %vm786 = vmor %vm784, %vm785
  %v787 = vsel %vm786, %v779, %v783
  %v788 = vand.u32 2147483647, %v621
  %vm789 = vcmp.eq.f32.partialorder %v788, 8.507059e+37
  %v790 = vand.u32 %v621, 2147483648
  %v791 = vor.u32 1.1754944e-38, %v790
  %v792 = vsel %vm789, %v791, %v787
  %v793 = vmul.f32 1.0, %v792
  %v794 = vrcp.pop %v622
  %v795 = vmul.f32 %v622, %v794
  %v796 = vsub.f32 1.0, %v795
  %v797 = vmul.f32 %v794, %v796
  %v798 = vadd.f32 %v794, %v797
  %vm799 = vweird.f32 %v622
  %vm800 = vweird.f32 %v794
  %vm801 = vmor %vm799, %vm800
  %v802 = vsel %vm801, %v794, %v798
  %v803 = vand.u32 2147483647, %v622
  %vm804 = vcmp.eq.f32.partialorder %v803, 8.507059e+37
  %v805 = vand.u32 %v622, 2147483648
  %v806 = vor.u32 1.1754944e-38, %v805
  %v807 = vsel %vm804, %v806, %v802
  %v808 = vmul.f32 1.0, %v807
  %v809 = vrcp.pop %v623
  %v810 = vmul.f32 %v623, %v809
  %v811 = vsub.f32 1.0, %v810
  %v812 = vmul.f32 %v809, %v811
  %v813 = vadd.f32 %v809, %v812
  %vm814 = vweird.f32 %v623
  %vm815 = vweird.f32 %v809
  %vm816 = vmor %vm814, %vm815
  %v817 = vsel %vm816, %v809, %v813
  %v818 = vand.u32 2147483647, %v623
  %vm819 = vcmp.eq.f32.partialorder %v818, 8.507059e+37
  %v820 = vand.u32 %v623, 2147483648
  %v821 = vor.u32 1.1754944e-38, %v820
  %v822 = vsel %vm819, %v821, %v817
  %v823 = vmul.f32 1.0, %v822
  %v824 = vrcp.pop %v624
  %v825 = vmul.f32 %v624, %v824
  %v826 = vsub.f32 1.0, %v825
  %v827 = vmul.f32 %v824, %v826
  %v828 = vadd.f32 %v824, %v827
  %vm829 = vweird.f32 %v624
  %vm830 = vweird.f32 %v824
  %vm831 = vmor %vm829, %vm830
  %v832 = vsel %vm831, %v824, %v828
  %v833 = vand.u32 2147483647, %v624
  %vm834 = vcmp.eq.f32.partialorder %v833, 8.507059e+37
  %v835 = vand.u32 %v624, 2147483648
  %v836 = vor.u32 1.1754944e-38, %v835
  %v837 = vsel %vm834, %v836, %v832
  %v838 = vmul.f32 1.0, %v837
  %v839 = vrcp.pop %v625
  %v840 = vmul.f32 %v625, %v839
  %v841 = vsub.f32 1.0, %v840
  %v842 = vmul.f32 %v839, %v841
  %v843 = vadd.f32 %v839, %v842
  %vm844 = vweird.f32 %v625
  %vm845 = vweird.f32 %v839
  %vm846 = vmor %vm844, %vm845
  %v847 = vsel %vm846, %v839, %v843
  %v848 = vand.u32 2147483647, %v625
  %vm849 = vcmp.eq.f32.partialorder %v848, 8.507059e+37
  %v850 = vand.u32 %v625, 2147483648
  %v851 = vor.u32 1.1754944e-38, %v850
  %v852 = vsel %vm849, %v851, %v847
  %v853 = vmul.f32 1.0, %v852
  %v854 = vrcp.pop %v626
  %v855 = vmul.f32 %v626, %v854
  %v856 = vsub.f32 1.0, %v855
  %v857 = vmul.f32 %v854, %v856
  %v858 = vadd.f32 %v854, %v857
  %vm859 = vweird.f32 %v626
  %vm860 = vweird.f32 %v854
  %vm861 = vmor %vm859, %vm860
  %v862 = vsel %vm861, %v854, %v858
  %v863 = vand.u32 2147483647, %v626
  %vm864 = vcmp.eq.f32.partialorder %v863, 8.507059e+37
  %v865 = vand.u32 %v626, 2147483648
  %v866 = vor.u32 1.1754944e-38, %v865
  %v867 = vsel %vm864, %v866, %v862
  %v868 = vmul.f32 1.0, %v867
  %v869 = vrcp.pop %v627
  %v870 = vmul.f32 %v627, %v869
  %v871 = vsub.f32 1.0, %v870
  %v872 = vmul.f32 %v869, %v871
  %v873 = vadd.f32 %v869, %v872
  %vm874 = vweird.f32 %v627
  %vm875 = vweird.f32 %v869
  %vm876 = vmor %vm874, %vm875
  %v877 = vsel %vm876, %v869, %v873
  %v878 = vand.u32 2147483647, %v627
  %vm879 = vcmp.eq.f32.partialorder %v878, 8.507059e+37
  %v880 = vand.u32 %v627, 2147483648
  %v881 = vor.u32 1.1754944e-38, %v880
  %v882 = vsel %vm879, %v881, %v877
  %v883 = vmul.f32 1.0, %v882
  %v884 = vrcp.pop %v628
  %v885 = vmul.f32 %v628, %v884
  %v886 = vsub.f32 1.0, %v885
  %v887 = vmul.f32 %v884, %v886
  %v888 = vadd.f32 %v884, %v887
  %vm889 = vweird.f32 %v628
  %vm890 = vweird.f32 %v884
  %vm891 = vmor %vm889, %vm890
  %v892 = vsel %vm891, %v884, %v888
  %v893 = vand.u32 2147483647, %v628
  %vm894 = vcmp.eq.f32.partialorder %v893, 8.507059e+37
  %v895 = vand.u32 %v628, 2147483648
  %v896 = vor.u32 1.1754944e-38, %v895
  %v897 = vsel %vm894, %v896, %v892
  %v898 = vmul.f32 1.0, %v897
  %v899 = vrcp.pop %v629
  %v900 = vmul.f32 %v629, %v899
  %v901 = vsub.f32 1.0, %v900
  %v902 = vmul.f32 %v899, %v901
  %v903 = vadd.f32 %v899, %v902
  %vm904 = vweird.f32 %v629
  %vm905 = vweird.f32 %v899
  %vm906 = vmor %vm904, %vm905
  %v907 = vsel %vm906, %v899, %v903
  %v908 = vand.u32 2147483647, %v629
  %vm909 = vcmp.eq.f32.partialorder %v908, 8.507059e+37
  %v910 = vand.u32 %v629, 2147483648
  %v911 = vor.u32 1.1754944e-38, %v910
  %v912 = vsel %vm909, %v911, %v907
  %v913 = vmul.f32 1.0, %v912
  %v914 = vrcp.pop %v630
  %v915 = vmul.f32 %v630, %v914
  %v916 = vsub.f32 1.0, %v915
  %v917 = vmul.f32 %v914, %v916
  %v918 = vadd.f32 %v914, %v917
  %vm919 = vweird.f32 %v630
  %vm920 = vweird.f32 %v914
  %vm921 = vmor %vm919, %vm920
  %v922 = vsel %vm921, %v914, %v918
  %v923 = vand.u32 2147483647, %v630
  %vm924 = vcmp.eq.f32.partialorder %v923, 8.507059e+37
  %v925 = vand.u32 %v630, 2147483648
  %v926 = vor.u32 1.1754944e-38, %v925
  %v927 = vsel %vm924, %v926, %v922
  %v928 = vmul.f32 1.0, %v927
  %v929 = vrcp.pop %v631
  %v930 = vmul.f32 %v631, %v929
  %v931 = vsub.f32 1.0, %v930
  %v932 = vmul.f32 %v929, %v931
  %v933 = vadd.f32 %v929, %v932
  %vm934 = vweird.f32 %v631
  %vm935 = vweird.f32 %v929
  %vm936 = vmor %vm934, %vm935
  %v937 = vsel %vm936, %v929, %v933
  %v938 = vand.u32 2147483647, %v631
  %vm939 = vcmp.eq.f32.partialorder %v938, 8.507059e+37
  %v940 = vand.u32 %v631, 2147483648
  %v941 = vor.u32 1.1754944e-38, %v940
  %v942 = vsel %vm939, %v941, %v937
  %v943 = vmul.f32 1.0, %v942
  %v944 = vrcp.pop %v632
  %v945 = vmul.f32 %v632, %v944
  %v946 = vsub.f32 1.0, %v945
  %v947 = vmul.f32 %v944, %v946
  %v948 = vadd.f32 %v944, %v947
  %vm949 = vweird.f32 %v632
  %vm950 = vweird.f32 %v944
  %vm951 = vmor %vm949, %vm950
  %v952 = vsel %vm951, %v944, %v948
  %v953 = vand.u32 2147483647, %v632
  %vm954 = vcmp.eq.f32.partialorder %v953, 8.507059e+37
  %v955 = vand.u32 %v632, 2147483648
  %v956 = vor.u32 1.1754944e-38, %v955
  %v957 = vsel %vm954, %v956, %v952
  %v958 = vmul.f32 1.0, %v957
  %v959 = vrcp.pop %v633
  %v960 = vmul.f32 %v633, %v959
  %v961 = vsub.f32 1.0, %v960
  %v962 = vmul.f32 %v959, %v961
  %v963 = vadd.f32 %v959, %v962
  %vm964 = vweird.f32 %v633
  %vm965 = vweird.f32 %v959
  %vm966 = vmor %vm964, %vm965
  %v967 = vsel %vm966, %v959, %v963
  %v968 = vand.u32 2147483647, %v633
  %vm969 = vcmp.eq.f32.partialorder %v968, 8.507059e+37
  %v970 = vand.u32 %v633, 2147483648
  %v971 = vor.u32 1.1754944e-38, %v970
  %v972 = vsel %vm969, %v971, %v967
  %v973 = vmul.f32 1.0, %v972
  %v974 = vrcp.pop %v634
  %v975 = vmul.f32 %v634, %v974
  %v976 = vsub.f32 1.0, %v975
  %v977 = vmul.f32 %v974, %v976
  %v978 = vadd.f32 %v974, %v977
  %vm979 = vweird.f32 %v634
  %vm980 = vweird.f32 %v974
  %vm981 = vmor %vm979, %vm980
  %v982 = vsel %vm981, %v974, %v978
  %v983 = vand.u32 2147483647, %v634
  %vm984 = vcmp.eq.f32.partialorder %v983, 8.507059e+37
  %v985 = vand.u32 %v634, 2147483648
  %v986 = vor.u32 1.1754944e-38, %v985
  %v987 = vsel %vm984, %v986, %v982
  %v988 = vmul.f32 1.0, %v987
  %v989 = vrcp.pop %v635
  %v990 = vmul.f32 %v635, %v989
  %v991 = vsub.f32 1.0, %v990
  %v992 = vmul.f32 %v989, %v991
  %v993 = vadd.f32 %v989, %v992
  %vm994 = vweird.f32 %v635
  %vm995 = vweird.f32 %v989
  %vm996 = vmor %vm994, %vm995
  %v997 = vsel %vm996, %v989, %v993
  %v998 = vand.u32 2147483647, %v635
  %vm999 = vcmp.eq.f32.partialorder %v998, 8.507059e+37
  %v1000 = vand.u32 %v635, 2147483648
  %v1001 = vor.u32 1.1754944e-38, %v1000
  %v1002 = vsel %vm999, %v1001, %v997
  %v1003 = vmul.f32 1.0, %v1002
  %v1004 = vrcp.pop %v636
  %v1005 = vmul.f32 %v636, %v1004
  %v1006 = vsub.f32 1.0, %v1005
  %v1007 = vmul.f32 %v1004, %v1006
  %v1008 = vadd.f32 %v1004, %v1007
  %vm1009 = vweird.f32 %v636
  %vm1010 = vweird.f32 %v1004
  %vm1011 = vmor %vm1009, %vm1010
  %v1012 = vsel %vm1011, %v1004, %v1008
  %v1013 = vand.u32 2147483647, %v636
  %vm1014 = vcmp.eq.f32.partialorder %v1013, 8.507059e+37
  %v1015 = vand.u32 %v636, 2147483648
  %v1016 = vor.u32 1.1754944e-38, %v1015
  %v1017 = vsel %vm1014, %v1016, %v1012
  %v1018 = vmul.f32 1.0, %v1017
  %v1019 = vrcp.pop %v637
  %v1020 = vmul.f32 %v637, %v1019
  %v1021 = vsub.f32 1.0, %v1020
  %v1022 = vmul.f32 %v1019, %v1021
  %v1023 = vadd.f32 %v1019, %v1022
  %vm1024 = vweird.f32 %v637
  %vm1025 = vweird.f32 %v1019
  %vm1026 = vmor %vm1024, %vm1025
  %v1027 = vsel %vm1026, %v1019, %v1023
  %v1028 = vand.u32 2147483647, %v637
  %vm1029 = vcmp.eq.f32.partialorder %v1028, 8.507059e+37
  %v1030 = vand.u32 %v637, 2147483648
  %v1031 = vor.u32 1.1754944e-38, %v1030
  %v1032 = vsel %vm1029, %v1031, %v1027
  %v1033 = vmul.f32 1.0, %v1032
  %v1034 = vrcp.pop %v638
  %v1035 = vmul.f32 %v638, %v1034
  %v1036 = vsub.f32 1.0, %v1035
  %v1037 = vmul.f32 %v1034, %v1036
  %v1038 = vadd.f32 %v1034, %v1037
  %vm1039 = vweird.f32 %v638
  %vm1040 = vweird.f32 %v1034
  %vm1041 = vmor %vm1039, %vm1040
  %v1042 = vsel %vm1041, %v1034, %v1038
  %v1043 = vand.u32 2147483647, %v638
  %vm1044 = vcmp.eq.f32.partialorder %v1043, 8.507059e+37
  %v1045 = vand.u32 %v638, 2147483648
  %v1046 = vor.u32 1.1754944e-38, %v1045
  %v1047 = vsel %vm1044, %v1046, %v1042
  %v1048 = vmul.f32 1.0, %v1047
  %v1049 = vrcp.pop %v639
  %v1050 = vmul.f32 %v639, %v1049
  %v1051 = vsub.f32 1.0, %v1050
  %v1052 = vmul.f32 %v1049, %v1051
  %v1053 = vadd.f32 %v1049, %v1052
  %vm1054 = vweird.f32 %v639
  %vm1055 = vweird.f32 %v1049
  %vm1056 = vmor %vm1054, %vm1055
  %v1057 = vsel %vm1056, %v1049, %v1053
  %v1058 = vand.u32 2147483647, %v639
  %vm1059 = vcmp.eq.f32.partialorder %v1058, 8.507059e+37
  %v1060 = vand.u32 %v639, 2147483648
  %v1061 = vor.u32 1.1754944e-38, %v1060
  %v1062 = vsel %vm1059, %v1061, %v1057
  %v1063 = vmul.f32 1.0, %v1062
  %v1064 = vrcp.pop %v640
  %v1065 = vmul.f32 %v640, %v1064
  %v1066 = vsub.f32 1.0, %v1065
  %v1067 = vmul.f32 %v1064, %v1066
  %v1068 = vadd.f32 %v1064, %v1067
  %vm1069 = vweird.f32 %v640
  %vm1070 = vweird.f32 %v1064
  %vm1071 = vmor %vm1069, %vm1070
  %v1072 = vsel %vm1071, %v1064, %v1068
  %v1073 = vand.u32 2147483647, %v640
  %vm1074 = vcmp.eq.f32.partialorder %v1073, 8.507059e+37
  %v1075 = vand.u32 %v640, 2147483648
  %v1076 = vor.u32 1.1754944e-38, %v1075
  %v1077 = vsel %vm1074, %v1076, %v1072
  %v1078 = vmul.f32 1.0, %v1077
  %v1079 = vrcp.pop %v641
  %v1080 = vmul.f32 %v641, %v1079
  %v1081 = vsub.f32 1.0, %v1080
  %v1082 = vmul.f32 %v1079, %v1081
  %v1083 = vadd.f32 %v1079, %v1082
  %vm1084 = vweird.f32 %v641
  %vm1085 = vweird.f32 %v1079
  %vm1086 = vmor %vm1084, %vm1085
  %v1087 = vsel %vm1086, %v1079, %v1083
  %v1088 = vand.u32 2147483647, %v641
  %vm1089 = vcmp.eq.f32.partialorder %v1088, 8.507059e+37
  %v1090 = vand.u32 %v641, 2147483648
  %v1091 = vor.u32 1.1754944e-38, %v1090
  %v1092 = vsel %vm1089, %v1091, %v1087
  %v1093 = vmul.f32 1.0, %v1092
  %v1094 = vrcp.pop %v642
  %v1095 = vmul.f32 %v642, %v1094
  %v1096 = vsub.f32 1.0, %v1095
  %v1097 = vmul.f32 %v1094, %v1096
  %v1098 = vadd.f32 %v1094, %v1097
  %vm1099 = vweird.f32 %v642
  %vm1100 = vweird.f32 %v1094
  %vm1101 = vmor %vm1099, %vm1100
  %v1102 = vsel %vm1101, %v1094, %v1098
  %v1103 = vand.u32 2147483647, %v642
  %vm1104 = vcmp.eq.f32.partialorder %v1103, 8.507059e+37
  %v1105 = vand.u32 %v642, 2147483648
  %v1106 = vor.u32 1.1754944e-38, %v1105
  %v1107 = vsel %vm1104, %v1106, %v1102
  %v1108 = vmul.f32 1.0, %v1107
  %v1109 = vrcp.pop %v643
  %v1110 = vmul.f32 %v643, %v1109
  %v1111 = vsub.f32 1.0, %v1110
  %v1112 = vmul.f32 %v1109, %v1111
  %v1113 = vadd.f32 %v1109, %v1112
  %vm1114 = vweird.f32 %v643
  %vm1115 = vweird.f32 %v1109
  %vm1116 = vmor %vm1114, %vm1115
  %v1117 = vsel %vm1116, %v1109, %v1113
  %v1118 = vand.u32 2147483647, %v643
  %vm1119 = vcmp.eq.f32.partialorder %v1118, 8.507059e+37
  %v1120 = vand.u32 %v643, 2147483648
  %v1121 = vor.u32 1.1754944e-38, %v1120
  %v1122 = vsel %vm1119, %v1121, %v1117
  %v1123 = vmul.f32 1.0, %v1122
  %1124 = vst [vmem:[%s3] sm:$0xff] %v658
  %1125 = vst [vmem:[%s3 + $0x8] sm:$0xff] %v673
  %1126 = vst [vmem:[%s3 + $0x10] sm:$0xff] %v688
  %1127 = vst [vmem:[%s3 + $0x18] sm:$0xff] %v703
  %1128 = vst [vmem:[%s3 + $0x20] sm:$0xff] %v718
  %1129 = vst [vmem:[%s3 + $0x28] sm:$0xff] %v733
  %1130 = vst [vmem:[%s3 + $0x30] sm:$0xff] %v748
  %1131 = vst [vmem:[%s3 + $0x38] sm:$0xff] %v763
  %1132 = vst [vmem:[%s3 + $0x40] sm:$0xff] %v778
  %1133 = vst [vmem:[%s3 + $0x48] sm:$0xff] %v793
  %1134 = vst [vmem:[%s3 + $0x50] sm:$0xff] %v808
  %1135 = vst [vmem:[%s3 + $0x58] sm:$0xff] %v823
  %1136 = vst [vmem:[%s3 + $0x60] sm:$0xff] %v838
  %1137 = vst [vmem:[%s3 + $0x68] sm:$0xff] %v853
  %1138 = vst [vmem:[%s3 + $0x70] sm:$0xff] %v868
  %1139 = vst [vmem:[%s3 + $0x78] sm:$0xff] %v883
  %1140 = vst [vmem:[%s3 + $0x80] sm:$0xff] %v898
  %1141 = vst [vmem:[%s3 + $0x88] sm:$0xff] %v913
  %1142 = vst [vmem:[%s3 + $0x90] sm:$0xff] %v928
  %1143 = vst [vmem:[%s3 + $0x98] sm:$0xff] %v943
  %1144 = vst [vmem:[%s3 + $0xa0] sm:$0xff] %v958
  %1145 = vst [vmem:[%s3 + $0xa8] sm:$0xff] %v973
  %1146 = vst [vmem:[%s3 + $0xb0] sm:$0xff] %v988
  %1147 = vst [vmem:[%s3 + $0xb8] sm:$0xff] %v1003
  %1148 = vst [vmem:[%s3 + $0xc0] sm:$0xff] %v1018
  %1149 = vst [vmem:[%s3 + $0xc8] sm:$0xff] %v1033
  %1150 = vst [vmem:[%s3 + $0xd0] sm:$0xff] %v1048
  %1151 = vst [vmem:[%s3 + $0xd8] sm:$0xff] %v1063
  %1152 = vst [vmem:[%s3 + $0xe0] sm:$0xff] %v1078
  %1153 = vst [vmem:[%s3 + $0xe8] sm:$0xff] %v1093
  %1154 = vst [vmem:[%s3 + $0xf0] sm:$0xff] %v1108
  %1155 = vst [vmem:[%s3 + $0xf8] sm:$0xff] %v1123
  // Predicated region
  $region14: #{_unet_forward.13} parent=0 // pred_check
    _
  $region15: #{_unet_forward.13} parent=0 // pred_check_branch
    %1157 = sbr.rel (0) target = $region17
  $region16: #{_unet_forward.13} parent=0 // pred_region
    _
  $region17: #{_unet_forward.13} parent=0 // pred_fallthru
    _
  // Predicated region
  $region18: #{_unet_forward.13} parent=0 // pred_check
    _
  $region19: #{_unet_forward.13} parent=0 // pred_check_branch
    %1159 = sbr.rel (0) target = $region21
  $region20: #{_unet_forward.13} parent=0 // pred_region
    _
  $region21: #{_unet_forward.13} parent=0 // pred_fallthru
    _

</llo_original>
